<compile_context>
chip_gen: v5e
topology: v5e:2x2
jax: 0.10.0
libtpu: 0.0.40
codegen_flags: <defaults>
</compile_context>

<pallas_src>
import jax
import jax.numpy as jnp
from jax.experimental import pallas as pl
from jax.experimental.pallas import tpu as pltpu

INPUT_DIM = 784
N_L1 = 1000
N_L2 = 1000
Z_DIM = 2

# Lane-padded (multiple-of-128) feature sizes.
H1P = 1024   # 1000 -> 1024
H2P = 1024   # 1000 -> 1024
OUTP = 896   # 784  -> 896


def _round_up(x, m):
    return (x + m - 1) // m * m


def decoder_kernel(z_ref, w1_ref, b1_ref, w2_ref, b2_ref, w3_ref, b3_ref, out_ref):
    # z_ref: (tm, 2) fp32; w1/biases fp32 (padded); w2/w3 bf16 (padded).
    z = z_ref[...]

    # ---- Layer 1: K=2 "matmul" done as a VPU broadcast MAC (no MXU). ----
    w1 = w1_ref[...]                                          # (2, H1P) fp32
    h1 = z[:, 0:1] * w1[0:1, :] + z[:, 1:2] * w1[1:2, :] + b1_ref[...]
    h1 = jnp.maximum(h1, 0.0)

    # ---- Layer 2: bf16 MXU matmul, fp32 accumulation. ----
    h2 = jnp.dot(h1.astype(jnp.bfloat16), w2_ref[...],
                 preferred_element_type=jnp.float32) + b2_ref[...]
    h2 = jnp.maximum(h2, 0.0)

    # ---- Layer 3 + sigmoid. ----
    logits = jnp.dot(h2.astype(jnp.bfloat16), w3_ref[...],
                     preferred_element_type=jnp.float32) + b3_ref[...]
    out_ref[...] = jax.nn.sigmoid(logits).astype(out_ref.dtype)


def prepare_params(params):
    """Pad feature dims to lane multiples of 128; big weights -> bf16, rest fp32."""
    w1, b1, w2, b2, w3, b3 = params

    def pad2(a, shape, dtype):
        return jnp.pad(a, ((0, shape[0] - a.shape[0]),
                           (0, shape[1] - a.shape[1]))).astype(dtype)

    return (
        pad2(w1, (Z_DIM, H1P), jnp.float32),   # 8 KiB: keep fp32, exact layer-1 math
        pad2(b1, (1, H1P), jnp.float32),
        pad2(w2, (H1P, H2P), jnp.bfloat16),    # ~2 MiB
        pad2(b2, (1, H2P), jnp.float32),
        pad2(w3, (H2P, OUTP), jnp.bfloat16),   # ~1.75 MiB
        pad2(b3, (1, OUTP), jnp.float32),
    )


def _batch_tiling(batch, max_tile_m):
    """Pick (tile_m, padded_batch). Single tile at small batch (one TC pulls the
    weights exactly once); at large batch use an even tile count so the
    "parallel" batch axis shards evenly across v7x's 2 TensorCores."""
    tm = _round_up(max(batch, 1), 8)
    if tm <= max_tile_m:
        return tm, tm
    n_tiles = pl.cdiv(batch, max_tile_m)
    if n_tiles % 2:
        n_tiles += 1
    tm = _round_up(pl.cdiv(batch, n_tiles), 8)
    return tm, tm * n_tiles


def decoder_forward(z, prepared_params, *, max_tile_m=512,
                    out_dtype=jnp.float32, strip_padding=True):
    """z: (batch, 2) fp32. prepared_params: output of prepare_params()."""
    w1, b1, w2, b2, w3, b3 = prepared_params
    batch = z.shape[0]

    tm, padded_batch = _batch_tiling(batch, max_tile_m)
    if padded_batch != batch:
        z = jnp.pad(z, ((0, padded_batch - batch), (0, 0)))
    n_tiles = padded_batch // tm

    # Grid-invariant weights/biases: constant index_map keeps them VMEM-resident;
    # when there are multiple batch tiles, single-buffer them (they never change,
    # so the default double-buffering would only duplicate ~3.75 MiB of VMEM).
    weight_mode = pl.Buffered(1) if n_tiles > 1 else None
    const2d = lambda i: (0, 0)

    out = pl.pallas_call(
        decoder_kernel,
        out_shape=jax.ShapeDtypeStruct((padded_batch, OUTP), out_dtype),
        grid=(n_tiles,),
        in_specs=[
            pl.BlockSpec((tm, Z_DIM), lambda i: (i, 0)),                          # z
            pl.BlockSpec((Z_DIM, H1P), const2d, pipeline_mode=weight_mode),       # w1
            pl.BlockSpec((1, H1P), const2d, pipeline_mode=weight_mode),           # b1
            pl.BlockSpec((H1P, H2P), const2d, pipeline_mode=weight_mode),         # w2
            pl.BlockSpec((1, H2P), const2d, pipeline_mode=weight_mode),           # b2
            pl.BlockSpec((H2P, OUTP), const2d, pipeline_mode=weight_mode),        # w3
            pl.BlockSpec((1, OUTP), const2d, pipeline_mode=weight_mode),          # b3
        ],
        out_specs=pl.BlockSpec((tm, OUTP), lambda i: (i, 0)),
        compiler_params=pltpu.CompilerParams(
            dimension_semantics=("parallel",),
            vmem_limit_bytes=32 * 1024 * 1024,
        ),
    )(z, w1, b1, w2, b2, w3, b3)

    if strip_padding:
        # NOTE: padded cols 784..895 / padded batch rows hold sigmoid(0)=0.5 junk.
        # Consumers that can read the padded buffer should pass strip_padding=False
        # to avoid an extra full HBM round-trip at large batch.
        out = out[:batch, :INPUT_DIM]
    return out


def init_params(key):
    """Deterministic parameter init (same shapes/init as the PyTorch module)."""
    k1, k2, k3 = jax.random.split(key, 3)

    def linear(k, fan_in, fan_out):
        # Uniform(-1/sqrt(fan_in), 1/sqrt(fan_in)), like torch.nn.Linear default.
        bound = 1.0 / jnp.sqrt(jnp.float32(fan_in))
        kw, kb = jax.random.split(k)
        w = jax.random.uniform(kw, (fan_in, fan_out), jnp.float32, -bound, bound)
        b = jax.random.uniform(kb, (1, fan_out), jnp.float32, -bound, bound)
        return w, b

    w1, b1 = linear(k1, Z_DIM, N_L2)
    w2, b2 = linear(k2, N_L2, N_L1)
    w3, b3 = linear(k3, N_L1, INPUT_DIM)
    return (w1, b1, w2, b2, w3, b3)


def decoder_ref_bf16(z, prepared_params):
    """Pure-JAX reference mirroring the kernel's mixed-precision math (tight tol)."""
    w1, b1, w2, b2, w3, b3 = prepared_params
    h1 = jnp.maximum(z[:, 0:1] * w1[0:1, :] + z[:, 1:2] * w1[1:2, :] + b1, 0.0)
    h2 = jnp.maximum(
        jnp.dot(h1.astype(jnp.bfloat16), w2, preferred_element_type=jnp.float32) + b2, 0.0)
    logits = jnp.dot(h2.astype(jnp.bfloat16), w3, preferred_element_type=jnp.float32) + b3
    return jax.nn.sigmoid(logits)[:, :INPUT_DIM]


def decoder_ref_fp32(z, params):
    """Full-precision reference of the original module (loose tolerance)."""
    w1, b1, w2, b2, w3, b3 = params
    h1 = jnp.maximum(z @ w1 + b1, 0.0)
    h2 = jnp.maximum(h1 @ w2 + b2, 0.0)
    return jax.nn.sigmoid(h2 @ w3 + b3)


if __name__ == "__main__":
    key = jax.random.PRNGKey(0)
    kp, kz = jax.random.split(key)

    params = init_params(kp)
    prepared = prepare_params(params)

    batch = 8
    z = jax.random.normal(kz, (batch, Z_DIM), jnp.float32)

    out = decoder_forward(z, prepared)
    out = jax.block_until_ready(out)
    assert out.shape == (batch, INPUT_DIM), out.shape

    # Tight check against a reference that mirrors the kernel's mixed-precision math.
    ref_bf16 = decoder_ref_bf16(z, prepared)
    assert jnp.allclose(out, ref_bf16, atol=2e-3, rtol=2e-3), "mismatch vs bf16 reference"

    # Loose check against the original fp32 module semantics (bf16 weight rounding).
    ref_f32 = decoder_ref_fp32(z, params)
    assert jnp.allclose(out, ref_f32, atol=2e-2, rtol=2e-2), "mismatch vs fp32 reference"

    print("KERNEL_OK")
</pallas_src>

<mosaic_0001>
module attributes {stable_mosaic.version = 11 : i64} {
  func.func @decoder_kernel(%arg0: i32, %arg1: memref<8x2xf32, #tpu.memory_space<vmem>>, %arg2: memref<2x1024xf32, #tpu.memory_space<vmem>>, %arg3: memref<1x1024xf32, #tpu.memory_space<vmem>>, %arg4: memref<1024x1024xbf16, #tpu.memory_space<vmem>>, %arg5: memref<1x1024xf32, #tpu.memory_space<vmem>>, %arg6: memref<1024x896xbf16, #tpu.memory_space<vmem>>, %arg7: memref<1x896xf32, #tpu.memory_space<vmem>>, %arg8: memref<8x896xf32, #tpu.memory_space<vmem>>) attributes {dimension_semantics = [#tpu.dimension_semantics<parallel>], iteration_bounds = array<i64: 1>, scalar_prefetch = 0 : i64, scratch_operands = 0 : i64, tpu.core_type = #tpu.core_type<tc>, window_params = [{transform_indices = @transform_0, window_bounds = array<i64: 8, 2>}, {pipeline_mode = #tpu.pipeline_mode<synchronous>, transform_indices = @transform_1, window_bounds = array<i64: 2, 1024>}, {pipeline_mode = #tpu.pipeline_mode<synchronous>, transform_indices = @transform_2, window_bounds = array<i64: 1, 1024>}, {pipeline_mode = #tpu.pipeline_mode<synchronous>, transform_indices = @transform_3, window_bounds = array<i64: 1024, 1024>}, {pipeline_mode = #tpu.pipeline_mode<synchronous>, transform_indices = @transform_4, window_bounds = array<i64: 1, 1024>}, {pipeline_mode = #tpu.pipeline_mode<synchronous>, transform_indices = @transform_5, window_bounds = array<i64: 1024, 896>}, {pipeline_mode = #tpu.pipeline_mode<synchronous>, transform_indices = @transform_6, window_bounds = array<i64: 1, 896>}, {transform_indices = @transform_7, window_bounds = array<i64: 8, 896>}]} {
    %c0 = arith.constant 0 : index
    %c0_0 = arith.constant 0 : index
    %0 = vector.load %arg1[%c0, %c0_0] : memref<8x2xf32, #tpu.memory_space<vmem>>, vector<8x2xf32>
    %c0_1 = arith.constant 0 : index
    %c0_2 = arith.constant 0 : index
    %1 = vector.load %arg2[%c0_1, %c0_2] : memref<2x1024xf32, #tpu.memory_space<vmem>>, vector<2x1024xf32>
    %2 = vector.extract_strided_slice %0 {offsets = [0, 0], sizes = [8, 1], strides = [1, 1]} : vector<8x2xf32> to vector<8x1xf32>
    %3 = vector.extract_strided_slice %1 {offsets = [0, 0], sizes = [1, 1024], strides = [1, 1]} : vector<2x1024xf32> to vector<1x1024xf32>
    %4 = vector.broadcast %2 : vector<8x1xf32> to vector<8x1024xf32>
    %5 = vector.broadcast %3 : vector<1x1024xf32> to vector<8x1024xf32>
    %6 = arith.mulf %4, %5 : vector<8x1024xf32>
    %7 = vector.extract_strided_slice %0 {offsets = [0, 1], sizes = [8, 1], strides = [1, 1]} : vector<8x2xf32> to vector<8x1xf32>
    %8 = vector.extract_strided_slice %1 {offsets = [1, 0], sizes = [1, 1024], strides = [1, 1]} : vector<2x1024xf32> to vector<1x1024xf32>
    %9 = vector.broadcast %7 : vector<8x1xf32> to vector<8x1024xf32>
    %10 = vector.broadcast %8 : vector<1x1024xf32> to vector<8x1024xf32>
    %11 = arith.mulf %9, %10 : vector<8x1024xf32>
    %12 = arith.addf %6, %11 : vector<8x1024xf32>
    %c0_3 = arith.constant 0 : index
    %c0_4 = arith.constant 0 : index
    %13 = vector.load %arg3[%c0_3, %c0_4] : memref<1x1024xf32, #tpu.memory_space<vmem>>, vector<1x1024xf32>
    %14 = vector.broadcast %13 : vector<1x1024xf32> to vector<8x1024xf32>
    %15 = arith.addf %12, %14 : vector<8x1024xf32>
    %cst = arith.constant 0.000000e+00 : f32
    %16 = vector.broadcast %cst : f32 to vector<8x1024xf32>
    %17 = arith.maximumf %15, %16 : vector<8x1024xf32>
    %18 = arith.truncf %17 : vector<8x1024xf32> to vector<8x1024xbf16>
    %c0_5 = arith.constant 0 : index
    %c0_6 = arith.constant 0 : index
    %19 = vector.load %arg4[%c0_5, %c0_6] : memref<1024x1024xbf16, #tpu.memory_space<vmem>>, vector<1024x1024xbf16>
    %cst_7 = arith.constant dense<0.000000e+00> : vector<8x1024xf32>
    %20 = tpu.matmul %18, %19, %cst_7 {dimension_numbers = #tpu.dot_dimension_numbers<[1], [0], [0], [1], [0, 0, 1, 1], [], []>} : vector<8x1024xbf16>, vector<1024x1024xbf16>, vector<8x1024xf32> -> vector<8x1024xf32>
    %c0_8 = arith.constant 0 : index
    %c0_9 = arith.constant 0 : index
    %21 = vector.load %arg5[%c0_8, %c0_9] : memref<1x1024xf32, #tpu.memory_space<vmem>>, vector<1x1024xf32>
    %22 = vector.broadcast %21 : vector<1x1024xf32> to vector<8x1024xf32>
    %23 = arith.addf %20, %22 : vector<8x1024xf32>
    %cst_10 = arith.constant 0.000000e+00 : f32
    %24 = vector.broadcast %cst_10 : f32 to vector<8x1024xf32>
    %25 = arith.maximumf %23, %24 : vector<8x1024xf32>
    %26 = arith.truncf %25 : vector<8x1024xf32> to vector<8x1024xbf16>
    %c0_11 = arith.constant 0 : index
    %c0_12 = arith.constant 0 : index
    %27 = vector.load %arg6[%c0_11, %c0_12] : memref<1024x896xbf16, #tpu.memory_space<vmem>>, vector<1024x896xbf16>
    %cst_13 = arith.constant dense<0.000000e+00> : vector<8x896xf32>
    %28 = tpu.matmul %26, %27, %cst_13 {dimension_numbers = #tpu.dot_dimension_numbers<[1], [0], [0], [1], [0, 0, 1, 1], [], []>} : vector<8x1024xbf16>, vector<1024x896xbf16>, vector<8x896xf32> -> vector<8x896xf32>
    %c0_14 = arith.constant 0 : index
    %c0_15 = arith.constant 0 : index
    %29 = vector.load %arg7[%c0_14, %c0_15] : memref<1x896xf32, #tpu.memory_space<vmem>>, vector<1x896xf32>
    %30 = vector.broadcast %29 : vector<1x896xf32> to vector<8x896xf32>
    %31 = arith.addf %28, %30 : vector<8x896xf32>
    %32 = arith.negf %31 : vector<8x896xf32>
    %33 = math.exp %32 : vector<8x896xf32>
    %cst_16 = arith.constant 1.000000e+00 : f32
    %34 = vector.broadcast %cst_16 : f32 to vector<8x896xf32>
    %35 = arith.addf %34, %33 : vector<8x896xf32>
    %36 = arith.divf %34, %35 : vector<8x896xf32>
    %c0_17 = arith.constant 0 : index
    %c0_18 = arith.constant 0 : index
    %37 = vector.load %arg8[%c0_17, %c0_18] : memref<8x896xf32, #tpu.memory_space<vmem>>, vector<8x896xf32>
    tpu.vector_store %arg8[%c0_17, %c0_18], %36 {strides = array<i32>} : memref<8x896xf32, #tpu.memory_space<vmem>>, vector<8x896xf32>,
    return
  }
  func.func @transform_0(%arg0: i32) -> (i32, i32) {
    %c0_i32 = arith.constant 0 : i32
    %c0_i32_0 = arith.constant 0 : i32
    return %arg0, %c0_i32 : i32, i32
  }
  func.func @transform_1(%arg0: i32) -> (i32, i32) {
    %c0_i32 = arith.constant 0 : i32
    %c0_i32_0 = arith.constant 0 : i32
    %c0_i32_1 = arith.constant 0 : i32
    return %c0_i32, %c0_i32_0 : i32, i32
  }
  func.func @transform_2(%arg0: i32) -> (i32, i32) {
    %c0_i32 = arith.constant 0 : i32
    %c0_i32_0 = arith.constant 0 : i32
    %c0_i32_1 = arith.constant 0 : i32
    return %c0_i32, %c0_i32_0 : i32, i32
  }
  func.func @transform_3(%arg0: i32) -> (i32, i32) {
    %c0_i32 = arith.constant 0 : i32
    %c0_i32_0 = arith.constant 0 : i32
    %c0_i32_1 = arith.constant 0 : i32
    return %c0_i32, %c0_i32_0 : i32, i32
  }
  func.func @transform_4(%arg0: i32) -> (i32, i32) {
    %c0_i32 = arith.constant 0 : i32
    %c0_i32_0 = arith.constant 0 : i32
    %c0_i32_1 = arith.constant 0 : i32
    return %c0_i32, %c0_i32_0 : i32, i32
  }
  func.func @transform_5(%arg0: i32) -> (i32, i32) {
    %c0_i32 = arith.constant 0 : i32
    %c0_i32_0 = arith.constant 0 : i32
    %c0_i32_1 = arith.constant 0 : i32
    return %c0_i32, %c0_i32_0 : i32, i32
  }
  func.func @transform_6(%arg0: i32) -> (i32, i32) {
    %c0_i32 = arith.constant 0 : i32
    %c0_i32_0 = arith.constant 0 : i32
    %c0_i32_1 = arith.constant 0 : i32
    return %c0_i32, %c0_i32_0 : i32, i32
  }
  func.func @transform_7(%arg0: i32) -> (i32, i32) {
    %c0_i32 = arith.constant 0 : i32
    %c0_i32_0 = arith.constant 0 : i32
    return %arg0, %c0_i32 : i32, i32
  }
}

</mosaic_0001>

<llo_original>
// kernel: tpu_custom_call.1
$region0: #{tpu_custom_call.1}
  #allocation0 [shape = 'u32[]', space=smem, size = 0x4, offset = 0x4, fixed_abs, tag = 'smem constant byte address 0x4 - core index']
  #allocation1 [shape = 'u32[72,128]{1,0:T(1,128)}', space=vmem, size = 0x9000, scoped, tag = 'internal scratch']
  %s0 = inlined_call_operand.vmem [shape: f32[8,2], index: 0, kind: input, shape index: {}]
  %s1 = inlined_call_operand.hbm [shape: f32[2,1024], index: 1, kind: input, shape index: {}]
  %s2 = inlined_call_operand.hbm [shape: f32[1,1024], index: 2, kind: input, shape index: {}]
  %s3 = inlined_call_operand.hbm [shape: bf16[1024,1024], index: 3, kind: input, shape index: {}]
  %s4 = inlined_call_operand.hbm [shape: f32[1,1024], index: 4, kind: input, shape index: {}]
  %s5 = inlined_call_operand.hbm [shape: bf16[1024,896], index: 5, kind: input, shape index: {}]
  %s6 = inlined_call_operand.hbm [shape: f32[1,896], index: 6, kind: input, shape index: {}]
  %s7 = inlined_call_operand.hbm [shape: f32[8,896], index: 7, kind: output, shape index: {}]
  %s8 = sld [smem:[#allocation0]]
  $region62: #{tpu_custom_call.1} parent=0
    _
  %s10 = ssub.s32 1, %s8
  %s11 = scalar_select 0, %s10, %s8
  $region1: #{tpu_custom_call.1} parent=0
    #allocation2 [shape = 'u8[8192]{0}', space=vmem, size = 0x2000, scoped, tag = 'input window, operand 1, single buffered']
    #allocation3 [shape = 's32[1]{0}', space=sflag, size = 0x4, scoped, tag = 'scoped memory for tpu_custom_call.1']
    #allocation4 [shape = 's32[1]{0}', space=sflag, size = 0x4, scoped, tag = 'scoped memory for tpu_custom_call.1']
    #allocation5 [shape = 'u8[4096]{0}', space=vmem, size = 0x1000, scoped, tag = 'input window, operand 2, single buffered']
    #allocation6 [shape = 's32[1]{0}', space=sflag, size = 0x4, scoped, tag = 'scoped memory for tpu_custom_call.1']
    #allocation7 [shape = 'u8[2097152]{0}', space=vmem, size = 0x200000, scoped, tag = 'input window, operand 3, single buffered']
    #allocation8 [shape = 'u8[4096]{0}', space=vmem, size = 0x1000, scoped, tag = 'input window, operand 4, single buffered']
    #allocation9 [shape = 's32[1]{0}', space=sflag, size = 0x4, scoped, tag = 'scoped memory for tpu_custom_call.1']
    #allocation10 [shape = 'u8[1835008]{0}', space=vmem, size = 0x1c0000, scoped, tag = 'input window, operand 5, single buffered']
    #allocation11 [shape = 'u8[3584]{0}', space=vmem, size = 0x1000, scoped, tag = 'input window, operand 6, single buffered']
    #allocation12 [shape = 's32[1]{0}', space=sflag, size = 0x4, scoped, tag = 'scoped memory for tpu_custom_call.1']
    #allocation13 [shape = 'u8[28672]{0}', space=vmem, size = 0x7000, scoped, tag = 'output window, operand 0, single buffered']
    %12 = vsyncpa [#allocation3], 0
    %13 = vsyncpa [#allocation6], 0
    %14 = vsyncpa [#allocation9], 0
    %15 = vsyncpa [#allocation12], 0
    %16 = vsyncpa [#allocation4], 0
    // Predicated region
    $region2: #{tpu_custom_call.1} parent=1 // pred_check
      _
    $region3: #{tpu_custom_call.1} parent=1 // pred_check_branch
      %18 = sbr.rel (0) target = $region5
    $region4: #{tpu_custom_call.1} parent=1 // pred_region
      _
    $region5: #{tpu_custom_call.1} parent=1 // pred_fallthru
      _
    // Predicated region
    $region6: #{tpu_custom_call.1} parent=1 // pred_check
      _
    $region7: #{tpu_custom_call.1} parent=1 // pred_check_branch
      %20 = sbr.rel (0) target = $region9
    $region8: #{tpu_custom_call.1} parent=1 // pred_region
      %22 = vsyncadd [#allocation3], 0
      %s24 = sshll.u32 %s1, 4
      %s25 = int_to_ptr.hbm [resolvable:$true] %s24
      %s26 = sshll.u32 [#allocation2], 4
      %s27 = int_to_ptr.vmem [resolvable:$true] %s26
      %29 = dma.hbm_to_vmem [thread:$0]  %s25, 256, %s27, [#allocation3]
    $region9: #{tpu_custom_call.1} parent=1 // pred_fallthru
      _
    // Predicated region
    $region10: #{tpu_custom_call.1} parent=1 // pred_check
      _
    $region11: #{tpu_custom_call.1} parent=1 // pred_check_branch
      %31 = sbr.rel (0) target = $region13
    $region12: #{tpu_custom_call.1} parent=1 // pred_region
      %33 = vsyncadd [#allocation6], 0
      %s35 = sshll.u32 %s2, 4
      %s36 = int_to_ptr.hbm [resolvable:$true] %s35
      %s37 = sshll.u32 [#allocation5], 4
      %s38 = int_to_ptr.vmem [resolvable:$true] %s37
      %40 = dma.hbm_to_vmem [thread:$0]  %s36, 128, %s38, [#allocation6]
    $region13: #{tpu_custom_call.1} parent=1 // pred_fallthru
      _
    // Predicated region
    $region14: #{tpu_custom_call.1} parent=1 // pred_check
      _
    $region15: #{tpu_custom_call.1} parent=1 // pred_check_branch
      %42 = sbr.rel (0) target = $region17
    $region16: #{tpu_custom_call.1} parent=1 // pred_region
      %44 = vsyncadd [#allocation6], 0
      %s45 = sshll.u32 %s3, 4
      %s46 = int_to_ptr.hbm [resolvable:$true] %s45
      %s47 = sshll.u32 [#allocation7], 4
      %s48 = int_to_ptr.vmem [resolvable:$true] %s47
      %53 = dma.hbm_to_vmem [thread:$0]  %s46, 65536, %s48, [#allocation6], 512, 512, 32
    $region17: #{tpu_custom_call.1} parent=1 // pred_fallthru
      _
    // Predicated region
    $region18: #{tpu_custom_call.1} parent=1 // pred_check
      _
    $region19: #{tpu_custom_call.1} parent=1 // pred_check_branch
      %55 = sbr.rel (0) target = $region21
    $region20: #{tpu_custom_call.1} parent=1 // pred_region
      %57 = vsyncadd [#allocation9], 0
      %s59 = sshll.u32 %s4, 4
      %s60 = int_to_ptr.hbm [resolvable:$true] %s59
      %s61 = sshll.u32 [#allocation8], 4
      %s62 = int_to_ptr.vmem [resolvable:$true] %s61
      %64 = dma.hbm_to_vmem [thread:$0]  %s60, 128, %s62, [#allocation9]
    $region21: #{tpu_custom_call.1} parent=1 // pred_fallthru
      _
    // Predicated region
    $region22: #{tpu_custom_call.1} parent=1 // pred_check
      _
    $region23: #{tpu_custom_call.1} parent=1 // pred_check_branch
      %66 = sbr.rel (0) target = $region25
    $region24: #{tpu_custom_call.1} parent=1 // pred_region
      %68 = vsyncadd [#allocation9], 0
      %s69 = sshll.u32 %s5, 4
      %s70 = int_to_ptr.hbm [resolvable:$true] %s69
      %s71 = sshll.u32 [#allocation10], 4
      %s72 = int_to_ptr.vmem [resolvable:$true] %s71
      %77 = dma.hbm_to_vmem [thread:$0]  %s70, 57344, %s72, [#allocation9], 448, 448, 28
    $region25: #{tpu_custom_call.1} parent=1 // pred_fallthru
      _
    // Predicated region
    $region26: #{tpu_custom_call.1} parent=1 // pred_check
      _
    $region27: #{tpu_custom_call.1} parent=1 // pred_check_branch
      %79 = sbr.rel (0) target = $region29
    $region28: #{tpu_custom_call.1} parent=1 // pred_region
      %81 = vsyncadd [#allocation12], 0
      %s83 = sshll.u32 %s6, 4
      %s84 = int_to_ptr.hbm [resolvable:$true] %s83
      %s85 = sshll.u32 [#allocation11], 4
      %s86 = int_to_ptr.vmem [resolvable:$true] %s85
      %88 = dma.hbm_to_vmem [thread:$0]  %s84, 112, %s86, [#allocation12]
    $region29: #{tpu_custom_call.1} parent=1 // pred_fallthru
      _
    // Predicated region
    $region30: #{tpu_custom_call.1} parent=1 // pred_check
      _
    $region31: #{tpu_custom_call.1} parent=1 // pred_check_branch
      %90 = sbr.rel (0) target = $region33
    $region32: #{tpu_custom_call.1} parent=1 // pred_region
      %92 = dma.done [#allocation3], 256
    $region33: #{tpu_custom_call.1} parent=1 // pred_fallthru
      _
    // Predicated region
    $region34: #{tpu_custom_call.1} parent=1 // pred_check
      _
    $region35: #{tpu_custom_call.1} parent=1 // pred_check_branch
      %94 = sbr.rel (0) target = $region37
    $region36: #{tpu_custom_call.1} parent=1 // pred_region
      %96 = dma.done [#allocation6], 128
    $region37: #{tpu_custom_call.1} parent=1 // pred_fallthru
      _
    // Predicated region
    $region38: #{tpu_custom_call.1} parent=1 // pred_check
      _
    $region39: #{tpu_custom_call.1} parent=1 // pred_check_branch
      %98 = sbr.rel (0) target = $region41
    $region40: #{tpu_custom_call.1} parent=1 // pred_region
      %100 = dma.done [#allocation6], 65536
    $region41: #{tpu_custom_call.1} parent=1 // pred_fallthru
      _
    // Predicated region
    $region42: #{tpu_custom_call.1} parent=1 // pred_check
      _
    $region43: #{tpu_custom_call.1} parent=1 // pred_check_branch
      %102 = sbr.rel (0) target = $region45
    $region44: #{tpu_custom_call.1} parent=1 // pred_region
      %104 = dma.done [#allocation9], 128
    $region45: #{tpu_custom_call.1} parent=1 // pred_fallthru
      _
    // Predicated region
    $region46: #{tpu_custom_call.1} parent=1 // pred_check
      _
    $region47: #{tpu_custom_call.1} parent=1 // pred_check_branch
      %106 = sbr.rel (0) target = $region49
    $region48: #{tpu_custom_call.1} parent=1 // pred_region
      %108 = dma.done [#allocation9], 57344
    $region49: #{tpu_custom_call.1} parent=1 // pred_fallthru
      _
    // Predicated region
    $region50: #{tpu_custom_call.1} parent=1 // pred_check
      _
    $region51: #{tpu_custom_call.1} parent=1 // pred_check_branch
      %110 = sbr.rel (0) target = $region53
    $region52: #{tpu_custom_call.1} parent=1 // pred_region
      %112 = dma.done [#allocation12], 112
    $region53: #{tpu_custom_call.1} parent=1 // pred_fallthru
      _
    %v113 = vld [vmem:[%s0] sm:$0xff]
    %v114 = vld [vmem:[#allocation2] sm:$0xff]
    %v115 = vld [vmem:[#allocation2 + $0x8] sm:$0xff]
    %117 = vset.pattern.permute.xlu0 0
    %118 = vperm.xlu0 %117, %v113
    %v119 = vpop.permute.xlu0 %118
    %v123 = vperm.slane %v114, 0
    %v124 = vperm.slane %v114, 2
    %v125 = vperm.slane %v114, 4
    %v126 = vperm.slane %v114, 6
    %v127 = vperm.slane %v115, 0
    %v128 = vperm.slane %v115, 2
    %v129 = vperm.slane %v115, 4
    %v130 = vperm.slane %v115, 6
    %v139 = vperm.slane %v123, 0
    %v140 = vperm.slane %v124, 0
    %v141 = vperm.slane %v125, 0
    %v142 = vperm.slane %v126, 0
    %v143 = vperm.slane %v127, 0
    %v144 = vperm.slane %v128, 0
    %v145 = vperm.slane %v129, 0
    %v146 = vperm.slane %v130, 0
    %v147 = vmul.f32 %v119, %v139
    %v148 = vmul.f32 %v119, %v140
    %v149 = vmul.f32 %v119, %v141
    %v150 = vmul.f32 %v119, %v142
    %v151 = vmul.f32 %v119, %v143
    %v152 = vmul.f32 %v119, %v144
    %v153 = vmul.f32 %v119, %v145
    %v154 = vmul.f32 %v119, %v146
    %155 = vset.pattern.permute.xlu0 1
    %156 = vperm.xlu0 %155, %v113
    %v157 = vpop.permute.xlu0 %156
    %v159 = vperm.slane %v114, 1
    %v160 = vperm.slane %v114, 3
    %v161 = vperm.slane %v114, 5
    %v162 = vperm.slane %v114, 7
    %v163 = vperm.slane %v115, 1
    %v164 = vperm.slane %v115, 3
    %v165 = vperm.slane %v115, 5
    %v166 = vperm.slane %v115, 7
    %v175 = vperm.slane %v159, 1
    %v176 = vperm.slane %v160, 1
    %v177 = vperm.slane %v161, 1
    %v178 = vperm.slane %v162, 1
    %v179 = vperm.slane %v163, 1
    %v180 = vperm.slane %v164, 1
    %v181 = vperm.slane %v165, 1
    %v182 = vperm.slane %v166, 1
    %v183 = vmul.f32 %v157, %v175
    %v184 = vmul.f32 %v157, %v176
    %v185 = vmul.f32 %v157, %v177
    %v186 = vmul.f32 %v157, %v178
    %v187 = vmul.f32 %v157, %v179
    %v188 = vmul.f32 %v157, %v180
    %v189 = vmul.f32 %v157, %v181
    %v190 = vmul.f32 %v157, %v182
    %v191 = vadd.f32 %v147, %v183
    %v192 = vadd.f32 %v148, %v184
    %v193 = vadd.f32 %v149, %v185
    %v194 = vadd.f32 %v150, %v186
    %v195 = vadd.f32 %v151, %v187
    %v196 = vadd.f32 %v152, %v188
    %v197 = vadd.f32 %v153, %v189
    %v198 = vadd.f32 %v154, %v190
    %v199 = vld [vmem:[#allocation5] sm:$0xff]
    %v201 = vperm.slane %v199, 0
    %v202 = vperm.slane %v199, 1
    %v203 = vperm.slane %v199, 2
    %v204 = vperm.slane %v199, 3
    %v205 = vperm.slane %v199, 4
    %v206 = vperm.slane %v199, 5
    %v207 = vperm.slane %v199, 6
    %v208 = vperm.slane %v199, 7
    %v217 = vadd.f32 %v191, %v201
    %v218 = vadd.f32 %v192, %v202
    %v219 = vadd.f32 %v193, %v203
    %v220 = vadd.f32 %v194, %v204
    %v221 = vadd.f32 %v195, %v205
    %v222 = vadd.f32 %v196, %v206
    %v223 = vadd.f32 %v197, %v207
    %v224 = vadd.f32 %v198, %v208
    %v225 = vmax.f32 %v217, 0.0
    %v226 = vmax.f32 %v218, 0.0
    %v227 = vmax.f32 %v219, 0.0
    %v228 = vmax.f32 %v220, 0.0
    %v229 = vmax.f32 %v221, 0.0
    %v230 = vmax.f32 %v222, 0.0
    %v231 = vmax.f32 %v223, 0.0
    %v232 = vmax.f32 %v224, 0.0
    %v233 = vpack.c.bf16 %v225, %v225
    %v234 = vpack.c.bf16 %v226, %v226
    %v235 = vpack.c.bf16 %v227, %v227
    %v236 = vpack.c.bf16 %v228, %v228
    %v237 = vpack.c.bf16 %v229, %v229
    %v238 = vpack.c.bf16 %v230, %v230
    %v239 = vpack.c.bf16 %v231, %v231
    %v240 = vpack.c.bf16 %v232, %v232
    %v241 = vld [vmem:[#allocation7] sm:$0xff]
    %v242 = vld [vmem:[#allocation7 + $0x8] sm:$0xff]
    %v243 = vld [vmem:[#allocation7 + $0x10] sm:$0xff]
    %v244 = vld [vmem:[#allocation7 + $0x18] sm:$0xff]
    %v245 = vld [vmem:[#allocation7 + $0x20] sm:$0xff]
    %v246 = vld [vmem:[#allocation7 + $0x28] sm:$0xff]
    %v247 = vld [vmem:[#allocation7 + $0x30] sm:$0xff]
    %v248 = vld [vmem:[#allocation7 + $0x38] sm:$0xff]
    %v249 = vld [vmem:[#allocation7 + $0x40] sm:$0xff]
    %v250 = vld [vmem:[#allocation7 + $0x48] sm:$0xff]
    %v251 = vld [vmem:[#allocation7 + $0x50] sm:$0xff]
    %v252 = vld [vmem:[#allocation7 + $0x58] sm:$0xff]
    %v253 = vld [vmem:[#allocation7 + $0x60] sm:$0xff]
    %v254 = vld [vmem:[#allocation7 + $0x68] sm:$0xff]
    %v255 = vld [vmem:[#allocation7 + $0x70] sm:$0xff]
    %v256 = vld [vmem:[#allocation7 + $0x78] sm:$0xff]
    %v257 = vld [vmem:[#allocation7 + $0x80] sm:$0xff]
    %v258 = vld [vmem:[#allocation7 + $0x88] sm:$0xff]
    %v259 = vld [vmem:[#allocation7 + $0x90] sm:$0xff]
    %v260 = vld [vmem:[#allocation7 + $0x98] sm:$0xff]
    %v261 = vld [vmem:[#allocation7 + $0xa0] sm:$0xff]
    %v262 = vld [vmem:[#allocation7 + $0xa8] sm:$0xff]
    %v263 = vld [vmem:[#allocation7 + $0xb0] sm:$0xff]
    %v264 = vld [vmem:[#allocation7 + $0xb8] sm:$0xff]
    %v265 = vld [vmem:[#allocation7 + $0xc0] sm:$0xff]
    %v266 = vld [vmem:[#allocation7 + $0xc8] sm:$0xff]
    %v267 = vld [vmem:[#allocation7 + $0xd0] sm:$0xff]
    %v268 = vld [vmem:[#allocation7 + $0xd8] sm:$0xff]
    %v269 = vld [vmem:[#allocation7 + $0xe0] sm:$0xff]
    %v270 = vld [vmem:[#allocation7 + $0xe8] sm:$0xff]
    %v271 = vld [vmem:[#allocation7 + $0xf0] sm:$0xff]
    %v272 = vld [vmem:[#allocation7 + $0xf8] sm:$0xff]
    %v273 = vld [vmem:[#allocation7 + $0x100] sm:$0xff]
    %v274 = vld [vmem:[#allocation7 + $0x108] sm:$0xff]
    %v275 = vld [vmem:[#allocation7 + $0x110] sm:$0xff]
    %v276 = vld [vmem:[#allocation7 + $0x118] sm:$0xff]
    %v277 = vld [vmem:[#allocation7 + $0x120] sm:$0xff]
    %v278 = vld [vmem:[#allocation7 + $0x128] sm:$0xff]
    %v279 = vld [vmem:[#allocation7 + $0x130] sm:$0xff]
    %v280 = vld [vmem:[#allocation7 + $0x138] sm:$0xff]
    %v281 = vld [vmem:[#allocation7 + $0x140] sm:$0xff]
    %v282 = vld [vmem:[#allocation7 + $0x148] sm:$0xff]
    %v283 = vld [vmem:[#allocation7 + $0x150] sm:$0xff]
    %v284 = vld [vmem:[#allocation7 + $0x158] sm:$0xff]
    %v285 = vld [vmem:[#allocation7 + $0x160] sm:$0xff]
    %v286 = vld [vmem:[#allocation7 + $0x168] sm:$0xff]
    %v287 = vld [vmem:[#allocation7 + $0x170] sm:$0xff]
    %v288 = vld [vmem:[#allocation7 + $0x178] sm:$0xff]
    %v289 = vld [vmem:[#allocation7 + $0x180] sm:$0xff]
    %v290 = vld [vmem:[#allocation7 + $0x188] sm:$0xff]
    %v291 = vld [vmem:[#allocation7 + $0x190] sm:$0xff]
    %v292 = vld [vmem:[#allocation7 + $0x198] sm:$0xff]
    %v293 = vld [vmem:[#allocation7 + $0x1a0] sm:$0xff]
    %v294 = vld [vmem:[#allocation7 + $0x1a8] sm:$0xff]
    %v295 = vld [vmem:[#allocation7 + $0x1b0] sm:$0xff]
    %v296 = vld [vmem:[#allocation7 + $0x1b8] sm:$0xff]
    %v297 = vld [vmem:[#allocation7 + $0x1c0] sm:$0xff]
    %v298 = vld [vmem:[#allocation7 + $0x1c8] sm:$0xff]
    %v299 = vld [vmem:[#allocation7 + $0x1d0] sm:$0xff]
    %v300 = vld [vmem:[#allocation7 + $0x1d8] sm:$0xff]
    %v301 = vld [vmem:[#allocation7 + $0x1e0] sm:$0xff]
    %v302 = vld [vmem:[#allocation7 + $0x1e8] sm:$0xff]
    %v303 = vld [vmem:[#allocation7 + $0x1f0] sm:$0xff]
    %v304 = vld [vmem:[#allocation7 + $0x1f8] sm:$0xff]
    %v305 = vld [vmem:[#allocation7 + $0x200] sm:$0xff]
    %v306 = vld [vmem:[#allocation7 + $0x208] sm:$0xff]
    %v307 = vld [vmem:[#allocation7 + $0x210] sm:$0xff]
    %v308 = vld [vmem:[#allocation7 + $0x218] sm:$0xff]
    %v309 = vld [vmem:[#allocation7 + $0x220] sm:$0xff]
    %v310 = vld [vmem:[#allocation7 + $0x228] sm:$0xff]
    %v311 = vld [vmem:[#allocation7 + $0x230] sm:$0xff]
    %v312 = vld [vmem:[#allocation7 + $0x238] sm:$0xff]
    %v313 = vld [vmem:[#allocation7 + $0x240] sm:$0xff]
    %v314 = vld [vmem:[#allocation7 + $0x248] sm:$0xff]
    %v315 = vld [vmem:[#allocation7 + $0x250] sm:$0xff]
    %v316 = vld [vmem:[#allocation7 + $0x258] sm:$0xff]
    %v317 = vld [vmem:[#allocation7 + $0x260] sm:$0xff]
    %v318 = vld [vmem:[#allocation7 + $0x268] sm:$0xff]
    %v319 = vld [vmem:[#allocation7 + $0x270] sm:$0xff]
    %v320 = vld [vmem:[#allocation7 + $0x278] sm:$0xff]
    %v321 = vld [vmem:[#allocation7 + $0x280] sm:$0xff]
    %v322 = vld [vmem:[#allocation7 + $0x288] sm:$0xff]
    %v323 = vld [vmem:[#allocation7 + $0x290] sm:$0xff]
    %v324 = vld [vmem:[#allocation7 + $0x298] sm:$0xff]
    %v325 = vld [vmem:[#allocation7 + $0x2a0] sm:$0xff]
    %v326 = vld [vmem:[#allocation7 + $0x2a8] sm:$0xff]
    %v327 = vld [vmem:[#allocation7 + $0x2b0] sm:$0xff]
    %v328 = vld [vmem:[#allocation7 + $0x2b8] sm:$0xff]
    %v329 = vld [vmem:[#allocation7 + $0x2c0] sm:$0xff]
    %v330 = vld [vmem:[#allocation7 + $0x2c8] sm:$0xff]
    %v331 = vld [vmem:[#allocation7 + $0x2d0] sm:$0xff]
    %v332 = vld [vmem:[#allocation7 + $0x2d8] sm:$0xff]
    %v333 = vld [vmem:[#allocation7 + $0x2e0] sm:$0xff]
    %v334 = vld [vmem:[#allocation7 + $0x2e8] sm:$0xff]
    %v335 = vld [vmem:[#allocation7 + $0x2f0] sm:$0xff]
    %v336 = vld [vmem:[#allocation7 + $0x2f8] sm:$0xff]
    %v337 = vld [vmem:[#allocation7 + $0x300] sm:$0xff]
    %v338 = vld [vmem:[#allocation7 + $0x308] sm:$0xff]
    %v339 = vld [vmem:[#allocation7 + $0x310] sm:$0xff]
    %v340 = vld [vmem:[#allocation7 + $0x318] sm:$0xff]
    %v341 = vld [vmem:[#allocation7 + $0x320] sm:$0xff]
    %v342 = vld [vmem:[#allocation7 + $0x328] sm:$0xff]
    %v343 = vld [vmem:[#allocation7 + $0x330] sm:$0xff]
    %v344 = vld [vmem:[#allocation7 + $0x338] sm:$0xff]
    %v345 = vld [vmem:[#allocation7 + $0x340] sm:$0xff]
    %v346 = vld [vmem:[#allocation7 + $0x348] sm:$0xff]
    %v347 = vld [vmem:[#allocation7 + $0x350] sm:$0xff]
    %v348 = vld [vmem:[#allocation7 + $0x358] sm:$0xff]
    %v349 = vld [vmem:[#allocation7 + $0x360] sm:$0xff]
    %v350 = vld [vmem:[#allocation7 + $0x368] sm:$0xff]
    %v351 = vld [vmem:[#allocation7 + $0x370] sm:$0xff]
    %v352 = vld [vmem:[#allocation7 + $0x378] sm:$0xff]
    %v353 = vld [vmem:[#allocation7 + $0x380] sm:$0xff]
    %v354 = vld [vmem:[#allocation7 + $0x388] sm:$0xff]
    %v355 = vld [vmem:[#allocation7 + $0x390] sm:$0xff]
    %v356 = vld [vmem:[#allocation7 + $0x398] sm:$0xff]
    %v357 = vld [vmem:[#allocation7 + $0x3a0] sm:$0xff]
    %v358 = vld [vmem:[#allocation7 + $0x3a8] sm:$0xff]
    %v359 = vld [vmem:[#allocation7 + $0x3b0] sm:$0xff]
    %v360 = vld [vmem:[#allocation7 + $0x3b8] sm:$0xff]
    %v361 = vld [vmem:[#allocation7 + $0x3c0] sm:$0xff]
    %v362 = vld [vmem:[#allocation7 + $0x3c8] sm:$0xff]
    %v363 = vld [vmem:[#allocation7 + $0x3d0] sm:$0xff]
    %v364 = vld [vmem:[#allocation7 + $0x3d8] sm:$0xff]
    %v365 = vld [vmem:[#allocation7 + $0x3e0] sm:$0xff]
    %v366 = vld [vmem:[#allocation7 + $0x3e8] sm:$0xff]
    %v367 = vld [vmem:[#allocation7 + $0x3f0] sm:$0xff]
    %v368 = vld [vmem:[#allocation7 + $0x3f8] sm:$0xff]
    %v369 = vld [vmem:[#allocation7 + $0x400] sm:$0xff]
    %v370 = vld [vmem:[#allocation7 + $0x408] sm:$0xff]
    %v371 = vld [vmem:[#allocation7 + $0x410] sm:$0xff]
    %v372 = vld [vmem:[#allocation7 + $0x418] sm:$0xff]
    %v373 = vld [vmem:[#allocation7 + $0x420] sm:$0xff]
    %v374 = vld [vmem:[#allocation7 + $0x428] sm:$0xff]
    %v375 = vld [vmem:[#allocation7 + $0x430] sm:$0xff]
    %v376 = vld [vmem:[#allocation7 + $0x438] sm:$0xff]
    %v377 = vld [vmem:[#allocation7 + $0x440] sm:$0xff]
    %v378 = vld [vmem:[#allocation7 + $0x448] sm:$0xff]
    %v379 = vld [vmem:[#allocation7 + $0x450] sm:$0xff]
    %v380 = vld [vmem:[#allocation7 + $0x458] sm:$0xff]
    %v381 = vld [vmem:[#allocation7 + $0x460] sm:$0xff]
    %v382 = vld [vmem:[#allocation7 + $0x468] sm:$0xff]
    %v383 = vld [vmem:[#allocation7 + $0x470] sm:$0xff]
    %v384 = vld [vmem:[#allocation7 + $0x478] sm:$0xff]
    %v385 = vld [vmem:[#allocation7 + $0x480] sm:$0xff]
    %v386 = vld [vmem:[#allocation7 + $0x488] sm:$0xff]
    %v387 = vld [vmem:[#allocation7 + $0x490] sm:$0xff]
    %v388 = vld [vmem:[#allocation7 + $0x498] sm:$0xff]
    %v389 = vld [vmem:[#allocation7 + $0x4a0] sm:$0xff]
    %v390 = vld [vmem:[#allocation7 + $0x4a8] sm:$0xff]
    %v391 = vld [vmem:[#allocation7 + $0x4b0] sm:$0xff]
    %v392 = vld [vmem:[#allocation7 + $0x4b8] sm:$0xff]
    %v393 = vld [vmem:[#allocation7 + $0x4c0] sm:$0xff]
    %v394 = vld [vmem:[#allocation7 + $0x4c8] sm:$0xff]
    %v395 = vld [vmem:[#allocation7 + $0x4d0] sm:$0xff]
    %v396 = vld [vmem:[#allocation7 + $0x4d8] sm:$0xff]
    %v397 = vld [vmem:[#allocation7 + $0x4e0] sm:$0xff]
    %v398 = vld [vmem:[#allocation7 + $0x4e8] sm:$0xff]
    %v399 = vld [vmem:[#allocation7 + $0x4f0] sm:$0xff]
    %v400 = vld [vmem:[#allocation7 + $0x4f8] sm:$0xff]
    %v401 = vld [vmem:[#allocation7 + $0x500] sm:$0xff]
    %v402 = vld [vmem:[#allocation7 + $0x508] sm:$0xff]
    %v403 = vld [vmem:[#allocation7 + $0x510] sm:$0xff]
    %v404 = vld [vmem:[#allocation7 + $0x518] sm:$0xff]
    %v405 = vld [vmem:[#allocation7 + $0x520] sm:$0xff]
    %v406 = vld [vmem:[#allocation7 + $0x528] sm:$0xff]
    %v407 = vld [vmem:[#allocation7 + $0x530] sm:$0xff]
    %v408 = vld [vmem:[#allocation7 + $0x538] sm:$0xff]
    %v409 = vld [vmem:[#allocation7 + $0x540] sm:$0xff]
    %v410 = vld [vmem:[#allocation7 + $0x548] sm:$0xff]
    %v411 = vld [vmem:[#allocation7 + $0x550] sm:$0xff]
    %v412 = vld [vmem:[#allocation7 + $0x558] sm:$0xff]
    %v413 = vld [vmem:[#allocation7 + $0x560] sm:$0xff]
    %v414 = vld [vmem:[#allocation7 + $0x568] sm:$0xff]
    %v415 = vld [vmem:[#allocation7 + $0x570] sm:$0xff]
    %v416 = vld [vmem:[#allocation7 + $0x578] sm:$0xff]
    %v417 = vld [vmem:[#allocation7 + $0x580] sm:$0xff]
    %v418 = vld [vmem:[#allocation7 + $0x588] sm:$0xff]
    %v419 = vld [vmem:[#allocation7 + $0x590] sm:$0xff]
    %v420 = vld [vmem:[#allocation7 + $0x598] sm:$0xff]
    %v421 = vld [vmem:[#allocation7 + $0x5a0] sm:$0xff]
    %v422 = vld [vmem:[#allocation7 + $0x5a8] sm:$0xff]
    %v423 = vld [vmem:[#allocation7 + $0x5b0] sm:$0xff]
    %v424 = vld [vmem:[#allocation7 + $0x5b8] sm:$0xff]
    %v425 = vld [vmem:[#allocation7 + $0x5c0] sm:$0xff]
    %v426 = vld [vmem:[#allocation7 + $0x5c8] sm:$0xff]
    %v427 = vld [vmem:[#allocation7 + $0x5d0] sm:$0xff]
    %v428 = vld [vmem:[#allocation7 + $0x5d8] sm:$0xff]
    %v429 = vld [vmem:[#allocation7 + $0x5e0] sm:$0xff]
    %v430 = vld [vmem:[#allocation7 + $0x5e8] sm:$0xff]
    %v431 = vld [vmem:[#allocation7 + $0x5f0] sm:$0xff]
    %v432 = vld [vmem:[#allocation7 + $0x5f8] sm:$0xff]
    %v433 = vld [vmem:[#allocation7 + $0x600] sm:$0xff]
    %v434 = vld [vmem:[#allocation7 + $0x608] sm:$0xff]
    %v435 = vld [vmem:[#allocation7 + $0x610] sm:$0xff]
    %v436 = vld [vmem:[#allocation7 + $0x618] sm:$0xff]
    %v437 = vld [vmem:[#allocation7 + $0x620] sm:$0xff]
    %v438 = vld [vmem:[#allocation7 + $0x628] sm:$0xff]
    %v439 = vld [vmem:[#allocation7 + $0x630] sm:$0xff]
    %v440 = vld [vmem:[#allocation7 + $0x638] sm:$0xff]
    %v441 = vld [vmem:[#allocation7 + $0x640] sm:$0xff]
    %v442 = vld [vmem:[#allocation7 + $0x648] sm:$0xff]
    %v443 = vld [vmem:[#allocation7 + $0x650] sm:$0xff]
    %v444 = vld [vmem:[#allocation7 + $0x658] sm:$0xff]
    %v445 = vld [vmem:[#allocation7 + $0x660] sm:$0xff]
    %v446 = vld [vmem:[#allocation7 + $0x668] sm:$0xff]
    %v447 = vld [vmem:[#allocation7 + $0x670] sm:$0xff]
    %v448 = vld [vmem:[#allocation7 + $0x678] sm:$0xff]
    %v449 = vld [vmem:[#allocation7 + $0x680] sm:$0xff]
    %v450 = vld [vmem:[#allocation7 + $0x688] sm:$0xff]
    %v451 = vld [vmem:[#allocation7 + $0x690] sm:$0xff]
    %v452 = vld [vmem:[#allocation7 + $0x698] sm:$0xff]
    %v453 = vld [vmem:[#allocation7 + $0x6a0] sm:$0xff]
    %v454 = vld [vmem:[#allocation7 + $0x6a8] sm:$0xff]
    %v455 = vld [vmem:[#allocation7 + $0x6b0] sm:$0xff]
    %v456 = vld [vmem:[#allocation7 + $0x6b8] sm:$0xff]
    %v457 = vld [vmem:[#allocation7 + $0x6c0] sm:$0xff]
    %v458 = vld [vmem:[#allocation7 + $0x6c8] sm:$0xff]
    %v459 = vld [vmem:[#allocation7 + $0x6d0] sm:$0xff]
    %v460 = vld [vmem:[#allocation7 + $0x6d8] sm:$0xff]
    %v461 = vld [vmem:[#allocation7 + $0x6e0] sm:$0xff]
    %v462 = vld [vmem:[#allocation7 + $0x6e8] sm:$0xff]
    %v463 = vld [vmem:[#allocation7 + $0x6f0] sm:$0xff]
    %v464 = vld [vmem:[#allocation7 + $0x6f8] sm:$0xff]
    %v465 = vld [vmem:[#allocation7 + $0x700] sm:$0xff]
    %v466 = vld [vmem:[#allocation7 + $0x708] sm:$0xff]
    %v467 = vld [vmem:[#allocation7 + $0x710] sm:$0xff]
    %v468 = vld [vmem:[#allocation7 + $0x718] sm:$0xff]
    %v469 = vld [vmem:[#allocation7 + $0x720] sm:$0xff]
    %v470 = vld [vmem:[#allocation7 + $0x728] sm:$0xff]
    %v471 = vld [vmem:[#allocation7 + $0x730] sm:$0xff]
    %v472 = vld [vmem:[#allocation7 + $0x738] sm:$0xff]
    %v473 = vld [vmem:[#allocation7 + $0x740] sm:$0xff]
    %v474 = vld [vmem:[#allocation7 + $0x748] sm:$0xff]
    %v475 = vld [vmem:[#allocation7 + $0x750] sm:$0xff]
    %v476 = vld [vmem:[#allocation7 + $0x758] sm:$0xff]
    %v477 = vld [vmem:[#allocation7 + $0x760] sm:$0xff]
    %v478 = vld [vmem:[#allocation7 + $0x768] sm:$0xff]
    %v479 = vld [vmem:[#allocation7 + $0x770] sm:$0xff]
    %v480 = vld [vmem:[#allocation7 + $0x778] sm:$0xff]
    %v481 = vld [vmem:[#allocation7 + $0x780] sm:$0xff]
    %v482 = vld [vmem:[#allocation7 + $0x788] sm:$0xff]
    %v483 = vld [vmem:[#allocation7 + $0x790] sm:$0xff]
    %v484 = vld [vmem:[#allocation7 + $0x798] sm:$0xff]
    %v485 = vld [vmem:[#allocation7 + $0x7a0] sm:$0xff]
    %v486 = vld [vmem:[#allocation7 + $0x7a8] sm:$0xff]
    %v487 = vld [vmem:[#allocation7 + $0x7b0] sm:$0xff]
    %v488 = vld [vmem:[#allocation7 + $0x7b8] sm:$0xff]
    %v489 = vld [vmem:[#allocation7 + $0x7c0] sm:$0xff]
    %v490 = vld [vmem:[#allocation7 + $0x7c8] sm:$0xff]
    %v491 = vld [vmem:[#allocation7 + $0x7d0] sm:$0xff]
    %v492 = vld [vmem:[#allocation7 + $0x7d8] sm:$0xff]
    %v493 = vld [vmem:[#allocation7 + $0x7e0] sm:$0xff]
    %v494 = vld [vmem:[#allocation7 + $0x7e8] sm:$0xff]
    %v495 = vld [vmem:[#allocation7 + $0x7f0] sm:$0xff]
    %v496 = vld [vmem:[#allocation7 + $0x7f8] sm:$0xff]
    %v497 = vld [vmem:[#allocation7 + $0x800] sm:$0xff]
    %v498 = vld [vmem:[#allocation7 + $0x808] sm:$0xff]
    %v499 = vld [vmem:[#allocation7 + $0x810] sm:$0xff]
    %v500 = vld [vmem:[#allocation7 + $0x818] sm:$0xff]
    %v501 = vld [vmem:[#allocation7 + $0x820] sm:$0xff]
    %v502 = vld [vmem:[#allocation7 + $0x828] sm:$0xff]
    %v503 = vld [vmem:[#allocation7 + $0x830] sm:$0xff]
    %v504 = vld [vmem:[#allocation7 + $0x838] sm:$0xff]
    %v505 = vld [vmem:[#allocation7 + $0x840] sm:$0xff]
    %v506 = vld [vmem:[#allocation7 + $0x848] sm:$0xff]
    %v507 = vld [vmem:[#allocation7 + $0x850] sm:$0xff]
    %v508 = vld [vmem:[#allocation7 + $0x858] sm:$0xff]
    %v509 = vld [vmem:[#allocation7 + $0x860] sm:$0xff]
    %v510 = vld [vmem:[#allocation7 + $0x868] sm:$0xff]
    %v511 = vld [vmem:[#allocation7 + $0x870] sm:$0xff]
    %v512 = vld [vmem:[#allocation7 + $0x878] sm:$0xff]
    %v513 = vld [vmem:[#allocation7 + $0x880] sm:$0xff]
    %v514 = vld [vmem:[#allocation7 + $0x888] sm:$0xff]
    %v515 = vld [vmem:[#allocation7 + $0x890] sm:$0xff]
    %v516 = vld [vmem:[#allocation7 + $0x898] sm:$0xff]
    %v517 = vld [vmem:[#allocation7 + $0x8a0] sm:$0xff]
    %v518 = vld [vmem:[#allocation7 + $0x8a8] sm:$0xff]
    %v519 = vld [vmem:[#allocation7 + $0x8b0] sm:$0xff]
    %v520 = vld [vmem:[#allocation7 + $0x8b8] sm:$0xff]
    %v521 = vld [vmem:[#allocation7 + $0x8c0] sm:$0xff]
    %v522 = vld [vmem:[#allocation7 + $0x8c8] sm:$0xff]
    %v523 = vld [vmem:[#allocation7 + $0x8d0] sm:$0xff]
    %v524 = vld [vmem:[#allocation7 + $0x8d8] sm:$0xff]
    %v525 = vld [vmem:[#allocation7 + $0x8e0] sm:$0xff]
    %v526 = vld [vmem:[#allocation7 + $0x8e8] sm:$0xff]
    %v527 = vld [vmem:[#allocation7 + $0x8f0] sm:$0xff]
    %v528 = vld [vmem:[#allocation7 + $0x8f8] sm:$0xff]
    %v529 = vld [vmem:[#allocation7 + $0x900] sm:$0xff]
    %v530 = vld [vmem:[#allocation7 + $0x908] sm:$0xff]
    %v531 = vld [vmem:[#allocation7 + $0x910] sm:$0xff]
    %v532 = vld [vmem:[#allocation7 + $0x918] sm:$0xff]
    %v533 = vld [vmem:[#allocation7 + $0x920] sm:$0xff]
    %v534 = vld [vmem:[#allocation7 + $0x928] sm:$0xff]
    %v535 = vld [vmem:[#allocation7 + $0x930] sm:$0xff]
    %v536 = vld [vmem:[#allocation7 + $0x938] sm:$0xff]
    %v537 = vld [vmem:[#allocation7 + $0x940] sm:$0xff]
    %v538 = vld [vmem:[#allocation7 + $0x948] sm:$0xff]
    %v539 = vld [vmem:[#allocation7 + $0x950] sm:$0xff]
    %v540 = vld [vmem:[#allocation7 + $0x958] sm:$0xff]
    %v541 = vld [vmem:[#allocation7 + $0x960] sm:$0xff]
    %v542 = vld [vmem:[#allocation7 + $0x968] sm:$0xff]
    %v543 = vld [vmem:[#allocation7 + $0x970] sm:$0xff]
    %v544 = vld [vmem:[#allocation7 + $0x978] sm:$0xff]
    %v545 = vld [vmem:[#allocation7 + $0x980] sm:$0xff]
    %v546 = vld [vmem:[#allocation7 + $0x988] sm:$0xff]
    %v547 = vld [vmem:[#allocation7 + $0x990] sm:$0xff]
    %v548 = vld [vmem:[#allocation7 + $0x998] sm:$0xff]
    %v549 = vld [vmem:[#allocation7 + $0x9a0] sm:$0xff]
    %v550 = vld [vmem:[#allocation7 + $0x9a8] sm:$0xff]
    %v551 = vld [vmem:[#allocation7 + $0x9b0] sm:$0xff]
    %v552 = vld [vmem:[#allocation7 + $0x9b8] sm:$0xff]
    %v553 = vld [vmem:[#allocation7 + $0x9c0] sm:$0xff]
    %v554 = vld [vmem:[#allocation7 + $0x9c8] sm:$0xff]
    %v555 = vld [vmem:[#allocation7 + $0x9d0] sm:$0xff]
    %v556 = vld [vmem:[#allocation7 + $0x9d8] sm:$0xff]
    %v557 = vld [vmem:[#allocation7 + $0x9e0] sm:$0xff]
    %v558 = vld [vmem:[#allocation7 + $0x9e8] sm:$0xff]
    %v559 = vld [vmem:[#allocation7 + $0x9f0] sm:$0xff]
    %v560 = vld [vmem:[#allocation7 + $0x9f8] sm:$0xff]
    %v561 = vld [vmem:[#allocation7 + $0xa00] sm:$0xff]
    %v562 = vld [vmem:[#allocation7 + $0xa08] sm:$0xff]
    %v563 = vld [vmem:[#allocation7 + $0xa10] sm:$0xff]
    %v564 = vld [vmem:[#allocation7 + $0xa18] sm:$0xff]
    %v565 = vld [vmem:[#allocation7 + $0xa20] sm:$0xff]
    %v566 = vld [vmem:[#allocation7 + $0xa28] sm:$0xff]
    %v567 = vld [vmem:[#allocation7 + $0xa30] sm:$0xff]
    %v568 = vld [vmem:[#allocation7 + $0xa38] sm:$0xff]
    %v569 = vld [vmem:[#allocation7 + $0xa40] sm:$0xff]
    %v570 = vld [vmem:[#allocation7 + $0xa48] sm:$0xff]
    %v571 = vld [vmem:[#allocation7 + $0xa50] sm:$0xff]
    %v572 = vld [vmem:[#allocation7 + $0xa58] sm:$0xff]
    %v573 = vld [vmem:[#allocation7 + $0xa60] sm:$0xff]
    %v574 = vld [vmem:[#allocation7 + $0xa68] sm:$0xff]
    %v575 = vld [vmem:[#allocation7 + $0xa70] sm:$0xff]
    %v576 = vld [vmem:[#allocation7 + $0xa78] sm:$0xff]
    %v577 = vld [vmem:[#allocation7 + $0xa80] sm:$0xff]
    %v578 = vld [vmem:[#allocation7 + $0xa88] sm:$0xff]
    %v579 = vld [vmem:[#allocation7 + $0xa90] sm:$0xff]
    %v580 = vld [vmem:[#allocation7 + $0xa98] sm:$0xff]
    %v581 = vld [vmem:[#allocation7 + $0xaa0] sm:$0xff]
    %v582 = vld [vmem:[#allocation7 + $0xaa8] sm:$0xff]
    %v583 = vld [vmem:[#allocation7 + $0xab0] sm:$0xff]
    %v584 = vld [vmem:[#allocation7 + $0xab8] sm:$0xff]
    %v585 = vld [vmem:[#allocation7 + $0xac0] sm:$0xff]
    %v586 = vld [vmem:[#allocation7 + $0xac8] sm:$0xff]
    %v587 = vld [vmem:[#allocation7 + $0xad0] sm:$0xff]
    %v588 = vld [vmem:[#allocation7 + $0xad8] sm:$0xff]
    %v589 = vld [vmem:[#allocation7 + $0xae0] sm:$0xff]
    %v590 = vld [vmem:[#allocation7 + $0xae8] sm:$0xff]
    %v591 = vld [vmem:[#allocation7 + $0xaf0] sm:$0xff]
    %v592 = vld [vmem:[#allocation7 + $0xaf8] sm:$0xff]
    %v593 = vld [vmem:[#allocation7 + $0xb00] sm:$0xff]
    %v594 = vld [vmem:[#allocation7 + $0xb08] sm:$0xff]
    %v595 = vld [vmem:[#allocation7 + $0xb10] sm:$0xff]
    %v596 = vld [vmem:[#allocation7 + $0xb18] sm:$0xff]
    %v597 = vld [vmem:[#allocation7 + $0xb20] sm:$0xff]
    %v598 = vld [vmem:[#allocation7 + $0xb28] sm:$0xff]
    %v599 = vld [vmem:[#allocation7 + $0xb30] sm:$0xff]
    %v600 = vld [vmem:[#allocation7 + $0xb38] sm:$0xff]
    %v601 = vld [vmem:[#allocation7 + $0xb40] sm:$0xff]
    %v602 = vld [vmem:[#allocation7 + $0xb48] sm:$0xff]
    %v603 = vld [vmem:[#allocation7 + $0xb50] sm:$0xff]
    %v604 = vld [vmem:[#allocation7 + $0xb58] sm:$0xff]
    %v605 = vld [vmem:[#allocation7 + $0xb60] sm:$0xff]
    %v606 = vld [vmem:[#allocation7 + $0xb68] sm:$0xff]
    %v607 = vld [vmem:[#allocation7 + $0xb70] sm:$0xff]
    %v608 = vld [vmem:[#allocation7 + $0xb78] sm:$0xff]
    %v609 = vld [vmem:[#allocation7 + $0xb80] sm:$0xff]
    %v610 = vld [vmem:[#allocation7 + $0xb88] sm:$0xff]
    %v611 = vld [vmem:[#allocation7 + $0xb90] sm:$0xff]
    %v612 = vld [vmem:[#allocation7 + $0xb98] sm:$0xff]
    %v613 = vld [vmem:[#allocation7 + $0xba0] sm:$0xff]
    %v614 = vld [vmem:[#allocation7 + $0xba8] sm:$0xff]
    %v615 = vld [vmem:[#allocation7 + $0xbb0] sm:$0xff]
    %v616 = vld [vmem:[#allocation7 + $0xbb8] sm:$0xff]
    %v617 = vld [vmem:[#allocation7 + $0xbc0] sm:$0xff]
    %v618 = vld [vmem:[#allocation7 + $0xbc8] sm:$0xff]
    %v619 = vld [vmem:[#allocation7 + $0xbd0] sm:$0xff]
    %v620 = vld [vmem:[#allocation7 + $0xbd8] sm:$0xff]
    %v621 = vld [vmem:[#allocation7 + $0xbe0] sm:$0xff]
    %v622 = vld [vmem:[#allocation7 + $0xbe8] sm:$0xff]
    %v623 = vld [vmem:[#allocation7 + $0xbf0] sm:$0xff]
    %v624 = vld [vmem:[#allocation7 + $0xbf8] sm:$0xff]
    %v625 = vld [vmem:[#allocation7 + $0xc00] sm:$0xff]
    %v626 = vld [vmem:[#allocation7 + $0xc08] sm:$0xff]
    %v627 = vld [vmem:[#allocation7 + $0xc10] sm:$0xff]
    %v628 = vld [vmem:[#allocation7 + $0xc18] sm:$0xff]
    %v629 = vld [vmem:[#allocation7 + $0xc20] sm:$0xff]
    %v630 = vld [vmem:[#allocation7 + $0xc28] sm:$0xff]
    %v631 = vld [vmem:[#allocation7 + $0xc30] sm:$0xff]
    %v632 = vld [vmem:[#allocation7 + $0xc38] sm:$0xff]
    %v633 = vld [vmem:[#allocation7 + $0xc40] sm:$0xff]
    %v634 = vld [vmem:[#allocation7 + $0xc48] sm:$0xff]
    %v635 = vld [vmem:[#allocation7 + $0xc50] sm:$0xff]
    %v636 = vld [vmem:[#allocation7 + $0xc58] sm:$0xff]
    %v637 = vld [vmem:[#allocation7 + $0xc60] sm:$0xff]
    %v638 = vld [vmem:[#allocation7 + $0xc68] sm:$0xff]
    %v639 = vld [vmem:[#allocation7 + $0xc70] sm:$0xff]
    %v640 = vld [vmem:[#allocation7 + $0xc78] sm:$0xff]
    %v641 = vld [vmem:[#allocation7 + $0xc80] sm:$0xff]
    %v642 = vld [vmem:[#allocation7 + $0xc88] sm:$0xff]
    %v643 = vld [vmem:[#allocation7 + $0xc90] sm:$0xff]
    %v644 = vld [vmem:[#allocation7 + $0xc98] sm:$0xff]
    %v645 = vld [vmem:[#allocation7 + $0xca0] sm:$0xff]
    %v646 = vld [vmem:[#allocation7 + $0xca8] sm:$0xff]
    %v647 = vld [vmem:[#allocation7 + $0xcb0] sm:$0xff]
    %v648 = vld [vmem:[#allocation7 + $0xcb8] sm:$0xff]
    %v649 = vld [vmem:[#allocation7 + $0xcc0] sm:$0xff]
    %v650 = vld [vmem:[#allocation7 + $0xcc8] sm:$0xff]
    %v651 = vld [vmem:[#allocation7 + $0xcd0] sm:$0xff]
    %v652 = vld [vmem:[#allocation7 + $0xcd8] sm:$0xff]
    %v653 = vld [vmem:[#allocation7 + $0xce0] sm:$0xff]
    %v654 = vld [vmem:[#allocation7 + $0xce8] sm:$0xff]
    %v655 = vld [vmem:[#allocation7 + $0xcf0] sm:$0xff]
    %v656 = vld [vmem:[#allocation7 + $0xcf8] sm:$0xff]
    %v657 = vld [vmem:[#allocation7 + $0xd00] sm:$0xff]
    %v658 = vld [vmem:[#allocation7 + $0xd08] sm:$0xff]
    %v659 = vld [vmem:[#allocation7 + $0xd10] sm:$0xff]
    %v660 = vld [vmem:[#allocation7 + $0xd18] sm:$0xff]
    %v661 = vld [vmem:[#allocation7 + $0xd20] sm:$0xff]
    %v662 = vld [vmem:[#allocation7 + $0xd28] sm:$0xff]
    %v663 = vld [vmem:[#allocation7 + $0xd30] sm:$0xff]
    %v664 = vld [vmem:[#allocation7 + $0xd38] sm:$0xff]
    %v665 = vld [vmem:[#allocation7 + $0xd40] sm:$0xff]
    %v666 = vld [vmem:[#allocation7 + $0xd48] sm:$0xff]
    %v667 = vld [vmem:[#allocation7 + $0xd50] sm:$0xff]
    %v668 = vld [vmem:[#allocation7 + $0xd58] sm:$0xff]
    %v669 = vld [vmem:[#allocation7 + $0xd60] sm:$0xff]
    %v670 = vld [vmem:[#allocation7 + $0xd68] sm:$0xff]
    %v671 = vld [vmem:[#allocation7 + $0xd70] sm:$0xff]
    %v672 = vld [vmem:[#allocation7 + $0xd78] sm:$0xff]
    %v673 = vld [vmem:[#allocation7 + $0xd80] sm:$0xff]
    %v674 = vld [vmem:[#allocation7 + $0xd88] sm:$0xff]
    %v675 = vld [vmem:[#allocation7 + $0xd90] sm:$0xff]
    %v676 = vld [vmem:[#allocation7 + $0xd98] sm:$0xff]
    %v677 = vld [vmem:[#allocation7 + $0xda0] sm:$0xff]
    %v678 = vld [vmem:[#allocation7 + $0xda8] sm:$0xff]
    %v679 = vld [vmem:[#allocation7 + $0xdb0] sm:$0xff]
    %v680 = vld [vmem:[#allocation7 + $0xdb8] sm:$0xff]
    %v681 = vld [vmem:[#allocation7 + $0xdc0] sm:$0xff]
    %v682 = vld [vmem:[#allocation7 + $0xdc8] sm:$0xff]
    %v683 = vld [vmem:[#allocation7 + $0xdd0] sm:$0xff]
    %v684 = vld [vmem:[#allocation7 + $0xdd8] sm:$0xff]
    %v685 = vld [vmem:[#allocation7 + $0xde0] sm:$0xff]
    %v686 = vld [vmem:[#allocation7 + $0xde8] sm:$0xff]
    %v687 = vld [vmem:[#allocation7 + $0xdf0] sm:$0xff]
    %v688 = vld [vmem:[#allocation7 + $0xdf8] sm:$0xff]
    %v689 = vld [vmem:[#allocation7 + $0xe00] sm:$0xff]
    %v690 = vld [vmem:[#allocation7 + $0xe08] sm:$0xff]
    %v691 = vld [vmem:[#allocation7 + $0xe10] sm:$0xff]
    %v692 = vld [vmem:[#allocation7 + $0xe18] sm:$0xff]
    %v693 = vld [vmem:[#allocation7 + $0xe20] sm:$0xff]
    %v694 = vld [vmem:[#allocation7 + $0xe28] sm:$0xff]
    %v695 = vld [vmem:[#allocation7 + $0xe30] sm:$0xff]
    %v696 = vld [vmem:[#allocation7 + $0xe38] sm:$0xff]
    %v697 = vld [vmem:[#allocation7 + $0xe40] sm:$0xff]
    %v698 = vld [vmem:[#allocation7 + $0xe48] sm:$0xff]
    %v699 = vld [vmem:[#allocation7 + $0xe50] sm:$0xff]
    %v700 = vld [vmem:[#allocation7 + $0xe58] sm:$0xff]
    %v701 = vld [vmem:[#allocation7 + $0xe60] sm:$0xff]
    %v702 = vld [vmem:[#allocation7 + $0xe68] sm:$0xff]
    %v703 = vld [vmem:[#allocation7 + $0xe70] sm:$0xff]
    %v704 = vld [vmem:[#allocation7 + $0xe78] sm:$0xff]
    %v705 = vld [vmem:[#allocation7 + $0xe80] sm:$0xff]
    %v706 = vld [vmem:[#allocation7 + $0xe88] sm:$0xff]
    %v707 = vld [vmem:[#allocation7 + $0xe90] sm:$0xff]
    %v708 = vld [vmem:[#allocation7 + $0xe98] sm:$0xff]
    %v709 = vld [vmem:[#allocation7 + $0xea0] sm:$0xff]
    %v710 = vld [vmem:[#allocation7 + $0xea8] sm:$0xff]
    %v711 = vld [vmem:[#allocation7 + $0xeb0] sm:$0xff]
    %v712 = vld [vmem:[#allocation7 + $0xeb8] sm:$0xff]
    %v713 = vld [vmem:[#allocation7 + $0xec0] sm:$0xff]
    %v714 = vld [vmem:[#allocation7 + $0xec8] sm:$0xff]
    %v715 = vld [vmem:[#allocation7 + $0xed0] sm:$0xff]
    %v716 = vld [vmem:[#allocation7 + $0xed8] sm:$0xff]
    %v717 = vld [vmem:[#allocation7 + $0xee0] sm:$0xff]
    %v718 = vld [vmem:[#allocation7 + $0xee8] sm:$0xff]
    %v719 = vld [vmem:[#allocation7 + $0xef0] sm:$0xff]
    %v720 = vld [vmem:[#allocation7 + $0xef8] sm:$0xff]
    %v721 = vld [vmem:[#allocation7 + $0xf00] sm:$0xff]
    %v722 = vld [vmem:[#allocation7 + $0xf08] sm:$0xff]
    %v723 = vld [vmem:[#allocation7 + $0xf10] sm:$0xff]
    %v724 = vld [vmem:[#allocation7 + $0xf18] sm:$0xff]
    %v725 = vld [vmem:[#allocation7 + $0xf20] sm:$0xff]
    %v726 = vld [vmem:[#allocation7 + $0xf28] sm:$0xff]
    %v727 = vld [vmem:[#allocation7 + $0xf30] sm:$0xff]
    %v728 = vld [vmem:[#allocation7 + $0xf38] sm:$0xff]
    %v729 = vld [vmem:[#allocation7 + $0xf40] sm:$0xff]
    %v730 = vld [vmem:[#allocation7 + $0xf48] sm:$0xff]
    %v731 = vld [vmem:[#allocation7 + $0xf50] sm:$0xff]
    %v732 = vld [vmem:[#allocation7 + $0xf58] sm:$0xff]
    %v733 = vld [vmem:[#allocation7 + $0xf60] sm:$0xff]
    %v734 = vld [vmem:[#allocation7 + $0xf68] sm:$0xff]
    %v735 = vld [vmem:[#allocation7 + $0xf70] sm:$0xff]
    %v736 = vld [vmem:[#allocation7 + $0xf78] sm:$0xff]
    %v737 = vld [vmem:[#allocation7 + $0xf80] sm:$0xff]
    %v738 = vld [vmem:[#allocation7 + $0xf88] sm:$0xff]
    %v739 = vld [vmem:[#allocation7 + $0xf90] sm:$0xff]
    %v740 = vld [vmem:[#allocation7 + $0xf98] sm:$0xff]
    %v741 = vld [vmem:[#allocation7 + $0xfa0] sm:$0xff]
    %v742 = vld [vmem:[#allocation7 + $0xfa8] sm:$0xff]
    %v743 = vld [vmem:[#allocation7 + $0xfb0] sm:$0xff]
    %v744 = vld [vmem:[#allocation7 + $0xfb8] sm:$0xff]
    %v745 = vld [vmem:[#allocation7 + $0xfc0] sm:$0xff]
    %v746 = vld [vmem:[#allocation7 + $0xfc8] sm:$0xff]
    %v747 = vld [vmem:[#allocation7 + $0xfd0] sm:$0xff]
    %v748 = vld [vmem:[#allocation7 + $0xfd8] sm:$0xff]
    %v749 = vld [vmem:[#allocation7 + $0xfe0] sm:$0xff]
    %v750 = vld [vmem:[#allocation7 + $0xfe8] sm:$0xff]
    %v751 = vld [vmem:[#allocation7 + $0xff0] sm:$0xff]
    %v752 = vld [vmem:[#allocation7 + $0xff8] sm:$0xff]
    %v753 = vld [vmem:[#allocation8] sm:$0xff]
    %v755 = vperm.slane %v753, 0
    %v756 = vperm.slane %v753, 1
    %v757 = vperm.slane %v753, 2
    %v758 = vperm.slane %v753, 3
    %v759 = vperm.slane %v753, 4
    %v760 = vperm.slane %v753, 5
    %v761 = vperm.slane %v753, 6
    %v762 = vperm.slane %v753, 7
    %v1283 = vunpack.c.l.b16 %v241
    %v1284 = vunpack.c.h.b16 %v241
    %v1285 = vunpack.c.l.b16 %v242
    %v1286 = vunpack.c.h.b16 %v242
    %v1287 = vunpack.c.l.b16 %v243
    %v1288 = vunpack.c.h.b16 %v243
    %v1289 = vunpack.c.l.b16 %v244
    %v1290 = vunpack.c.h.b16 %v244
    %v1291 = vunpack.c.l.b16 %v245
    %v1292 = vunpack.c.h.b16 %v245
    %v1293 = vunpack.c.l.b16 %v246
    %v1294 = vunpack.c.h.b16 %v246
    %v1295 = vunpack.c.l.b16 %v247
    %v1296 = vunpack.c.h.b16 %v247
    %v1297 = vunpack.c.l.b16 %v248
    %v1298 = vunpack.c.h.b16 %v248
    %v1299 = vunpack.c.l.b16 %v249
    %v1300 = vunpack.c.h.b16 %v249
    %v1301 = vunpack.c.l.b16 %v250
    %v1302 = vunpack.c.h.b16 %v250
    %v1303 = vunpack.c.l.b16 %v251
    %v1304 = vunpack.c.h.b16 %v251
    %v1305 = vunpack.c.l.b16 %v252
    %v1306 = vunpack.c.h.b16 %v252
    %v1307 = vunpack.c.l.b16 %v253
    %v1308 = vunpack.c.h.b16 %v253
    %v1309 = vunpack.c.l.b16 %v254
    %v1310 = vunpack.c.h.b16 %v254
    %v1311 = vunpack.c.l.b16 %v255
    %v1312 = vunpack.c.h.b16 %v255
    %v1313 = vunpack.c.l.b16 %v256
    %v1314 = vunpack.c.h.b16 %v256
    %v1315 = vunpack.c.l.b16 %v257
    %v1316 = vunpack.c.h.b16 %v257
    %v1317 = vunpack.c.l.b16 %v258
    %v1318 = vunpack.c.h.b16 %v258
    %v1319 = vunpack.c.l.b16 %v259
    %v1320 = vunpack.c.h.b16 %v259
    %v1321 = vunpack.c.l.b16 %v260
    %v1322 = vunpack.c.h.b16 %v260
    %v1323 = vunpack.c.l.b16 %v261
    %v1324 = vunpack.c.h.b16 %v261
    %v1325 = vunpack.c.l.b16 %v262
    %v1326 = vunpack.c.h.b16 %v262
    %v1327 = vunpack.c.l.b16 %v263
    %v1328 = vunpack.c.h.b16 %v263
    %v1329 = vunpack.c.l.b16 %v264
    %v1330 = vunpack.c.h.b16 %v264
    %v1331 = vunpack.c.l.b16 %v265
    %v1332 = vunpack.c.h.b16 %v265
    %v1333 = vunpack.c.l.b16 %v266
    %v1334 = vunpack.c.h.b16 %v266
    %v1335 = vunpack.c.l.b16 %v267
    %v1336 = vunpack.c.h.b16 %v267
    %v1337 = vunpack.c.l.b16 %v268
    %v1338 = vunpack.c.h.b16 %v268
    %v1339 = vunpack.c.l.b16 %v269
    %v1340 = vunpack.c.h.b16 %v269
    %v1341 = vunpack.c.l.b16 %v270
    %v1342 = vunpack.c.h.b16 %v270
    %v1343 = vunpack.c.l.b16 %v271
    %v1344 = vunpack.c.h.b16 %v271
    %v1345 = vunpack.c.l.b16 %v272
    %v1346 = vunpack.c.h.b16 %v272
    %v1347 = vunpack.c.l.b16 %v273
    %v1348 = vunpack.c.h.b16 %v273
    %v1349 = vunpack.c.l.b16 %v274
    %v1350 = vunpack.c.h.b16 %v274
    %v1351 = vunpack.c.l.b16 %v275
    %v1352 = vunpack.c.h.b16 %v275
    %v1353 = vunpack.c.l.b16 %v276
    %v1354 = vunpack.c.h.b16 %v276
    %v1355 = vunpack.c.l.b16 %v277
    %v1356 = vunpack.c.h.b16 %v277
    %v1357 = vunpack.c.l.b16 %v278
    %v1358 = vunpack.c.h.b16 %v278
    %v1359 = vunpack.c.l.b16 %v279
    %v1360 = vunpack.c.h.b16 %v279
    %v1361 = vunpack.c.l.b16 %v280
    %v1362 = vunpack.c.h.b16 %v280
    %v1363 = vunpack.c.l.b16 %v281
    %v1364 = vunpack.c.h.b16 %v281
    %v1365 = vunpack.c.l.b16 %v282
    %v1366 = vunpack.c.h.b16 %v282
    %v1367 = vunpack.c.l.b16 %v283
    %v1368 = vunpack.c.h.b16 %v283
    %v1369 = vunpack.c.l.b16 %v284
    %v1370 = vunpack.c.h.b16 %v284
    %v1371 = vunpack.c.l.b16 %v285
    %v1372 = vunpack.c.h.b16 %v285
    %v1373 = vunpack.c.l.b16 %v286
    %v1374 = vunpack.c.h.b16 %v286
    %v1375 = vunpack.c.l.b16 %v287
    %v1376 = vunpack.c.h.b16 %v287
    %v1377 = vunpack.c.l.b16 %v288
    %v1378 = vunpack.c.h.b16 %v288
    %v1379 = vunpack.c.l.b16 %v289
    %v1380 = vunpack.c.h.b16 %v289
    %v1381 = vunpack.c.l.b16 %v290
    %v1382 = vunpack.c.h.b16 %v290
    %v1383 = vunpack.c.l.b16 %v291
    %v1384 = vunpack.c.h.b16 %v291
    %v1385 = vunpack.c.l.b16 %v292
    %v1386 = vunpack.c.h.b16 %v292
    %v1387 = vunpack.c.l.b16 %v293
    %v1388 = vunpack.c.h.b16 %v293
    %v1389 = vunpack.c.l.b16 %v294
    %v1390 = vunpack.c.h.b16 %v294
    %v1391 = vunpack.c.l.b16 %v295
    %v1392 = vunpack.c.h.b16 %v295
    %v1393 = vunpack.c.l.b16 %v296
    %v1394 = vunpack.c.h.b16 %v296
    %v1395 = vunpack.c.l.b16 %v297
    %v1396 = vunpack.c.h.b16 %v297
    %v1397 = vunpack.c.l.b16 %v298
    %v1398 = vunpack.c.h.b16 %v298
    %v1399 = vunpack.c.l.b16 %v299
    %v1400 = vunpack.c.h.b16 %v299
    %v1401 = vunpack.c.l.b16 %v300
    %v1402 = vunpack.c.h.b16 %v300
    %v1403 = vunpack.c.l.b16 %v301
    %v1404 = vunpack.c.h.b16 %v301
    %v1405 = vunpack.c.l.b16 %v302
    %v1406 = vunpack.c.h.b16 %v302
    %v1407 = vunpack.c.l.b16 %v303
    %v1408 = vunpack.c.h.b16 %v303
    %v1409 = vunpack.c.l.b16 %v304
    %v1410 = vunpack.c.h.b16 %v304
    %v1411 = vunpack.c.l.b16 %v305
    %v1412 = vunpack.c.h.b16 %v305
    %v1413 = vunpack.c.l.b16 %v306
    %v1414 = vunpack.c.h.b16 %v306
    %v1415 = vunpack.c.l.b16 %v307
    %v1416 = vunpack.c.h.b16 %v307
    %v1417 = vunpack.c.l.b16 %v308
    %v1418 = vunpack.c.h.b16 %v308
    %v1419 = vunpack.c.l.b16 %v309
    %v1420 = vunpack.c.h.b16 %v309
    %v1421 = vunpack.c.l.b16 %v310
    %v1422 = vunpack.c.h.b16 %v310
    %v1423 = vunpack.c.l.b16 %v311
    %v1424 = vunpack.c.h.b16 %v311
    %v1425 = vunpack.c.l.b16 %v312
    %v1426 = vunpack.c.h.b16 %v312
    %v1427 = vunpack.c.l.b16 %v313
    %v1428 = vunpack.c.h.b16 %v313
    %v1429 = vunpack.c.l.b16 %v314
    %v1430 = vunpack.c.h.b16 %v314
    %v1431 = vunpack.c.l.b16 %v315
    %v1432 = vunpack.c.h.b16 %v315
    %v1433 = vunpack.c.l.b16 %v316
    %v1434 = vunpack.c.h.b16 %v316
    %v1435 = vunpack.c.l.b16 %v317
    %v1436 = vunpack.c.h.b16 %v317
    %v1437 = vunpack.c.l.b16 %v318
    %v1438 = vunpack.c.h.b16 %v318
    %v1439 = vunpack.c.l.b16 %v319
    %v1440 = vunpack.c.h.b16 %v319
    %v1441 = vunpack.c.l.b16 %v320
    %v1442 = vunpack.c.h.b16 %v320
    %v1443 = vunpack.c.l.b16 %v321
    %v1444 = vunpack.c.h.b16 %v321
    %v1445 = vunpack.c.l.b16 %v322
    %v1446 = vunpack.c.h.b16 %v322
    %v1447 = vunpack.c.l.b16 %v323
    %v1448 = vunpack.c.h.b16 %v323
    %v1449 = vunpack.c.l.b16 %v324
    %v1450 = vunpack.c.h.b16 %v324
    %v1451 = vunpack.c.l.b16 %v325
    %v1452 = vunpack.c.h.b16 %v325
    %v1453 = vunpack.c.l.b16 %v326
    %v1454 = vunpack.c.h.b16 %v326
    %v1455 = vunpack.c.l.b16 %v327
    %v1456 = vunpack.c.h.b16 %v327
    %v1457 = vunpack.c.l.b16 %v328
    %v1458 = vunpack.c.h.b16 %v328
    %v1459 = vunpack.c.l.b16 %v329
    %v1460 = vunpack.c.h.b16 %v329
    %v1461 = vunpack.c.l.b16 %v330
    %v1462 = vunpack.c.h.b16 %v330
    %v1463 = vunpack.c.l.b16 %v331
    %v1464 = vunpack.c.h.b16 %v331
    %v1465 = vunpack.c.l.b16 %v332
    %v1466 = vunpack.c.h.b16 %v332
    %v1467 = vunpack.c.l.b16 %v333
    %v1468 = vunpack.c.h.b16 %v333
    %v1469 = vunpack.c.l.b16 %v334
    %v1470 = vunpack.c.h.b16 %v334
    %v1471 = vunpack.c.l.b16 %v335
    %v1472 = vunpack.c.h.b16 %v335
    %v1473 = vunpack.c.l.b16 %v336
    %v1474 = vunpack.c.h.b16 %v336
    %v1475 = vunpack.c.l.b16 %v337
    %v1476 = vunpack.c.h.b16 %v337
    %v1477 = vunpack.c.l.b16 %v338
    %v1478 = vunpack.c.h.b16 %v338
    %v1479 = vunpack.c.l.b16 %v339
    %v1480 = vunpack.c.h.b16 %v339
    %v1481 = vunpack.c.l.b16 %v340
    %v1482 = vunpack.c.h.b16 %v340
    %v1483 = vunpack.c.l.b16 %v341
    %v1484 = vunpack.c.h.b16 %v341
    %v1485 = vunpack.c.l.b16 %v342
    %v1486 = vunpack.c.h.b16 %v342
    %v1487 = vunpack.c.l.b16 %v343
    %v1488 = vunpack.c.h.b16 %v343
    %v1489 = vunpack.c.l.b16 %v344
    %v1490 = vunpack.c.h.b16 %v344
    %v1491 = vunpack.c.l.b16 %v345
    %v1492 = vunpack.c.h.b16 %v345
    %v1493 = vunpack.c.l.b16 %v346
    %v1494 = vunpack.c.h.b16 %v346
    %v1495 = vunpack.c.l.b16 %v347
    %v1496 = vunpack.c.h.b16 %v347
    %v1497 = vunpack.c.l.b16 %v348
    %v1498 = vunpack.c.h.b16 %v348
    %v1499 = vunpack.c.l.b16 %v349
    %v1500 = vunpack.c.h.b16 %v349
    %v1501 = vunpack.c.l.b16 %v350
    %v1502 = vunpack.c.h.b16 %v350
    %v1503 = vunpack.c.l.b16 %v351
    %v1504 = vunpack.c.h.b16 %v351
    %v1505 = vunpack.c.l.b16 %v352
    %v1506 = vunpack.c.h.b16 %v352
    %v1507 = vunpack.c.l.b16 %v353
    %v1508 = vunpack.c.h.b16 %v353
    %v1509 = vunpack.c.l.b16 %v354
    %v1510 = vunpack.c.h.b16 %v354
    %v1511 = vunpack.c.l.b16 %v355
    %v1512 = vunpack.c.h.b16 %v355
    %v1513 = vunpack.c.l.b16 %v356
    %v1514 = vunpack.c.h.b16 %v356
    %v1515 = vunpack.c.l.b16 %v357
    %v1516 = vunpack.c.h.b16 %v357
    %v1517 = vunpack.c.l.b16 %v358
    %v1518 = vunpack.c.h.b16 %v358
    %v1519 = vunpack.c.l.b16 %v359
    %v1520 = vunpack.c.h.b16 %v359
    %v1521 = vunpack.c.l.b16 %v360
    %v1522 = vunpack.c.h.b16 %v360
    %v1523 = vunpack.c.l.b16 %v361
    %v1524 = vunpack.c.h.b16 %v361
    %v1525 = vunpack.c.l.b16 %v362
    %v1526 = vunpack.c.h.b16 %v362
    %v1527 = vunpack.c.l.b16 %v363
    %v1528 = vunpack.c.h.b16 %v363
    %v1529 = vunpack.c.l.b16 %v364
    %v1530 = vunpack.c.h.b16 %v364
    %v1531 = vunpack.c.l.b16 %v365
    %v1532 = vunpack.c.h.b16 %v365
    %v1533 = vunpack.c.l.b16 %v366
    %v1534 = vunpack.c.h.b16 %v366
    %v1535 = vunpack.c.l.b16 %v367
    %v1536 = vunpack.c.h.b16 %v367
    %v1537 = vunpack.c.l.b16 %v368
    %v1538 = vunpack.c.h.b16 %v368
    %v1539 = vunpack.c.l.b16 %v369
    %v1540 = vunpack.c.h.b16 %v369
    %v1541 = vunpack.c.l.b16 %v370
    %v1542 = vunpack.c.h.b16 %v370
    %v1543 = vunpack.c.l.b16 %v371
    %v1544 = vunpack.c.h.b16 %v371
    %v1545 = vunpack.c.l.b16 %v372
    %v1546 = vunpack.c.h.b16 %v372
    %v1547 = vunpack.c.l.b16 %v373
    %v1548 = vunpack.c.h.b16 %v373
    %v1549 = vunpack.c.l.b16 %v374
    %v1550 = vunpack.c.h.b16 %v374
    %v1551 = vunpack.c.l.b16 %v375
    %v1552 = vunpack.c.h.b16 %v375
    %v1553 = vunpack.c.l.b16 %v376
    %v1554 = vunpack.c.h.b16 %v376
    %v1555 = vunpack.c.l.b16 %v377
    %v1556 = vunpack.c.h.b16 %v377
    %v1557 = vunpack.c.l.b16 %v378
    %v1558 = vunpack.c.h.b16 %v378
    %v1559 = vunpack.c.l.b16 %v379
    %v1560 = vunpack.c.h.b16 %v379
    %v1561 = vunpack.c.l.b16 %v380
    %v1562 = vunpack.c.h.b16 %v380
    %v1563 = vunpack.c.l.b16 %v381
    %v1564 = vunpack.c.h.b16 %v381
    %v1565 = vunpack.c.l.b16 %v382
    %v1566 = vunpack.c.h.b16 %v382
    %v1567 = vunpack.c.l.b16 %v383
    %v1568 = vunpack.c.h.b16 %v383
    %v1569 = vunpack.c.l.b16 %v384
    %v1570 = vunpack.c.h.b16 %v384
    %v1571 = vunpack.c.l.b16 %v385
    %v1572 = vunpack.c.h.b16 %v385
    %v1573 = vunpack.c.l.b16 %v386
    %v1574 = vunpack.c.h.b16 %v386
    %v1575 = vunpack.c.l.b16 %v387
    %v1576 = vunpack.c.h.b16 %v387
    %v1577 = vunpack.c.l.b16 %v388
    %v1578 = vunpack.c.h.b16 %v388
    %v1579 = vunpack.c.l.b16 %v389
    %v1580 = vunpack.c.h.b16 %v389
    %v1581 = vunpack.c.l.b16 %v390
    %v1582 = vunpack.c.h.b16 %v390
    %v1583 = vunpack.c.l.b16 %v391
    %v1584 = vunpack.c.h.b16 %v391
    %v1585 = vunpack.c.l.b16 %v392
    %v1586 = vunpack.c.h.b16 %v392
    %v1587 = vunpack.c.l.b16 %v393
    %v1588 = vunpack.c.h.b16 %v393
    %v1589 = vunpack.c.l.b16 %v394
    %v1590 = vunpack.c.h.b16 %v394
    %v1591 = vunpack.c.l.b16 %v395
    %v1592 = vunpack.c.h.b16 %v395
    %v1593 = vunpack.c.l.b16 %v396
    %v1594 = vunpack.c.h.b16 %v396
    %v1595 = vunpack.c.l.b16 %v397
    %v1596 = vunpack.c.h.b16 %v397
    %v1597 = vunpack.c.l.b16 %v398
    %v1598 = vunpack.c.h.b16 %v398
    %v1599 = vunpack.c.l.b16 %v399
    %v1600 = vunpack.c.h.b16 %v399
    %v1601 = vunpack.c.l.b16 %v400
    %v1602 = vunpack.c.h.b16 %v400
    %v1603 = vunpack.c.l.b16 %v401
    %v1604 = vunpack.c.h.b16 %v401
    %v1605 = vunpack.c.l.b16 %v402
    %v1606 = vunpack.c.h.b16 %v402
    %v1607 = vunpack.c.l.b16 %v403
    %v1608 = vunpack.c.h.b16 %v403
    %v1609 = vunpack.c.l.b16 %v404
    %v1610 = vunpack.c.h.b16 %v404
    %v1611 = vunpack.c.l.b16 %v405
    %v1612 = vunpack.c.h.b16 %v405
    %v1613 = vunpack.c.l.b16 %v406
    %v1614 = vunpack.c.h.b16 %v406
    %v1615 = vunpack.c.l.b16 %v407
    %v1616 = vunpack.c.h.b16 %v407
    %v1617 = vunpack.c.l.b16 %v408
    %v1618 = vunpack.c.h.b16 %v408
    %v1619 = vunpack.c.l.b16 %v409
    %v1620 = vunpack.c.h.b16 %v409
    %v1621 = vunpack.c.l.b16 %v410
    %v1622 = vunpack.c.h.b16 %v410
    %v1623 = vunpack.c.l.b16 %v411
    %v1624 = vunpack.c.h.b16 %v411
    %v1625 = vunpack.c.l.b16 %v412
    %v1626 = vunpack.c.h.b16 %v412
    %v1627 = vunpack.c.l.b16 %v413
    %v1628 = vunpack.c.h.b16 %v413
    %v1629 = vunpack.c.l.b16 %v414
    %v1630 = vunpack.c.h.b16 %v414
    %v1631 = vunpack.c.l.b16 %v415
    %v1632 = vunpack.c.h.b16 %v415
    %v1633 = vunpack.c.l.b16 %v416
    %v1634 = vunpack.c.h.b16 %v416
    %v1635 = vunpack.c.l.b16 %v417
    %v1636 = vunpack.c.h.b16 %v417
    %v1637 = vunpack.c.l.b16 %v418
    %v1638 = vunpack.c.h.b16 %v418
    %v1639 = vunpack.c.l.b16 %v419
    %v1640 = vunpack.c.h.b16 %v419
    %v1641 = vunpack.c.l.b16 %v420
    %v1642 = vunpack.c.h.b16 %v420
    %v1643 = vunpack.c.l.b16 %v421
    %v1644 = vunpack.c.h.b16 %v421
    %v1645 = vunpack.c.l.b16 %v422
    %v1646 = vunpack.c.h.b16 %v422
    %v1647 = vunpack.c.l.b16 %v423
    %v1648 = vunpack.c.h.b16 %v423
    %v1649 = vunpack.c.l.b16 %v424
    %v1650 = vunpack.c.h.b16 %v424
    %v1651 = vunpack.c.l.b16 %v425
    %v1652 = vunpack.c.h.b16 %v425
    %v1653 = vunpack.c.l.b16 %v426
    %v1654 = vunpack.c.h.b16 %v426
    %v1655 = vunpack.c.l.b16 %v427
    %v1656 = vunpack.c.h.b16 %v427
    %v1657 = vunpack.c.l.b16 %v428
    %v1658 = vunpack.c.h.b16 %v428
    %v1659 = vunpack.c.l.b16 %v429
    %v1660 = vunpack.c.h.b16 %v429
    %v1661 = vunpack.c.l.b16 %v430
    %v1662 = vunpack.c.h.b16 %v430
    %v1663 = vunpack.c.l.b16 %v431
    %v1664 = vunpack.c.h.b16 %v431
    %v1665 = vunpack.c.l.b16 %v432
    %v1666 = vunpack.c.h.b16 %v432
    %v1667 = vunpack.c.l.b16 %v433
    %v1668 = vunpack.c.h.b16 %v433
    %v1669 = vunpack.c.l.b16 %v434
    %v1670 = vunpack.c.h.b16 %v434
    %v1671 = vunpack.c.l.b16 %v435
    %v1672 = vunpack.c.h.b16 %v435
    %v1673 = vunpack.c.l.b16 %v436
    %v1674 = vunpack.c.h.b16 %v436
    %v1675 = vunpack.c.l.b16 %v437
    %v1676 = vunpack.c.h.b16 %v437
    %v1677 = vunpack.c.l.b16 %v438
    %v1678 = vunpack.c.h.b16 %v438
    %v1679 = vunpack.c.l.b16 %v439
    %v1680 = vunpack.c.h.b16 %v439
    %v1681 = vunpack.c.l.b16 %v440
    %v1682 = vunpack.c.h.b16 %v440
    %v1683 = vunpack.c.l.b16 %v441
    %v1684 = vunpack.c.h.b16 %v441
    %v1685 = vunpack.c.l.b16 %v442
    %v1686 = vunpack.c.h.b16 %v442
    %v1687 = vunpack.c.l.b16 %v443
    %v1688 = vunpack.c.h.b16 %v443
    %v1689 = vunpack.c.l.b16 %v444
    %v1690 = vunpack.c.h.b16 %v444
    %v1691 = vunpack.c.l.b16 %v445
    %v1692 = vunpack.c.h.b16 %v445
    %v1693 = vunpack.c.l.b16 %v446
    %v1694 = vunpack.c.h.b16 %v446
    %v1695 = vunpack.c.l.b16 %v447
    %v1696 = vunpack.c.h.b16 %v447
    %v1697 = vunpack.c.l.b16 %v448
    %v1698 = vunpack.c.h.b16 %v448
    %v1699 = vunpack.c.l.b16 %v449
    %v1700 = vunpack.c.h.b16 %v449
    %v1701 = vunpack.c.l.b16 %v450
    %v1702 = vunpack.c.h.b16 %v450
    %v1703 = vunpack.c.l.b16 %v451
    %v1704 = vunpack.c.h.b16 %v451
    %v1705 = vunpack.c.l.b16 %v452
    %v1706 = vunpack.c.h.b16 %v452
    %v1707 = vunpack.c.l.b16 %v453
    %v1708 = vunpack.c.h.b16 %v453
    %v1709 = vunpack.c.l.b16 %v454
    %v1710 = vunpack.c.h.b16 %v454
    %v1711 = vunpack.c.l.b16 %v455
    %v1712 = vunpack.c.h.b16 %v455
    %v1713 = vunpack.c.l.b16 %v456
    %v1714 = vunpack.c.h.b16 %v456
    %v1715 = vunpack.c.l.b16 %v457
    %v1716 = vunpack.c.h.b16 %v457
    %v1717 = vunpack.c.l.b16 %v458
    %v1718 = vunpack.c.h.b16 %v458
    %v1719 = vunpack.c.l.b16 %v459
    %v1720 = vunpack.c.h.b16 %v459
    %v1721 = vunpack.c.l.b16 %v460
    %v1722 = vunpack.c.h.b16 %v460
    %v1723 = vunpack.c.l.b16 %v461
    %v1724 = vunpack.c.h.b16 %v461
    %v1725 = vunpack.c.l.b16 %v462
    %v1726 = vunpack.c.h.b16 %v462
    %v1727 = vunpack.c.l.b16 %v463
    %v1728 = vunpack.c.h.b16 %v463
    %v1729 = vunpack.c.l.b16 %v464
    %v1730 = vunpack.c.h.b16 %v464
    %v1731 = vunpack.c.l.b16 %v465
    %v1732 = vunpack.c.h.b16 %v465
    %v1733 = vunpack.c.l.b16 %v466
    %v1734 = vunpack.c.h.b16 %v466
    %v1735 = vunpack.c.l.b16 %v467
    %v1736 = vunpack.c.h.b16 %v467
    %v1737 = vunpack.c.l.b16 %v468
    %v1738 = vunpack.c.h.b16 %v468
    %v1739 = vunpack.c.l.b16 %v469
    %v1740 = vunpack.c.h.b16 %v469
    %v1741 = vunpack.c.l.b16 %v470
    %v1742 = vunpack.c.h.b16 %v470
    %v1743 = vunpack.c.l.b16 %v471
    %v1744 = vunpack.c.h.b16 %v471
    %v1745 = vunpack.c.l.b16 %v472
    %v1746 = vunpack.c.h.b16 %v472
    %v1747 = vunpack.c.l.b16 %v473
    %v1748 = vunpack.c.h.b16 %v473
    %v1749 = vunpack.c.l.b16 %v474
    %v1750 = vunpack.c.h.b16 %v474
    %v1751 = vunpack.c.l.b16 %v475
    %v1752 = vunpack.c.h.b16 %v475
    %v1753 = vunpack.c.l.b16 %v476
    %v1754 = vunpack.c.h.b16 %v476
    %v1755 = vunpack.c.l.b16 %v477
    %v1756 = vunpack.c.h.b16 %v477
    %v1757 = vunpack.c.l.b16 %v478
    %v1758 = vunpack.c.h.b16 %v478
    %v1759 = vunpack.c.l.b16 %v479
    %v1760 = vunpack.c.h.b16 %v479
    %v1761 = vunpack.c.l.b16 %v480
    %v1762 = vunpack.c.h.b16 %v480
    %v1763 = vunpack.c.l.b16 %v481
    %v1764 = vunpack.c.h.b16 %v481
    %v1765 = vunpack.c.l.b16 %v482
    %v1766 = vunpack.c.h.b16 %v482
    %v1767 = vunpack.c.l.b16 %v483
    %v1768 = vunpack.c.h.b16 %v483
    %v1769 = vunpack.c.l.b16 %v484
    %v1770 = vunpack.c.h.b16 %v484
    %v1771 = vunpack.c.l.b16 %v485
    %v1772 = vunpack.c.h.b16 %v485
    %v1773 = vunpack.c.l.b16 %v486
    %v1774 = vunpack.c.h.b16 %v486
    %v1775 = vunpack.c.l.b16 %v487
    %v1776 = vunpack.c.h.b16 %v487
    %v1777 = vunpack.c.l.b16 %v488
    %v1778 = vunpack.c.h.b16 %v488
    %v1779 = vunpack.c.l.b16 %v489
    %v1780 = vunpack.c.h.b16 %v489
    %v1781 = vunpack.c.l.b16 %v490
    %v1782 = vunpack.c.h.b16 %v490
    %v1783 = vunpack.c.l.b16 %v491
    %v1784 = vunpack.c.h.b16 %v491
    %v1785 = vunpack.c.l.b16 %v492
    %v1786 = vunpack.c.h.b16 %v492
    %v1787 = vunpack.c.l.b16 %v493
    %v1788 = vunpack.c.h.b16 %v493
    %v1789 = vunpack.c.l.b16 %v494
    %v1790 = vunpack.c.h.b16 %v494
    %v1791 = vunpack.c.l.b16 %v495
    %v1792 = vunpack.c.h.b16 %v495
    %v1793 = vunpack.c.l.b16 %v496
    %v1794 = vunpack.c.h.b16 %v496
    %v1795 = vunpack.c.l.b16 %v497
    %v1796 = vunpack.c.h.b16 %v497
    %v1797 = vunpack.c.l.b16 %v498
    %v1798 = vunpack.c.h.b16 %v498
    %v1799 = vunpack.c.l.b16 %v499
    %v1800 = vunpack.c.h.b16 %v499
    %v1801 = vunpack.c.l.b16 %v500
    %v1802 = vunpack.c.h.b16 %v500
    %v1803 = vunpack.c.l.b16 %v501
    %v1804 = vunpack.c.h.b16 %v501
    %v1805 = vunpack.c.l.b16 %v502
    %v1806 = vunpack.c.h.b16 %v502
    %v1807 = vunpack.c.l.b16 %v503
    %v1808 = vunpack.c.h.b16 %v503
    %v1809 = vunpack.c.l.b16 %v504
    %v1810 = vunpack.c.h.b16 %v504
    %v1811 = vunpack.c.l.b16 %v505
    %v1812 = vunpack.c.h.b16 %v505
    %v1813 = vunpack.c.l.b16 %v506
    %v1814 = vunpack.c.h.b16 %v506
    %v1815 = vunpack.c.l.b16 %v507
    %v1816 = vunpack.c.h.b16 %v507
    %v1817 = vunpack.c.l.b16 %v508
    %v1818 = vunpack.c.h.b16 %v508
    %v1819 = vunpack.c.l.b16 %v509
    %v1820 = vunpack.c.h.b16 %v509
    %v1821 = vunpack.c.l.b16 %v510
    %v1822 = vunpack.c.h.b16 %v510
    %v1823 = vunpack.c.l.b16 %v511
    %v1824 = vunpack.c.h.b16 %v511
    %v1825 = vunpack.c.l.b16 %v512
    %v1826 = vunpack.c.h.b16 %v512
    %v1827 = vunpack.c.l.b16 %v513
    %v1828 = vunpack.c.h.b16 %v513
    %v1829 = vunpack.c.l.b16 %v514
    %v1830 = vunpack.c.h.b16 %v514
    %v1831 = vunpack.c.l.b16 %v515
    %v1832 = vunpack.c.h.b16 %v515
    %v1833 = vunpack.c.l.b16 %v516
    %v1834 = vunpack.c.h.b16 %v516
    %v1835 = vunpack.c.l.b16 %v517
    %v1836 = vunpack.c.h.b16 %v517
    %v1837 = vunpack.c.l.b16 %v518
    %v1838 = vunpack.c.h.b16 %v518
    %v1839 = vunpack.c.l.b16 %v519
    %v1840 = vunpack.c.h.b16 %v519
    %v1841 = vunpack.c.l.b16 %v520
    %v1842 = vunpack.c.h.b16 %v520
    %v1843 = vunpack.c.l.b16 %v521
    %v1844 = vunpack.c.h.b16 %v521
    %v1845 = vunpack.c.l.b16 %v522
    %v1846 = vunpack.c.h.b16 %v522
    %v1847 = vunpack.c.l.b16 %v523
    %v1848 = vunpack.c.h.b16 %v523
    %v1849 = vunpack.c.l.b16 %v524
    %v1850 = vunpack.c.h.b16 %v524
    %v1851 = vunpack.c.l.b16 %v525
    %v1852 = vunpack.c.h.b16 %v525
    %v1853 = vunpack.c.l.b16 %v526
    %v1854 = vunpack.c.h.b16 %v526
    %v1855 = vunpack.c.l.b16 %v527
    %v1856 = vunpack.c.h.b16 %v527
    %v1857 = vunpack.c.l.b16 %v528
    %v1858 = vunpack.c.h.b16 %v528
    %v1859 = vunpack.c.l.b16 %v529
    %v1860 = vunpack.c.h.b16 %v529
    %v1861 = vunpack.c.l.b16 %v530
    %v1862 = vunpack.c.h.b16 %v530
    %v1863 = vunpack.c.l.b16 %v531
    %v1864 = vunpack.c.h.b16 %v531
    %v1865 = vunpack.c.l.b16 %v532
    %v1866 = vunpack.c.h.b16 %v532
    %v1867 = vunpack.c.l.b16 %v533
    %v1868 = vunpack.c.h.b16 %v533
    %v1869 = vunpack.c.l.b16 %v534
    %v1870 = vunpack.c.h.b16 %v534
    %v1871 = vunpack.c.l.b16 %v535
    %v1872 = vunpack.c.h.b16 %v535
    %v1873 = vunpack.c.l.b16 %v536
    %v1874 = vunpack.c.h.b16 %v536
    %v1875 = vunpack.c.l.b16 %v537
    %v1876 = vunpack.c.h.b16 %v537
    %v1877 = vunpack.c.l.b16 %v538
    %v1878 = vunpack.c.h.b16 %v538
    %v1879 = vunpack.c.l.b16 %v539
    %v1880 = vunpack.c.h.b16 %v539
    %v1881 = vunpack.c.l.b16 %v540
    %v1882 = vunpack.c.h.b16 %v540
    %v1883 = vunpack.c.l.b16 %v541
    %v1884 = vunpack.c.h.b16 %v541
    %v1885 = vunpack.c.l.b16 %v542
    %v1886 = vunpack.c.h.b16 %v542
    %v1887 = vunpack.c.l.b16 %v543
    %v1888 = vunpack.c.h.b16 %v543
    %v1889 = vunpack.c.l.b16 %v544
    %v1890 = vunpack.c.h.b16 %v544
    %v1891 = vunpack.c.l.b16 %v545
    %v1892 = vunpack.c.h.b16 %v545
    %v1893 = vunpack.c.l.b16 %v546
    %v1894 = vunpack.c.h.b16 %v546
    %v1895 = vunpack.c.l.b16 %v547
    %v1896 = vunpack.c.h.b16 %v547
    %v1897 = vunpack.c.l.b16 %v548
    %v1898 = vunpack.c.h.b16 %v548
    %v1899 = vunpack.c.l.b16 %v549
    %v1900 = vunpack.c.h.b16 %v549
    %v1901 = vunpack.c.l.b16 %v550
    %v1902 = vunpack.c.h.b16 %v550
    %v1903 = vunpack.c.l.b16 %v551
    %v1904 = vunpack.c.h.b16 %v551
    %v1905 = vunpack.c.l.b16 %v552
    %v1906 = vunpack.c.h.b16 %v552
    %v1907 = vunpack.c.l.b16 %v553
    %v1908 = vunpack.c.h.b16 %v553
    %v1909 = vunpack.c.l.b16 %v554
    %v1910 = vunpack.c.h.b16 %v554
    %v1911 = vunpack.c.l.b16 %v555
    %v1912 = vunpack.c.h.b16 %v555
    %v1913 = vunpack.c.l.b16 %v556
    %v1914 = vunpack.c.h.b16 %v556
    %v1915 = vunpack.c.l.b16 %v557
    %v1916 = vunpack.c.h.b16 %v557
    %v1917 = vunpack.c.l.b16 %v558
    %v1918 = vunpack.c.h.b16 %v558
    %v1919 = vunpack.c.l.b16 %v559
    %v1920 = vunpack.c.h.b16 %v559
    %v1921 = vunpack.c.l.b16 %v560
    %v1922 = vunpack.c.h.b16 %v560
    %v1923 = vunpack.c.l.b16 %v561
    %v1924 = vunpack.c.h.b16 %v561
    %v1925 = vunpack.c.l.b16 %v562
    %v1926 = vunpack.c.h.b16 %v562
    %v1927 = vunpack.c.l.b16 %v563
    %v1928 = vunpack.c.h.b16 %v563
    %v1929 = vunpack.c.l.b16 %v564
    %v1930 = vunpack.c.h.b16 %v564
    %v1931 = vunpack.c.l.b16 %v565
    %v1932 = vunpack.c.h.b16 %v565
    %v1933 = vunpack.c.l.b16 %v566
    %v1934 = vunpack.c.h.b16 %v566
    %v1935 = vunpack.c.l.b16 %v567
    %v1936 = vunpack.c.h.b16 %v567
    %v1937 = vunpack.c.l.b16 %v568
    %v1938 = vunpack.c.h.b16 %v568
    %v1939 = vunpack.c.l.b16 %v569
    %v1940 = vunpack.c.h.b16 %v569
    %v1941 = vunpack.c.l.b16 %v570
    %v1942 = vunpack.c.h.b16 %v570
    %v1943 = vunpack.c.l.b16 %v571
    %v1944 = vunpack.c.h.b16 %v571
    %v1945 = vunpack.c.l.b16 %v572
    %v1946 = vunpack.c.h.b16 %v572
    %v1947 = vunpack.c.l.b16 %v573
    %v1948 = vunpack.c.h.b16 %v573
    %v1949 = vunpack.c.l.b16 %v574
    %v1950 = vunpack.c.h.b16 %v574
    %v1951 = vunpack.c.l.b16 %v575
    %v1952 = vunpack.c.h.b16 %v575
    %v1953 = vunpack.c.l.b16 %v576
    %v1954 = vunpack.c.h.b16 %v576
    %v1955 = vunpack.c.l.b16 %v577
    %v1956 = vunpack.c.h.b16 %v577
    %v1957 = vunpack.c.l.b16 %v578
    %v1958 = vunpack.c.h.b16 %v578
    %v1959 = vunpack.c.l.b16 %v579
    %v1960 = vunpack.c.h.b16 %v579
    %v1961 = vunpack.c.l.b16 %v580
    %v1962 = vunpack.c.h.b16 %v580
    %v1963 = vunpack.c.l.b16 %v581
    %v1964 = vunpack.c.h.b16 %v581
    %v1965 = vunpack.c.l.b16 %v582
    %v1966 = vunpack.c.h.b16 %v582
    %v1967 = vunpack.c.l.b16 %v583
    %v1968 = vunpack.c.h.b16 %v583
    %v1969 = vunpack.c.l.b16 %v584
    %v1970 = vunpack.c.h.b16 %v584
    %v1971 = vunpack.c.l.b16 %v585
    %v1972 = vunpack.c.h.b16 %v585
    %v1973 = vunpack.c.l.b16 %v586
    %v1974 = vunpack.c.h.b16 %v586
    %v1975 = vunpack.c.l.b16 %v587
    %v1976 = vunpack.c.h.b16 %v587
    %v1977 = vunpack.c.l.b16 %v588
    %v1978 = vunpack.c.h.b16 %v588
    %v1979 = vunpack.c.l.b16 %v589
    %v1980 = vunpack.c.h.b16 %v589
    %v1981 = vunpack.c.l.b16 %v590
    %v1982 = vunpack.c.h.b16 %v590
    %v1983 = vunpack.c.l.b16 %v591
    %v1984 = vunpack.c.h.b16 %v591
    %v1985 = vunpack.c.l.b16 %v592
    %v1986 = vunpack.c.h.b16 %v592
    %v1987 = vunpack.c.l.b16 %v593
    %v1988 = vunpack.c.h.b16 %v593
    %v1989 = vunpack.c.l.b16 %v594
    %v1990 = vunpack.c.h.b16 %v594
    %v1991 = vunpack.c.l.b16 %v595
    %v1992 = vunpack.c.h.b16 %v595
    %v1993 = vunpack.c.l.b16 %v596
    %v1994 = vunpack.c.h.b16 %v596
    %v1995 = vunpack.c.l.b16 %v597
    %v1996 = vunpack.c.h.b16 %v597
    %v1997 = vunpack.c.l.b16 %v598
    %v1998 = vunpack.c.h.b16 %v598
    %v1999 = vunpack.c.l.b16 %v599
    %v2000 = vunpack.c.h.b16 %v599
    %v2001 = vunpack.c.l.b16 %v600
    %v2002 = vunpack.c.h.b16 %v600
    %v2003 = vunpack.c.l.b16 %v601
    %v2004 = vunpack.c.h.b16 %v601
    %v2005 = vunpack.c.l.b16 %v602
    %v2006 = vunpack.c.h.b16 %v602
    %v2007 = vunpack.c.l.b16 %v603
    %v2008 = vunpack.c.h.b16 %v603
    %v2009 = vunpack.c.l.b16 %v604
    %v2010 = vunpack.c.h.b16 %v604
    %v2011 = vunpack.c.l.b16 %v605
    %v2012 = vunpack.c.h.b16 %v605
    %v2013 = vunpack.c.l.b16 %v606
    %v2014 = vunpack.c.h.b16 %v606
    %v2015 = vunpack.c.l.b16 %v607
    %v2016 = vunpack.c.h.b16 %v607
    %v2017 = vunpack.c.l.b16 %v608
    %v2018 = vunpack.c.h.b16 %v608
    %v2019 = vunpack.c.l.b16 %v609
    %v2020 = vunpack.c.h.b16 %v609
    %v2021 = vunpack.c.l.b16 %v610
    %v2022 = vunpack.c.h.b16 %v610
    %v2023 = vunpack.c.l.b16 %v611
    %v2024 = vunpack.c.h.b16 %v611
    %v2025 = vunpack.c.l.b16 %v612
    %v2026 = vunpack.c.h.b16 %v612
    %v2027 = vunpack.c.l.b16 %v613
    %v2028 = vunpack.c.h.b16 %v613
    %v2029 = vunpack.c.l.b16 %v614
    %v2030 = vunpack.c.h.b16 %v614
    %v2031 = vunpack.c.l.b16 %v615
    %v2032 = vunpack.c.h.b16 %v615
    %v2033 = vunpack.c.l.b16 %v616
    %v2034 = vunpack.c.h.b16 %v616
    %v2035 = vunpack.c.l.b16 %v617
    %v2036 = vunpack.c.h.b16 %v617
    %v2037 = vunpack.c.l.b16 %v618
    %v2038 = vunpack.c.h.b16 %v618
    %v2039 = vunpack.c.l.b16 %v619
    %v2040 = vunpack.c.h.b16 %v619
    %v2041 = vunpack.c.l.b16 %v620
    %v2042 = vunpack.c.h.b16 %v620
    %v2043 = vunpack.c.l.b16 %v621
    %v2044 = vunpack.c.h.b16 %v621
    %v2045 = vunpack.c.l.b16 %v622
    %v2046 = vunpack.c.h.b16 %v622
    %v2047 = vunpack.c.l.b16 %v623
    %v2048 = vunpack.c.h.b16 %v623
    %v2049 = vunpack.c.l.b16 %v624
    %v2050 = vunpack.c.h.b16 %v624
    %v2051 = vunpack.c.l.b16 %v625
    %v2052 = vunpack.c.h.b16 %v625
    %v2053 = vunpack.c.l.b16 %v626
    %v2054 = vunpack.c.h.b16 %v626
    %v2055 = vunpack.c.l.b16 %v627
    %v2056 = vunpack.c.h.b16 %v627
    %v2057 = vunpack.c.l.b16 %v628
    %v2058 = vunpack.c.h.b16 %v628
    %v2059 = vunpack.c.l.b16 %v629
    %v2060 = vunpack.c.h.b16 %v629
    %v2061 = vunpack.c.l.b16 %v630
    %v2062 = vunpack.c.h.b16 %v630
    %v2063 = vunpack.c.l.b16 %v631
    %v2064 = vunpack.c.h.b16 %v631
    %v2065 = vunpack.c.l.b16 %v632
    %v2066 = vunpack.c.h.b16 %v632
    %v2067 = vunpack.c.l.b16 %v633
    %v2068 = vunpack.c.h.b16 %v633
    %v2069 = vunpack.c.l.b16 %v634
    %v2070 = vunpack.c.h.b16 %v634
    %v2071 = vunpack.c.l.b16 %v635
    %v2072 = vunpack.c.h.b16 %v635
    %v2073 = vunpack.c.l.b16 %v636
    %v2074 = vunpack.c.h.b16 %v636
    %v2075 = vunpack.c.l.b16 %v637
    %v2076 = vunpack.c.h.b16 %v637
    %v2077 = vunpack.c.l.b16 %v638
    %v2078 = vunpack.c.h.b16 %v638
    %v2079 = vunpack.c.l.b16 %v639
    %v2080 = vunpack.c.h.b16 %v639
    %v2081 = vunpack.c.l.b16 %v640
    %v2082 = vunpack.c.h.b16 %v640
    %v2083 = vunpack.c.l.b16 %v641
    %v2084 = vunpack.c.h.b16 %v641
    %v2085 = vunpack.c.l.b16 %v642
    %v2086 = vunpack.c.h.b16 %v642
    %v2087 = vunpack.c.l.b16 %v643
    %v2088 = vunpack.c.h.b16 %v643
    %v2089 = vunpack.c.l.b16 %v644
    %v2090 = vunpack.c.h.b16 %v644
    %v2091 = vunpack.c.l.b16 %v645
    %v2092 = vunpack.c.h.b16 %v645
    %v2093 = vunpack.c.l.b16 %v646
    %v2094 = vunpack.c.h.b16 %v646
    %v2095 = vunpack.c.l.b16 %v647
    %v2096 = vunpack.c.h.b16 %v647
    %v2097 = vunpack.c.l.b16 %v648
    %v2098 = vunpack.c.h.b16 %v648
    %v2099 = vunpack.c.l.b16 %v649
    %v2100 = vunpack.c.h.b16 %v649
    %v2101 = vunpack.c.l.b16 %v650
    %v2102 = vunpack.c.h.b16 %v650
    %v2103 = vunpack.c.l.b16 %v651
    %v2104 = vunpack.c.h.b16 %v651
    %v2105 = vunpack.c.l.b16 %v652
    %v2106 = vunpack.c.h.b16 %v652
    %v2107 = vunpack.c.l.b16 %v653
    %v2108 = vunpack.c.h.b16 %v653
    %v2109 = vunpack.c.l.b16 %v654
    %v2110 = vunpack.c.h.b16 %v654
    %v2111 = vunpack.c.l.b16 %v655
    %v2112 = vunpack.c.h.b16 %v655
    %v2113 = vunpack.c.l.b16 %v656
    %v2114 = vunpack.c.h.b16 %v656
    %v2115 = vunpack.c.l.b16 %v657
    %v2116 = vunpack.c.h.b16 %v657
    %v2117 = vunpack.c.l.b16 %v658
    %v2118 = vunpack.c.h.b16 %v658
    %v2119 = vunpack.c.l.b16 %v659
    %v2120 = vunpack.c.h.b16 %v659
    %v2121 = vunpack.c.l.b16 %v660
    %v2122 = vunpack.c.h.b16 %v660
    %v2123 = vunpack.c.l.b16 %v661
    %v2124 = vunpack.c.h.b16 %v661
    %v2125 = vunpack.c.l.b16 %v662
    %v2126 = vunpack.c.h.b16 %v662
    %v2127 = vunpack.c.l.b16 %v663
    %v2128 = vunpack.c.h.b16 %v663
    %v2129 = vunpack.c.l.b16 %v664
    %v2130 = vunpack.c.h.b16 %v664
    %v2131 = vunpack.c.l.b16 %v665
    %v2132 = vunpack.c.h.b16 %v665
    %v2133 = vunpack.c.l.b16 %v666
    %v2134 = vunpack.c.h.b16 %v666
    %v2135 = vunpack.c.l.b16 %v667
    %v2136 = vunpack.c.h.b16 %v667
    %v2137 = vunpack.c.l.b16 %v668
    %v2138 = vunpack.c.h.b16 %v668
    %v2139 = vunpack.c.l.b16 %v669
    %v2140 = vunpack.c.h.b16 %v669
    %v2141 = vunpack.c.l.b16 %v670
    %v2142 = vunpack.c.h.b16 %v670
    %v2143 = vunpack.c.l.b16 %v671
    %v2144 = vunpack.c.h.b16 %v671
    %v2145 = vunpack.c.l.b16 %v672
    %v2146 = vunpack.c.h.b16 %v672
    %v2147 = vunpack.c.l.b16 %v673
    %v2148 = vunpack.c.h.b16 %v673
    %v2149 = vunpack.c.l.b16 %v674
    %v2150 = vunpack.c.h.b16 %v674
    %v2151 = vunpack.c.l.b16 %v675
    %v2152 = vunpack.c.h.b16 %v675
    %v2153 = vunpack.c.l.b16 %v676
    %v2154 = vunpack.c.h.b16 %v676
    %v2155 = vunpack.c.l.b16 %v677
    %v2156 = vunpack.c.h.b16 %v677
    %v2157 = vunpack.c.l.b16 %v678
    %v2158 = vunpack.c.h.b16 %v678
    %v2159 = vunpack.c.l.b16 %v679
    %v2160 = vunpack.c.h.b16 %v679
    %v2161 = vunpack.c.l.b16 %v680
    %v2162 = vunpack.c.h.b16 %v680
    %v2163 = vunpack.c.l.b16 %v681
    %v2164 = vunpack.c.h.b16 %v681
    %v2165 = vunpack.c.l.b16 %v682
    %v2166 = vunpack.c.h.b16 %v682
    %v2167 = vunpack.c.l.b16 %v683
    %v2168 = vunpack.c.h.b16 %v683
    %v2169 = vunpack.c.l.b16 %v684
    %v2170 = vunpack.c.h.b16 %v684
    %v2171 = vunpack.c.l.b16 %v685
    %v2172 = vunpack.c.h.b16 %v685
    %v2173 = vunpack.c.l.b16 %v686
    %v2174 = vunpack.c.h.b16 %v686
    %v2175 = vunpack.c.l.b16 %v687
    %v2176 = vunpack.c.h.b16 %v687
    %v2177 = vunpack.c.l.b16 %v688
    %v2178 = vunpack.c.h.b16 %v688
    %v2179 = vunpack.c.l.b16 %v689
    %v2180 = vunpack.c.h.b16 %v689
    %v2181 = vunpack.c.l.b16 %v690
    %v2182 = vunpack.c.h.b16 %v690
    %v2183 = vunpack.c.l.b16 %v691
    %v2184 = vunpack.c.h.b16 %v691
    %v2185 = vunpack.c.l.b16 %v692
    %v2186 = vunpack.c.h.b16 %v692
    %v2187 = vunpack.c.l.b16 %v693
    %v2188 = vunpack.c.h.b16 %v693
    %v2189 = vunpack.c.l.b16 %v694
    %v2190 = vunpack.c.h.b16 %v694
    %v2191 = vunpack.c.l.b16 %v695
    %v2192 = vunpack.c.h.b16 %v695
    %v2193 = vunpack.c.l.b16 %v696
    %v2194 = vunpack.c.h.b16 %v696
    %v2195 = vunpack.c.l.b16 %v697
    %v2196 = vunpack.c.h.b16 %v697
    %v2197 = vunpack.c.l.b16 %v698
    %v2198 = vunpack.c.h.b16 %v698
    %v2199 = vunpack.c.l.b16 %v699
    %v2200 = vunpack.c.h.b16 %v699
    %v2201 = vunpack.c.l.b16 %v700
    %v2202 = vunpack.c.h.b16 %v700
    %v2203 = vunpack.c.l.b16 %v701
    %v2204 = vunpack.c.h.b16 %v701
    %v2205 = vunpack.c.l.b16 %v702
    %v2206 = vunpack.c.h.b16 %v702
    %v2207 = vunpack.c.l.b16 %v703
    %v2208 = vunpack.c.h.b16 %v703
    %v2209 = vunpack.c.l.b16 %v704
    %v2210 = vunpack.c.h.b16 %v704
    %v2211 = vunpack.c.l.b16 %v705
    %v2212 = vunpack.c.h.b16 %v705
    %v2213 = vunpack.c.l.b16 %v706
    %v2214 = vunpack.c.h.b16 %v706
    %v2215 = vunpack.c.l.b16 %v707
    %v2216 = vunpack.c.h.b16 %v707
    %v2217 = vunpack.c.l.b16 %v708
    %v2218 = vunpack.c.h.b16 %v708
    %v2219 = vunpack.c.l.b16 %v709
    %v2220 = vunpack.c.h.b16 %v709
    %v2221 = vunpack.c.l.b16 %v710
    %v2222 = vunpack.c.h.b16 %v710
    %v2223 = vunpack.c.l.b16 %v711
    %v2224 = vunpack.c.h.b16 %v711
    %v2225 = vunpack.c.l.b16 %v712
    %v2226 = vunpack.c.h.b16 %v712
    %v2227 = vunpack.c.l.b16 %v713
    %v2228 = vunpack.c.h.b16 %v713
    %v2229 = vunpack.c.l.b16 %v714
    %v2230 = vunpack.c.h.b16 %v714
    %v2231 = vunpack.c.l.b16 %v715
    %v2232 = vunpack.c.h.b16 %v715
    %v2233 = vunpack.c.l.b16 %v716
    %v2234 = vunpack.c.h.b16 %v716
    %v2235 = vunpack.c.l.b16 %v717
    %v2236 = vunpack.c.h.b16 %v717
    %v2237 = vunpack.c.l.b16 %v718
    %v2238 = vunpack.c.h.b16 %v718
    %v2239 = vunpack.c.l.b16 %v719
    %v2240 = vunpack.c.h.b16 %v719
    %v2241 = vunpack.c.l.b16 %v720
    %v2242 = vunpack.c.h.b16 %v720
    %v2243 = vunpack.c.l.b16 %v721
    %v2244 = vunpack.c.h.b16 %v721
    %v2245 = vunpack.c.l.b16 %v722
    %v2246 = vunpack.c.h.b16 %v722
    %v2247 = vunpack.c.l.b16 %v723
    %v2248 = vunpack.c.h.b16 %v723
    %v2249 = vunpack.c.l.b16 %v724
    %v2250 = vunpack.c.h.b16 %v724
    %v2251 = vunpack.c.l.b16 %v725
    %v2252 = vunpack.c.h.b16 %v725
    %v2253 = vunpack.c.l.b16 %v726
    %v2254 = vunpack.c.h.b16 %v726
    %v2255 = vunpack.c.l.b16 %v727
    %v2256 = vunpack.c.h.b16 %v727
    %v2257 = vunpack.c.l.b16 %v728
    %v2258 = vunpack.c.h.b16 %v728
    %v2259 = vunpack.c.l.b16 %v729
    %v2260 = vunpack.c.h.b16 %v729
    %v2261 = vunpack.c.l.b16 %v730
    %v2262 = vunpack.c.h.b16 %v730
    %v2263 = vunpack.c.l.b16 %v731
    %v2264 = vunpack.c.h.b16 %v731
    %v2265 = vunpack.c.l.b16 %v732
    %v2266 = vunpack.c.h.b16 %v732
    %v2267 = vunpack.c.l.b16 %v733
    %v2268 = vunpack.c.h.b16 %v733
    %v2269 = vunpack.c.l.b16 %v734
    %v2270 = vunpack.c.h.b16 %v734
    %v2271 = vunpack.c.l.b16 %v735
    %v2272 = vunpack.c.h.b16 %v735
    %v2273 = vunpack.c.l.b16 %v736
    %v2274 = vunpack.c.h.b16 %v736
    %v2275 = vunpack.c.l.b16 %v737
    %v2276 = vunpack.c.h.b16 %v737
    %v2277 = vunpack.c.l.b16 %v738
    %v2278 = vunpack.c.h.b16 %v738
    %v2279 = vunpack.c.l.b16 %v739
    %v2280 = vunpack.c.h.b16 %v739
    %v2281 = vunpack.c.l.b16 %v740
    %v2282 = vunpack.c.h.b16 %v740
    %v2283 = vunpack.c.l.b16 %v741
    %v2284 = vunpack.c.h.b16 %v741
    %v2285 = vunpack.c.l.b16 %v742
    %v2286 = vunpack.c.h.b16 %v742
    %v2287 = vunpack.c.l.b16 %v743
    %v2288 = vunpack.c.h.b16 %v743
    %v2289 = vunpack.c.l.b16 %v744
    %v2290 = vunpack.c.h.b16 %v744
    %v2291 = vunpack.c.l.b16 %v745
    %v2292 = vunpack.c.h.b16 %v745
    %v2293 = vunpack.c.l.b16 %v746
    %v2294 = vunpack.c.h.b16 %v746
    %v2295 = vunpack.c.l.b16 %v747
    %v2296 = vunpack.c.h.b16 %v747
    %v2297 = vunpack.c.l.b16 %v748
    %v2298 = vunpack.c.h.b16 %v748
    %v2299 = vunpack.c.l.b16 %v749
    %v2300 = vunpack.c.h.b16 %v749
    %v2301 = vunpack.c.l.b16 %v750
    %v2302 = vunpack.c.h.b16 %v750
    %v2303 = vunpack.c.l.b16 %v751
    %v2304 = vunpack.c.h.b16 %v751
    %v2305 = vunpack.c.l.b16 %v752
    %v2306 = vunpack.c.h.b16 %v752
    %v2307 = vpack.c.b16 %v1291, %v1283
    %v2308 = vpack.c.b16 %v1292, %v1284
    %v2309 = vpack.c.b16 %v1293, %v1285
    %v2310 = vpack.c.b16 %v1294, %v1286
    %v2311 = vpack.c.b16 %v1295, %v1287
    %v2312 = vpack.c.b16 %v1296, %v1288
    %v2313 = vpack.c.b16 %v1297, %v1289
    %v2314 = vpack.c.b16 %v1298, %v1290
    %v2315 = vpack.c.b16 %v1307, %v1299
    %v2316 = vpack.c.b16 %v1308, %v1300
    %v2317 = vpack.c.b16 %v1309, %v1301
    %v2318 = vpack.c.b16 %v1310, %v1302
    %v2319 = vpack.c.b16 %v1311, %v1303
    %v2320 = vpack.c.b16 %v1312, %v1304
    %v2321 = vpack.c.b16 %v1313, %v1305
    %v2322 = vpack.c.b16 %v1314, %v1306
    %v2323 = vpack.c.b16 %v1323, %v1315
    %v2324 = vpack.c.b16 %v1324, %v1316
    %v2325 = vpack.c.b16 %v1325, %v1317
    %v2326 = vpack.c.b16 %v1326, %v1318
    %v2327 = vpack.c.b16 %v1327, %v1319
    %v2328 = vpack.c.b16 %v1328, %v1320
    %v2329 = vpack.c.b16 %v1329, %v1321
    %v2330 = vpack.c.b16 %v1330, %v1322
    %v2331 = vpack.c.b16 %v1339, %v1331
    %v2332 = vpack.c.b16 %v1340, %v1332
    %v2333 = vpack.c.b16 %v1341, %v1333
    %v2334 = vpack.c.b16 %v1342, %v1334
    %v2335 = vpack.c.b16 %v1343, %v1335
    %v2336 = vpack.c.b16 %v1344, %v1336
    %v2337 = vpack.c.b16 %v1345, %v1337
    %v2338 = vpack.c.b16 %v1346, %v1338
    %v2339 = vpack.c.b16 %v1355, %v1347
    %v2340 = vpack.c.b16 %v1356, %v1348
    %v2341 = vpack.c.b16 %v1357, %v1349
    %v2342 = vpack.c.b16 %v1358, %v1350
    %v2343 = vpack.c.b16 %v1359, %v1351
    %v2344 = vpack.c.b16 %v1360, %v1352
    %v2345 = vpack.c.b16 %v1361, %v1353
    %v2346 = vpack.c.b16 %v1362, %v1354
    %v2347 = vpack.c.b16 %v1371, %v1363
    %v2348 = vpack.c.b16 %v1372, %v1364
    %v2349 = vpack.c.b16 %v1373, %v1365
    %v2350 = vpack.c.b16 %v1374, %v1366
    %v2351 = vpack.c.b16 %v1375, %v1367
    %v2352 = vpack.c.b16 %v1376, %v1368
    %v2353 = vpack.c.b16 %v1377, %v1369
    %v2354 = vpack.c.b16 %v1378, %v1370
    %v2355 = vpack.c.b16 %v1387, %v1379
    %v2356 = vpack.c.b16 %v1388, %v1380
    %v2357 = vpack.c.b16 %v1389, %v1381
    %v2358 = vpack.c.b16 %v1390, %v1382
    %v2359 = vpack.c.b16 %v1391, %v1383
    %v2360 = vpack.c.b16 %v1392, %v1384
    %v2361 = vpack.c.b16 %v1393, %v1385
    %v2362 = vpack.c.b16 %v1394, %v1386
    %v2363 = vpack.c.b16 %v1403, %v1395
    %v2364 = vpack.c.b16 %v1404, %v1396
    %v2365 = vpack.c.b16 %v1405, %v1397
    %v2366 = vpack.c.b16 %v1406, %v1398
    %v2367 = vpack.c.b16 %v1407, %v1399
    %v2368 = vpack.c.b16 %v1408, %v1400
    %v2369 = vpack.c.b16 %v1409, %v1401
    %v2370 = vpack.c.b16 %v1410, %v1402
    %v2371 = vpack.c.b16 %v1419, %v1411
    %v2372 = vpack.c.b16 %v1420, %v1412
    %v2373 = vpack.c.b16 %v1421, %v1413
    %v2374 = vpack.c.b16 %v1422, %v1414
    %v2375 = vpack.c.b16 %v1423, %v1415
    %v2376 = vpack.c.b16 %v1424, %v1416
    %v2377 = vpack.c.b16 %v1425, %v1417
    %v2378 = vpack.c.b16 %v1426, %v1418
    %v2379 = vpack.c.b16 %v1435, %v1427
    %v2380 = vpack.c.b16 %v1436, %v1428
    %v2381 = vpack.c.b16 %v1437, %v1429
    %v2382 = vpack.c.b16 %v1438, %v1430
    %v2383 = vpack.c.b16 %v1439, %v1431
    %v2384 = vpack.c.b16 %v1440, %v1432
    %v2385 = vpack.c.b16 %v1441, %v1433
    %v2386 = vpack.c.b16 %v1442, %v1434
    %v2387 = vpack.c.b16 %v1451, %v1443
    %v2388 = vpack.c.b16 %v1452, %v1444
    %v2389 = vpack.c.b16 %v1453, %v1445
    %v2390 = vpack.c.b16 %v1454, %v1446
    %v2391 = vpack.c.b16 %v1455, %v1447
    %v2392 = vpack.c.b16 %v1456, %v1448
    %v2393 = vpack.c.b16 %v1457, %v1449
    %v2394 = vpack.c.b16 %v1458, %v1450
    %v2395 = vpack.c.b16 %v1467, %v1459
    %v2396 = vpack.c.b16 %v1468, %v1460
    %v2397 = vpack.c.b16 %v1469, %v1461
    %v2398 = vpack.c.b16 %v1470, %v1462
    %v2399 = vpack.c.b16 %v1471, %v1463
    %v2400 = vpack.c.b16 %v1472, %v1464
    %v2401 = vpack.c.b16 %v1473, %v1465
    %v2402 = vpack.c.b16 %v1474, %v1466
    %v2403 = vpack.c.b16 %v1483, %v1475
    %v2404 = vpack.c.b16 %v1484, %v1476
    %v2405 = vpack.c.b16 %v1485, %v1477
    %v2406 = vpack.c.b16 %v1486, %v1478
    %v2407 = vpack.c.b16 %v1487, %v1479
    %v2408 = vpack.c.b16 %v1488, %v1480
    %v2409 = vpack.c.b16 %v1489, %v1481
    %v2410 = vpack.c.b16 %v1490, %v1482
    %v2411 = vpack.c.b16 %v1499, %v1491
    %v2412 = vpack.c.b16 %v1500, %v1492
    %v2413 = vpack.c.b16 %v1501, %v1493
    %v2414 = vpack.c.b16 %v1502, %v1494
    %v2415 = vpack.c.b16 %v1503, %v1495
    %v2416 = vpack.c.b16 %v1504, %v1496
    %v2417 = vpack.c.b16 %v1505, %v1497
    %v2418 = vpack.c.b16 %v1506, %v1498
    %v2419 = vpack.c.b16 %v1515, %v1507
    %v2420 = vpack.c.b16 %v1516, %v1508
    %v2421 = vpack.c.b16 %v1517, %v1509
    %v2422 = vpack.c.b16 %v1518, %v1510
    %v2423 = vpack.c.b16 %v1519, %v1511
    %v2424 = vpack.c.b16 %v1520, %v1512
    %v2425 = vpack.c.b16 %v1521, %v1513
    %v2426 = vpack.c.b16 %v1522, %v1514
    %v2427 = vpack.c.b16 %v1531, %v1523
    %v2428 = vpack.c.b16 %v1532, %v1524
    %v2429 = vpack.c.b16 %v1533, %v1525
    %v2430 = vpack.c.b16 %v1534, %v1526
    %v2431 = vpack.c.b16 %v1535, %v1527
    %v2432 = vpack.c.b16 %v1536, %v1528
    %v2433 = vpack.c.b16 %v1537, %v1529
    %v2434 = vpack.c.b16 %v1538, %v1530
    %v2435 = vpack.c.b16 %v1547, %v1539
    %v2436 = vpack.c.b16 %v1548, %v1540
    %v2437 = vpack.c.b16 %v1549, %v1541
    %v2438 = vpack.c.b16 %v1550, %v1542
    %v2439 = vpack.c.b16 %v1551, %v1543
    %v2440 = vpack.c.b16 %v1552, %v1544
    %v2441 = vpack.c.b16 %v1553, %v1545
    %v2442 = vpack.c.b16 %v1554, %v1546
    %v2443 = vpack.c.b16 %v1563, %v1555
    %v2444 = vpack.c.b16 %v1564, %v1556
    %v2445 = vpack.c.b16 %v1565, %v1557
    %v2446 = vpack.c.b16 %v1566, %v1558
    %v2447 = vpack.c.b16 %v1567, %v1559
    %v2448 = vpack.c.b16 %v1568, %v1560
    %v2449 = vpack.c.b16 %v1569, %v1561
    %v2450 = vpack.c.b16 %v1570, %v1562
    %v2451 = vpack.c.b16 %v1579, %v1571
    %v2452 = vpack.c.b16 %v1580, %v1572
    %v2453 = vpack.c.b16 %v1581, %v1573
    %v2454 = vpack.c.b16 %v1582, %v1574
    %v2455 = vpack.c.b16 %v1583, %v1575
    %v2456 = vpack.c.b16 %v1584, %v1576
    %v2457 = vpack.c.b16 %v1585, %v1577
    %v2458 = vpack.c.b16 %v1586, %v1578
    %v2459 = vpack.c.b16 %v1595, %v1587
    %v2460 = vpack.c.b16 %v1596, %v1588
    %v2461 = vpack.c.b16 %v1597, %v1589
    %v2462 = vpack.c.b16 %v1598, %v1590
    %v2463 = vpack.c.b16 %v1599, %v1591
    %v2464 = vpack.c.b16 %v1600, %v1592
    %v2465 = vpack.c.b16 %v1601, %v1593
    %v2466 = vpack.c.b16 %v1602, %v1594
    %v2467 = vpack.c.b16 %v1611, %v1603
    %v2468 = vpack.c.b16 %v1612, %v1604
    %v2469 = vpack.c.b16 %v1613, %v1605
    %v2470 = vpack.c.b16 %v1614, %v1606
    %v2471 = vpack.c.b16 %v1615, %v1607
    %v2472 = vpack.c.b16 %v1616, %v1608
    %v2473 = vpack.c.b16 %v1617, %v1609
    %v2474 = vpack.c.b16 %v1618, %v1610
    %v2475 = vpack.c.b16 %v1627, %v1619
    %v2476 = vpack.c.b16 %v1628, %v1620
    %v2477 = vpack.c.b16 %v1629, %v1621
    %v2478 = vpack.c.b16 %v1630, %v1622
    %v2479 = vpack.c.b16 %v1631, %v1623
    %v2480 = vpack.c.b16 %v1632, %v1624
    %v2481 = vpack.c.b16 %v1633, %v1625
    %v2482 = vpack.c.b16 %v1634, %v1626
    %v2483 = vpack.c.b16 %v1643, %v1635
    %v2484 = vpack.c.b16 %v1644, %v1636
    %v2485 = vpack.c.b16 %v1645, %v1637
    %v2486 = vpack.c.b16 %v1646, %v1638
    %v2487 = vpack.c.b16 %v1647, %v1639
    %v2488 = vpack.c.b16 %v1648, %v1640
    %v2489 = vpack.c.b16 %v1649, %v1641
    %v2490 = vpack.c.b16 %v1650, %v1642
    %v2491 = vpack.c.b16 %v1659, %v1651
    %v2492 = vpack.c.b16 %v1660, %v1652
    %v2493 = vpack.c.b16 %v1661, %v1653
    %v2494 = vpack.c.b16 %v1662, %v1654
    %v2495 = vpack.c.b16 %v1663, %v1655
    %v2496 = vpack.c.b16 %v1664, %v1656
    %v2497 = vpack.c.b16 %v1665, %v1657
    %v2498 = vpack.c.b16 %v1666, %v1658
    %v2499 = vpack.c.b16 %v1675, %v1667
    %v2500 = vpack.c.b16 %v1676, %v1668
    %v2501 = vpack.c.b16 %v1677, %v1669
    %v2502 = vpack.c.b16 %v1678, %v1670
    %v2503 = vpack.c.b16 %v1679, %v1671
    %v2504 = vpack.c.b16 %v1680, %v1672
    %v2505 = vpack.c.b16 %v1681, %v1673
    %v2506 = vpack.c.b16 %v1682, %v1674
    %v2507 = vpack.c.b16 %v1691, %v1683
    %v2508 = vpack.c.b16 %v1692, %v1684
    %v2509 = vpack.c.b16 %v1693, %v1685
    %v2510 = vpack.c.b16 %v1694, %v1686
    %v2511 = vpack.c.b16 %v1695, %v1687
    %v2512 = vpack.c.b16 %v1696, %v1688
    %v2513 = vpack.c.b16 %v1697, %v1689
    %v2514 = vpack.c.b16 %v1698, %v1690
    %v2515 = vpack.c.b16 %v1707, %v1699
    %v2516 = vpack.c.b16 %v1708, %v1700
    %v2517 = vpack.c.b16 %v1709, %v1701
    %v2518 = vpack.c.b16 %v1710, %v1702
    %v2519 = vpack.c.b16 %v1711, %v1703
    %v2520 = vpack.c.b16 %v1712, %v1704
    %v2521 = vpack.c.b16 %v1713, %v1705
    %v2522 = vpack.c.b16 %v1714, %v1706
    %v2523 = vpack.c.b16 %v1723, %v1715
    %v2524 = vpack.c.b16 %v1724, %v1716
    %v2525 = vpack.c.b16 %v1725, %v1717
    %v2526 = vpack.c.b16 %v1726, %v1718
    %v2527 = vpack.c.b16 %v1727, %v1719
    %v2528 = vpack.c.b16 %v1728, %v1720
    %v2529 = vpack.c.b16 %v1729, %v1721
    %v2530 = vpack.c.b16 %v1730, %v1722
    %v2531 = vpack.c.b16 %v1739, %v1731
    %v2532 = vpack.c.b16 %v1740, %v1732
    %v2533 = vpack.c.b16 %v1741, %v1733
    %v2534 = vpack.c.b16 %v1742, %v1734
    %v2535 = vpack.c.b16 %v1743, %v1735
    %v2536 = vpack.c.b16 %v1744, %v1736
    %v2537 = vpack.c.b16 %v1745, %v1737
    %v2538 = vpack.c.b16 %v1746, %v1738
    %v2539 = vpack.c.b16 %v1755, %v1747
    %v2540 = vpack.c.b16 %v1756, %v1748
    %v2541 = vpack.c.b16 %v1757, %v1749
    %v2542 = vpack.c.b16 %v1758, %v1750
    %v2543 = vpack.c.b16 %v1759, %v1751
    %v2544 = vpack.c.b16 %v1760, %v1752
    %v2545 = vpack.c.b16 %v1761, %v1753
    %v2546 = vpack.c.b16 %v1762, %v1754
    %v2547 = vpack.c.b16 %v1771, %v1763
    %v2548 = vpack.c.b16 %v1772, %v1764
    %v2549 = vpack.c.b16 %v1773, %v1765
    %v2550 = vpack.c.b16 %v1774, %v1766
    %v2551 = vpack.c.b16 %v1775, %v1767
    %v2552 = vpack.c.b16 %v1776, %v1768
    %v2553 = vpack.c.b16 %v1777, %v1769
    %v2554 = vpack.c.b16 %v1778, %v1770
    %v2555 = vpack.c.b16 %v1787, %v1779
    %v2556 = vpack.c.b16 %v1788, %v1780
    %v2557 = vpack.c.b16 %v1789, %v1781
    %v2558 = vpack.c.b16 %v1790, %v1782
    %v2559 = vpack.c.b16 %v1791, %v1783
    %v2560 = vpack.c.b16 %v1792, %v1784
    %v2561 = vpack.c.b16 %v1793, %v1785
    %v2562 = vpack.c.b16 %v1794, %v1786
    %v2563 = vpack.c.b16 %v1803, %v1795
    %v2564 = vpack.c.b16 %v1804, %v1796
    %v2565 = vpack.c.b16 %v1805, %v1797
    %v2566 = vpack.c.b16 %v1806, %v1798
    %v2567 = vpack.c.b16 %v1807, %v1799
    %v2568 = vpack.c.b16 %v1808, %v1800
    %v2569 = vpack.c.b16 %v1809, %v1801
    %v2570 = vpack.c.b16 %v1810, %v1802
    %v2571 = vpack.c.b16 %v1819, %v1811
    %v2572 = vpack.c.b16 %v1820, %v1812
    %v2573 = vpack.c.b16 %v1821, %v1813
    %v2574 = vpack.c.b16 %v1822, %v1814
    %v2575 = vpack.c.b16 %v1823, %v1815
    %v2576 = vpack.c.b16 %v1824, %v1816
    %v2577 = vpack.c.b16 %v1825, %v1817
    %v2578 = vpack.c.b16 %v1826, %v1818
    %v2579 = vpack.c.b16 %v1835, %v1827
    %v2580 = vpack.c.b16 %v1836, %v1828
    %v2581 = vpack.c.b16 %v1837, %v1829
    %v2582 = vpack.c.b16 %v1838, %v1830
    %v2583 = vpack.c.b16 %v1839, %v1831
    %v2584 = vpack.c.b16 %v1840, %v1832
    %v2585 = vpack.c.b16 %v1841, %v1833
    %v2586 = vpack.c.b16 %v1842, %v1834
    %v2587 = vpack.c.b16 %v1851, %v1843
    %v2588 = vpack.c.b16 %v1852, %v1844
    %v2589 = vpack.c.b16 %v1853, %v1845
    %v2590 = vpack.c.b16 %v1854, %v1846
    %v2591 = vpack.c.b16 %v1855, %v1847
    %v2592 = vpack.c.b16 %v1856, %v1848
    %v2593 = vpack.c.b16 %v1857, %v1849
    %v2594 = vpack.c.b16 %v1858, %v1850
    %v2595 = vpack.c.b16 %v1867, %v1859
    %v2596 = vpack.c.b16 %v1868, %v1860
    %v2597 = vpack.c.b16 %v1869, %v1861
    %v2598 = vpack.c.b16 %v1870, %v1862
    %v2599 = vpack.c.b16 %v1871, %v1863
    %v2600 = vpack.c.b16 %v1872, %v1864
    %v2601 = vpack.c.b16 %v1873, %v1865
    %v2602 = vpack.c.b16 %v1874, %v1866
    %v2603 = vpack.c.b16 %v1883, %v1875
    %v2604 = vpack.c.b16 %v1884, %v1876
    %v2605 = vpack.c.b16 %v1885, %v1877
    %v2606 = vpack.c.b16 %v1886, %v1878
    %v2607 = vpack.c.b16 %v1887, %v1879
    %v2608 = vpack.c.b16 %v1888, %v1880
    %v2609 = vpack.c.b16 %v1889, %v1881
    %v2610 = vpack.c.b16 %v1890, %v1882
    %v2611 = vpack.c.b16 %v1899, %v1891
    %v2612 = vpack.c.b16 %v1900, %v1892
    %v2613 = vpack.c.b16 %v1901, %v1893
    %v2614 = vpack.c.b16 %v1902, %v1894
    %v2615 = vpack.c.b16 %v1903, %v1895
    %v2616 = vpack.c.b16 %v1904, %v1896
    %v2617 = vpack.c.b16 %v1905, %v1897
    %v2618 = vpack.c.b16 %v1906, %v1898
    %v2619 = vpack.c.b16 %v1915, %v1907
    %v2620 = vpack.c.b16 %v1916, %v1908
    %v2621 = vpack.c.b16 %v1917, %v1909
    %v2622 = vpack.c.b16 %v1918, %v1910
    %v2623 = vpack.c.b16 %v1919, %v1911
    %v2624 = vpack.c.b16 %v1920, %v1912
    %v2625 = vpack.c.b16 %v1921, %v1913
    %v2626 = vpack.c.b16 %v1922, %v1914
    %v2627 = vpack.c.b16 %v1931, %v1923
    %v2628 = vpack.c.b16 %v1932, %v1924
    %v2629 = vpack.c.b16 %v1933, %v1925
    %v2630 = vpack.c.b16 %v1934, %v1926
    %v2631 = vpack.c.b16 %v1935, %v1927
    %v2632 = vpack.c.b16 %v1936, %v1928
    %v2633 = vpack.c.b16 %v1937, %v1929
    %v2634 = vpack.c.b16 %v1938, %v1930
    %v2635 = vpack.c.b16 %v1947, %v1939
    %v2636 = vpack.c.b16 %v1948, %v1940
    %v2637 = vpack.c.b16 %v1949, %v1941
    %v2638 = vpack.c.b16 %v1950, %v1942
    %v2639 = vpack.c.b16 %v1951, %v1943
    %v2640 = vpack.c.b16 %v1952, %v1944
    %v2641 = vpack.c.b16 %v1953, %v1945
    %v2642 = vpack.c.b16 %v1954, %v1946
    %v2643 = vpack.c.b16 %v1963, %v1955
    %v2644 = vpack.c.b16 %v1964, %v1956
    %v2645 = vpack.c.b16 %v1965, %v1957
    %v2646 = vpack.c.b16 %v1966, %v1958
    %v2647 = vpack.c.b16 %v1967, %v1959
    %v2648 = vpack.c.b16 %v1968, %v1960
    %v2649 = vpack.c.b16 %v1969, %v1961
    %v2650 = vpack.c.b16 %v1970, %v1962
    %v2651 = vpack.c.b16 %v1979, %v1971
    %v2652 = vpack.c.b16 %v1980, %v1972
    %v2653 = vpack.c.b16 %v1981, %v1973
    %v2654 = vpack.c.b16 %v1982, %v1974
    %v2655 = vpack.c.b16 %v1983, %v1975
    %v2656 = vpack.c.b16 %v1984, %v1976
    %v2657 = vpack.c.b16 %v1985, %v1977
    %v2658 = vpack.c.b16 %v1986, %v1978
    %v2659 = vpack.c.b16 %v1995, %v1987
    %v2660 = vpack.c.b16 %v1996, %v1988
    %v2661 = vpack.c.b16 %v1997, %v1989
    %v2662 = vpack.c.b16 %v1998, %v1990
    %v2663 = vpack.c.b16 %v1999, %v1991
    %v2664 = vpack.c.b16 %v2000, %v1992
    %v2665 = vpack.c.b16 %v2001, %v1993
    %v2666 = vpack.c.b16 %v2002, %v1994
    %v2667 = vpack.c.b16 %v2011, %v2003
    %v2668 = vpack.c.b16 %v2012, %v2004
    %v2669 = vpack.c.b16 %v2013, %v2005
    %v2670 = vpack.c.b16 %v2014, %v2006
    %v2671 = vpack.c.b16 %v2015, %v2007
    %v2672 = vpack.c.b16 %v2016, %v2008
    %v2673 = vpack.c.b16 %v2017, %v2009
    %v2674 = vpack.c.b16 %v2018, %v2010
    %v2675 = vpack.c.b16 %v2027, %v2019
    %v2676 = vpack.c.b16 %v2028, %v2020
    %v2677 = vpack.c.b16 %v2029, %v2021
    %v2678 = vpack.c.b16 %v2030, %v2022
    %v2679 = vpack.c.b16 %v2031, %v2023
    %v2680 = vpack.c.b16 %v2032, %v2024
    %v2681 = vpack.c.b16 %v2033, %v2025
    %v2682 = vpack.c.b16 %v2034, %v2026
    %v2683 = vpack.c.b16 %v2043, %v2035
    %v2684 = vpack.c.b16 %v2044, %v2036
    %v2685 = vpack.c.b16 %v2045, %v2037
    %v2686 = vpack.c.b16 %v2046, %v2038
    %v2687 = vpack.c.b16 %v2047, %v2039
    %v2688 = vpack.c.b16 %v2048, %v2040
    %v2689 = vpack.c.b16 %v2049, %v2041
    %v2690 = vpack.c.b16 %v2050, %v2042
    %v2691 = vpack.c.b16 %v2059, %v2051
    %v2692 = vpack.c.b16 %v2060, %v2052
    %v2693 = vpack.c.b16 %v2061, %v2053
    %v2694 = vpack.c.b16 %v2062, %v2054
    %v2695 = vpack.c.b16 %v2063, %v2055
    %v2696 = vpack.c.b16 %v2064, %v2056
    %v2697 = vpack.c.b16 %v2065, %v2057
    %v2698 = vpack.c.b16 %v2066, %v2058
    %v2699 = vpack.c.b16 %v2075, %v2067
    %v2700 = vpack.c.b16 %v2076, %v2068
    %v2701 = vpack.c.b16 %v2077, %v2069
    %v2702 = vpack.c.b16 %v2078, %v2070
    %v2703 = vpack.c.b16 %v2079, %v2071
    %v2704 = vpack.c.b16 %v2080, %v2072
    %v2705 = vpack.c.b16 %v2081, %v2073
    %v2706 = vpack.c.b16 %v2082, %v2074
    %v2707 = vpack.c.b16 %v2091, %v2083
    %v2708 = vpack.c.b16 %v2092, %v2084
    %v2709 = vpack.c.b16 %v2093, %v2085
    %v2710 = vpack.c.b16 %v2094, %v2086
    %v2711 = vpack.c.b16 %v2095, %v2087
    %v2712 = vpack.c.b16 %v2096, %v2088
    %v2713 = vpack.c.b16 %v2097, %v2089
    %v2714 = vpack.c.b16 %v2098, %v2090
    %v2715 = vpack.c.b16 %v2107, %v2099
    %v2716 = vpack.c.b16 %v2108, %v2100
    %v2717 = vpack.c.b16 %v2109, %v2101
    %v2718 = vpack.c.b16 %v2110, %v2102
    %v2719 = vpack.c.b16 %v2111, %v2103
    %v2720 = vpack.c.b16 %v2112, %v2104
    %v2721 = vpack.c.b16 %v2113, %v2105
    %v2722 = vpack.c.b16 %v2114, %v2106
    %v2723 = vpack.c.b16 %v2123, %v2115
    %v2724 = vpack.c.b16 %v2124, %v2116
    %v2725 = vpack.c.b16 %v2125, %v2117
    %v2726 = vpack.c.b16 %v2126, %v2118
    %v2727 = vpack.c.b16 %v2127, %v2119
    %v2728 = vpack.c.b16 %v2128, %v2120
    %v2729 = vpack.c.b16 %v2129, %v2121
    %v2730 = vpack.c.b16 %v2130, %v2122
    %v2731 = vpack.c.b16 %v2139, %v2131
    %v2732 = vpack.c.b16 %v2140, %v2132
    %v2733 = vpack.c.b16 %v2141, %v2133
    %v2734 = vpack.c.b16 %v2142, %v2134
    %v2735 = vpack.c.b16 %v2143, %v2135
    %v2736 = vpack.c.b16 %v2144, %v2136
    %v2737 = vpack.c.b16 %v2145, %v2137
    %v2738 = vpack.c.b16 %v2146, %v2138
    %v2739 = vpack.c.b16 %v2155, %v2147
    %v2740 = vpack.c.b16 %v2156, %v2148
    %v2741 = vpack.c.b16 %v2157, %v2149
    %v2742 = vpack.c.b16 %v2158, %v2150
    %v2743 = vpack.c.b16 %v2159, %v2151
    %v2744 = vpack.c.b16 %v2160, %v2152
    %v2745 = vpack.c.b16 %v2161, %v2153
    %v2746 = vpack.c.b16 %v2162, %v2154
    %v2747 = vpack.c.b16 %v2171, %v2163
    %v2748 = vpack.c.b16 %v2172, %v2164
    %v2749 = vpack.c.b16 %v2173, %v2165
    %v2750 = vpack.c.b16 %v2174, %v2166
    %v2751 = vpack.c.b16 %v2175, %v2167
    %v2752 = vpack.c.b16 %v2176, %v2168
    %v2753 = vpack.c.b16 %v2177, %v2169
    %v2754 = vpack.c.b16 %v2178, %v2170
    %v2755 = vpack.c.b16 %v2187, %v2179
    %v2756 = vpack.c.b16 %v2188, %v2180
    %v2757 = vpack.c.b16 %v2189, %v2181
    %v2758 = vpack.c.b16 %v2190, %v2182
    %v2759 = vpack.c.b16 %v2191, %v2183
    %v2760 = vpack.c.b16 %v2192, %v2184
    %v2761 = vpack.c.b16 %v2193, %v2185
    %v2762 = vpack.c.b16 %v2194, %v2186
    %v2763 = vpack.c.b16 %v2203, %v2195
    %v2764 = vpack.c.b16 %v2204, %v2196
    %v2765 = vpack.c.b16 %v2205, %v2197
    %v2766 = vpack.c.b16 %v2206, %v2198
    %v2767 = vpack.c.b16 %v2207, %v2199
    %v2768 = vpack.c.b16 %v2208, %v2200
    %v2769 = vpack.c.b16 %v2209, %v2201
    %v2770 = vpack.c.b16 %v2210, %v2202
    %v2771 = vpack.c.b16 %v2219, %v2211
    %v2772 = vpack.c.b16 %v2220, %v2212
    %v2773 = vpack.c.b16 %v2221, %v2213
    %v2774 = vpack.c.b16 %v2222, %v2214
    %v2775 = vpack.c.b16 %v2223, %v2215
    %v2776 = vpack.c.b16 %v2224, %v2216
    %v2777 = vpack.c.b16 %v2225, %v2217
    %v2778 = vpack.c.b16 %v2226, %v2218
    %v2779 = vpack.c.b16 %v2235, %v2227
    %v2780 = vpack.c.b16 %v2236, %v2228
    %v2781 = vpack.c.b16 %v2237, %v2229
    %v2782 = vpack.c.b16 %v2238, %v2230
    %v2783 = vpack.c.b16 %v2239, %v2231
    %v2784 = vpack.c.b16 %v2240, %v2232
    %v2785 = vpack.c.b16 %v2241, %v2233
    %v2786 = vpack.c.b16 %v2242, %v2234
    %v2787 = vpack.c.b16 %v2251, %v2243
    %v2788 = vpack.c.b16 %v2252, %v2244
    %v2789 = vpack.c.b16 %v2253, %v2245
    %v2790 = vpack.c.b16 %v2254, %v2246
    %v2791 = vpack.c.b16 %v2255, %v2247
    %v2792 = vpack.c.b16 %v2256, %v2248
    %v2793 = vpack.c.b16 %v2257, %v2249
    %v2794 = vpack.c.b16 %v2258, %v2250
    %v2795 = vpack.c.b16 %v2267, %v2259
    %v2796 = vpack.c.b16 %v2268, %v2260
    %v2797 = vpack.c.b16 %v2269, %v2261
    %v2798 = vpack.c.b16 %v2270, %v2262
    %v2799 = vpack.c.b16 %v2271, %v2263
    %v2800 = vpack.c.b16 %v2272, %v2264
    %v2801 = vpack.c.b16 %v2273, %v2265
    %v2802 = vpack.c.b16 %v2274, %v2266
    %v2803 = vpack.c.b16 %v2283, %v2275
    %v2804 = vpack.c.b16 %v2284, %v2276
    %v2805 = vpack.c.b16 %v2285, %v2277
    %v2806 = vpack.c.b16 %v2286, %v2278
    %v2807 = vpack.c.b16 %v2287, %v2279
    %v2808 = vpack.c.b16 %v2288, %v2280
    %v2809 = vpack.c.b16 %v2289, %v2281
    %v2810 = vpack.c.b16 %v2290, %v2282
    %v2811 = vpack.c.b16 %v2299, %v2291
    %v2812 = vpack.c.b16 %v2300, %v2292
    %v2813 = vpack.c.b16 %v2301, %v2293
    %v2814 = vpack.c.b16 %v2302, %v2294
    %v2815 = vpack.c.b16 %v2303, %v2295
    %v2816 = vpack.c.b16 %v2304, %v2296
    %v2817 = vpack.c.b16 %v2305, %v2297
    %v2818 = vpack.c.b16 %v2306, %v2298
    %3331 = vmatpush.bf16.msra.mxu0 %v2363
    %3332 = vmatpush.bf16.msra.mxu0 %v2355
    %3333 = vmatpush.bf16.msra.mxu0 %v2347
    %3334 = vmatpush.bf16.msra.mxu0 %v2339
    %3335 = vmatpush.bf16.msra.mxu0 %v2331
    %3336 = vmatpush.bf16.msra.mxu0 %v2323
    %3337 = vmatpush.bf16.msra.mxu0 %v2315
    %3338 = vmatpush.bf16.msra.mxu0 %v2307
    %3339 = vmatmul.bf16.gmra.mxu0 %v233
    %v3340 = vpop.f32.mrf.mxu0
    %v3341 = vadd.f32 %v755, %v3340
    %v3342 = vpop.f32.mrf.mxu0
    %3343 = vdwg.mxu0
    %3344 = vmatpush.bf16.msra.mxu0 %v2427
    %3345 = vmatpush.bf16.msra.mxu0 %v2419
    %3346 = vmatpush.bf16.msra.mxu0 %v2411
    %3347 = vmatpush.bf16.msra.mxu0 %v2403
    %3348 = vmatpush.bf16.msra.mxu0 %v2395
    %3349 = vmatpush.bf16.msra.mxu0 %v2387
    %3350 = vmatpush.bf16.msra.mxu0 %v2379
    %3351 = vmatpush.bf16.msra.mxu0 %v2371
    %3352 = vmatmul.bf16.gmra.mxu0 %v234
    %v3353 = vpop.f32.mrf.mxu0
    %v3354 = vadd.f32 %v3341, %v3353
    %v3355 = vpop.f32.mrf.mxu0
    %3356 = vdwg.mxu0
    %3357 = vmatpush.bf16.msra.mxu0 %v2491
    %3358 = vmatpush.bf16.msra.mxu0 %v2483
    %3359 = vmatpush.bf16.msra.mxu0 %v2475
    %3360 = vmatpush.bf16.msra.mxu0 %v2467
    %3361 = vmatpush.bf16.msra.mxu0 %v2459
    %3362 = vmatpush.bf16.msra.mxu0 %v2451
    %3363 = vmatpush.bf16.msra.mxu0 %v2443
    %3364 = vmatpush.bf16.msra.mxu0 %v2435
    %3365 = vmatmul.bf16.gmra.mxu0 %v235
    %v3366 = vpop.f32.mrf.mxu0
    %v3367 = vadd.f32 %v3354, %v3366
    %v3368 = vpop.f32.mrf.mxu0
    %3369 = vdwg.mxu0
    %3370 = vmatpush.bf16.msra.mxu0 %v2555
    %3371 = vmatpush.bf16.msra.mxu0 %v2547
    %3372 = vmatpush.bf16.msra.mxu0 %v2539
    %3373 = vmatpush.bf16.msra.mxu0 %v2531
    %3374 = vmatpush.bf16.msra.mxu0 %v2523
    %3375 = vmatpush.bf16.msra.mxu0 %v2515
    %3376 = vmatpush.bf16.msra.mxu0 %v2507
    %3377 = vmatpush.bf16.msra.mxu0 %v2499
    %3378 = vmatmul.bf16.gmra.mxu0 %v236
    %v3379 = vpop.f32.mrf.mxu0
    %v3380 = vadd.f32 %v3367, %v3379
    %v3381 = vpop.f32.mrf.mxu0
    %3382 = vdwg.mxu0
    %3383 = vmatpush.bf16.msra.mxu0 %v2619
    %3384 = vmatpush.bf16.msra.mxu0 %v2611
    %3385 = vmatpush.bf16.msra.mxu0 %v2603
    %3386 = vmatpush.bf16.msra.mxu0 %v2595
    %3387 = vmatpush.bf16.msra.mxu0 %v2587
    %3388 = vmatpush.bf16.msra.mxu0 %v2579
    %3389 = vmatpush.bf16.msra.mxu0 %v2571
    %3390 = vmatpush.bf16.msra.mxu0 %v2563
    %3391 = vmatmul.bf16.gmra.mxu0 %v237
    %v3392 = vpop.f32.mrf.mxu0
    %v3393 = vadd.f32 %v3380, %v3392
    %v3394 = vpop.f32.mrf.mxu0
    %3395 = vdwg.mxu0
    %3396 = vmatpush.bf16.msra.mxu0 %v2683
    %3397 = vmatpush.bf16.msra.mxu0 %v2675
    %3398 = vmatpush.bf16.msra.mxu0 %v2667
    %3399 = vmatpush.bf16.msra.mxu0 %v2659
    %3400 = vmatpush.bf16.msra.mxu0 %v2651
    %3401 = vmatpush.bf16.msra.mxu0 %v2643
    %3402 = vmatpush.bf16.msra.mxu0 %v2635
    %3403 = vmatpush.bf16.msra.mxu0 %v2627
    %3404 = vmatmul.bf16.gmra.mxu0 %v238
    %v3405 = vpop.f32.mrf.mxu0
    %v3406 = vadd.f32 %v3393, %v3405
    %v3407 = vpop.f32.mrf.mxu0
    %3408 = vdwg.mxu0
    %3409 = vmatpush.bf16.msra.mxu0 %v2747
    %3410 = vmatpush.bf16.msra.mxu0 %v2739
    %3411 = vmatpush.bf16.msra.mxu0 %v2731
    %3412 = vmatpush.bf16.msra.mxu0 %v2723
    %3413 = vmatpush.bf16.msra.mxu0 %v2715
    %3414 = vmatpush.bf16.msra.mxu0 %v2707
    %3415 = vmatpush.bf16.msra.mxu0 %v2699
    %3416 = vmatpush.bf16.msra.mxu0 %v2691
    %3417 = vmatmul.bf16.gmra.mxu0 %v239
    %v3418 = vpop.f32.mrf.mxu0
    %v3419 = vadd.f32 %v3406, %v3418
    %v3420 = vpop.f32.mrf.mxu0
    %3421 = vdwg.mxu0
    %3422 = vmatpush.bf16.msra.mxu0 %v2811
    %3423 = vmatpush.bf16.msra.mxu0 %v2803
    %3424 = vmatpush.bf16.msra.mxu0 %v2795
    %3425 = vmatpush.bf16.msra.mxu0 %v2787
    %3426 = vmatpush.bf16.msra.mxu0 %v2779
    %3427 = vmatpush.bf16.msra.mxu0 %v2771
    %3428 = vmatpush.bf16.msra.mxu0 %v2763
    %3429 = vmatpush.bf16.msra.mxu0 %v2755
    %3430 = vmatmul.bf16.gmra.mxu0 %v240
    %v3431 = vpop.f32.mrf.mxu0
    %v3432 = vadd.f32 %v3419, %v3431
    %v3433 = vpop.f32.mrf.mxu0
    %3434 = vdwg.mxu0
    %3435 = vmatpush.bf16.msra.mxu0 %v2364
    %3436 = vmatpush.bf16.msra.mxu0 %v2356
    %3437 = vmatpush.bf16.msra.mxu0 %v2348
    %3438 = vmatpush.bf16.msra.mxu0 %v2340
    %3439 = vmatpush.bf16.msra.mxu0 %v2332
    %3440 = vmatpush.bf16.msra.mxu0 %v2324
    %3441 = vmatpush.bf16.msra.mxu0 %v2316
    %3442 = vmatpush.bf16.msra.mxu0 %v2308
    %3443 = vmatmul.bf16.gmra.mxu0 %v233
    %v3444 = vpop.f32.mrf.mxu0
    %v3445 = vadd.f32 %v756, %v3444
    %v3446 = vpop.f32.mrf.mxu0
    %3447 = vdwg.mxu0
    %3448 = vmatpush.bf16.msra.mxu0 %v2428
    %3449 = vmatpush.bf16.msra.mxu0 %v2420
    %3450 = vmatpush.bf16.msra.mxu0 %v2412
    %3451 = vmatpush.bf16.msra.mxu0 %v2404
    %3452 = vmatpush.bf16.msra.mxu0 %v2396
    %3453 = vmatpush.bf16.msra.mxu0 %v2388
    %3454 = vmatpush.bf16.msra.mxu0 %v2380
    %3455 = vmatpush.bf16.msra.mxu0 %v2372
    %3456 = vmatmul.bf16.gmra.mxu0 %v234
    %v3457 = vpop.f32.mrf.mxu0
    %v3458 = vadd.f32 %v3445, %v3457
    %v3459 = vpop.f32.mrf.mxu0
    %3460 = vdwg.mxu0
    %3461 = vmatpush.bf16.msra.mxu0 %v2492
    %3462 = vmatpush.bf16.msra.mxu0 %v2484
    %3463 = vmatpush.bf16.msra.mxu0 %v2476
    %3464 = vmatpush.bf16.msra.mxu0 %v2468
    %3465 = vmatpush.bf16.msra.mxu0 %v2460
    %3466 = vmatpush.bf16.msra.mxu0 %v2452
    %3467 = vmatpush.bf16.msra.mxu0 %v2444
    %3468 = vmatpush.bf16.msra.mxu0 %v2436
    %3469 = vmatmul.bf16.gmra.mxu0 %v235
    %v3470 = vpop.f32.mrf.mxu0
    %v3471 = vadd.f32 %v3458, %v3470
    %v3472 = vpop.f32.mrf.mxu0
    %3473 = vdwg.mxu0
    %3474 = vmatpush.bf16.msra.mxu0 %v2556
    %3475 = vmatpush.bf16.msra.mxu0 %v2548
    %3476 = vmatpush.bf16.msra.mxu0 %v2540
    %3477 = vmatpush.bf16.msra.mxu0 %v2532
    %3478 = vmatpush.bf16.msra.mxu0 %v2524
    %3479 = vmatpush.bf16.msra.mxu0 %v2516
    %3480 = vmatpush.bf16.msra.mxu0 %v2508
    %3481 = vmatpush.bf16.msra.mxu0 %v2500
    %3482 = vmatmul.bf16.gmra.mxu0 %v236
    %v3483 = vpop.f32.mrf.mxu0
    %v3484 = vadd.f32 %v3471, %v3483
    %v3485 = vpop.f32.mrf.mxu0
    %3486 = vdwg.mxu0
    %3487 = vmatpush.bf16.msra.mxu0 %v2620
    %3488 = vmatpush.bf16.msra.mxu0 %v2612
    %3489 = vmatpush.bf16.msra.mxu0 %v2604
    %3490 = vmatpush.bf16.msra.mxu0 %v2596
    %3491 = vmatpush.bf16.msra.mxu0 %v2588
    %3492 = vmatpush.bf16.msra.mxu0 %v2580
    %3493 = vmatpush.bf16.msra.mxu0 %v2572
    %3494 = vmatpush.bf16.msra.mxu0 %v2564
    %3495 = vmatmul.bf16.gmra.mxu0 %v237
    %v3496 = vpop.f32.mrf.mxu0
    %v3497 = vadd.f32 %v3484, %v3496
    %v3498 = vpop.f32.mrf.mxu0
    %3499 = vdwg.mxu0
    %3500 = vmatpush.bf16.msra.mxu0 %v2684
    %3501 = vmatpush.bf16.msra.mxu0 %v2676
    %3502 = vmatpush.bf16.msra.mxu0 %v2668
    %3503 = vmatpush.bf16.msra.mxu0 %v2660
    %3504 = vmatpush.bf16.msra.mxu0 %v2652
    %3505 = vmatpush.bf16.msra.mxu0 %v2644
    %3506 = vmatpush.bf16.msra.mxu0 %v2636
    %3507 = vmatpush.bf16.msra.mxu0 %v2628
    %3508 = vmatmul.bf16.gmra.mxu0 %v238
    %v3509 = vpop.f32.mrf.mxu0
    %v3510 = vadd.f32 %v3497, %v3509
    %v3511 = vpop.f32.mrf.mxu0
    %3512 = vdwg.mxu0
    %3513 = vmatpush.bf16.msra.mxu0 %v2748
    %3514 = vmatpush.bf16.msra.mxu0 %v2740
    %3515 = vmatpush.bf16.msra.mxu0 %v2732
    %3516 = vmatpush.bf16.msra.mxu0 %v2724
    %3517 = vmatpush.bf16.msra.mxu0 %v2716
    %3518 = vmatpush.bf16.msra.mxu0 %v2708
    %3519 = vmatpush.bf16.msra.mxu0 %v2700
    %3520 = vmatpush.bf16.msra.mxu0 %v2692
    %3521 = vmatmul.bf16.gmra.mxu0 %v239
    %v3522 = vpop.f32.mrf.mxu0
    %v3523 = vadd.f32 %v3510, %v3522
    %v3524 = vpop.f32.mrf.mxu0
    %3525 = vdwg.mxu0
    %3526 = vmatpush.bf16.msra.mxu0 %v2812
    %3527 = vmatpush.bf16.msra.mxu0 %v2804
    %3528 = vmatpush.bf16.msra.mxu0 %v2796
    %3529 = vmatpush.bf16.msra.mxu0 %v2788
    %3530 = vmatpush.bf16.msra.mxu0 %v2780
    %3531 = vmatpush.bf16.msra.mxu0 %v2772
    %3532 = vmatpush.bf16.msra.mxu0 %v2764
    %3533 = vmatpush.bf16.msra.mxu0 %v2756
    %3534 = vmatmul.bf16.gmra.mxu0 %v240
    %v3535 = vpop.f32.mrf.mxu0
    %v3536 = vadd.f32 %v3523, %v3535
    %v3537 = vpop.f32.mrf.mxu0
    %3538 = vdwg.mxu0
    %3539 = vmatpush.bf16.msra.mxu0 %v2365
    %3540 = vmatpush.bf16.msra.mxu0 %v2357
    %3541 = vmatpush.bf16.msra.mxu0 %v2349
    %3542 = vmatpush.bf16.msra.mxu0 %v2341
    %3543 = vmatpush.bf16.msra.mxu0 %v2333
    %3544 = vmatpush.bf16.msra.mxu0 %v2325
    %3545 = vmatpush.bf16.msra.mxu0 %v2317
    %3546 = vmatpush.bf16.msra.mxu0 %v2309
    %3547 = vmatmul.bf16.gmra.mxu0 %v233
    %v3548 = vpop.f32.mrf.mxu0
    %v3549 = vadd.f32 %v757, %v3548
    %v3550 = vpop.f32.mrf.mxu0
    %3551 = vdwg.mxu0
    %3552 = vmatpush.bf16.msra.mxu0 %v2429
    %3553 = vmatpush.bf16.msra.mxu0 %v2421
    %3554 = vmatpush.bf16.msra.mxu0 %v2413
    %3555 = vmatpush.bf16.msra.mxu0 %v2405
    %3556 = vmatpush.bf16.msra.mxu0 %v2397
    %3557 = vmatpush.bf16.msra.mxu0 %v2389
    %3558 = vmatpush.bf16.msra.mxu0 %v2381
    %3559 = vmatpush.bf16.msra.mxu0 %v2373
    %3560 = vmatmul.bf16.gmra.mxu0 %v234
    %v3561 = vpop.f32.mrf.mxu0
    %v3562 = vadd.f32 %v3549, %v3561
    %v3563 = vpop.f32.mrf.mxu0
    %3564 = vdwg.mxu0
    %3565 = vmatpush.bf16.msra.mxu0 %v2493
    %3566 = vmatpush.bf16.msra.mxu0 %v2485
    %3567 = vmatpush.bf16.msra.mxu0 %v2477
    %3568 = vmatpush.bf16.msra.mxu0 %v2469
    %3569 = vmatpush.bf16.msra.mxu0 %v2461
    %3570 = vmatpush.bf16.msra.mxu0 %v2453
    %3571 = vmatpush.bf16.msra.mxu0 %v2445
    %3572 = vmatpush.bf16.msra.mxu0 %v2437
    %3573 = vmatmul.bf16.gmra.mxu0 %v235
    %v3574 = vpop.f32.mrf.mxu0
    %v3575 = vadd.f32 %v3562, %v3574
    %v3576 = vpop.f32.mrf.mxu0
    %3577 = vdwg.mxu0
    %3578 = vmatpush.bf16.msra.mxu0 %v2557
    %3579 = vmatpush.bf16.msra.mxu0 %v2549
    %3580 = vmatpush.bf16.msra.mxu0 %v2541
    %3581 = vmatpush.bf16.msra.mxu0 %v2533
    %3582 = vmatpush.bf16.msra.mxu0 %v2525
    %3583 = vmatpush.bf16.msra.mxu0 %v2517
    %3584 = vmatpush.bf16.msra.mxu0 %v2509
    %3585 = vmatpush.bf16.msra.mxu0 %v2501
    %3586 = vmatmul.bf16.gmra.mxu0 %v236
    %v3587 = vpop.f32.mrf.mxu0
    %v3588 = vadd.f32 %v3575, %v3587
    %v3589 = vpop.f32.mrf.mxu0
    %3590 = vdwg.mxu0
    %3591 = vmatpush.bf16.msra.mxu0 %v2621
    %3592 = vmatpush.bf16.msra.mxu0 %v2613
    %3593 = vmatpush.bf16.msra.mxu0 %v2605
    %3594 = vmatpush.bf16.msra.mxu0 %v2597
    %3595 = vmatpush.bf16.msra.mxu0 %v2589
    %3596 = vmatpush.bf16.msra.mxu0 %v2581
    %3597 = vmatpush.bf16.msra.mxu0 %v2573
    %3598 = vmatpush.bf16.msra.mxu0 %v2565
    %3599 = vmatmul.bf16.gmra.mxu0 %v237
    %v3600 = vpop.f32.mrf.mxu0
    %v3601 = vadd.f32 %v3588, %v3600
    %v3602 = vpop.f32.mrf.mxu0
    %3603 = vdwg.mxu0
    %3604 = vmatpush.bf16.msra.mxu0 %v2685
    %3605 = vmatpush.bf16.msra.mxu0 %v2677
    %3606 = vmatpush.bf16.msra.mxu0 %v2669
    %3607 = vmatpush.bf16.msra.mxu0 %v2661
    %3608 = vmatpush.bf16.msra.mxu0 %v2653
    %3609 = vmatpush.bf16.msra.mxu0 %v2645
    %3610 = vmatpush.bf16.msra.mxu0 %v2637
    %3611 = vmatpush.bf16.msra.mxu0 %v2629
    %3612 = vmatmul.bf16.gmra.mxu0 %v238
    %v3613 = vpop.f32.mrf.mxu0
    %v3614 = vadd.f32 %v3601, %v3613
    %v3615 = vpop.f32.mrf.mxu0
    %3616 = vdwg.mxu0
    %3617 = vmatpush.bf16.msra.mxu0 %v2749
    %3618 = vmatpush.bf16.msra.mxu0 %v2741
    %3619 = vmatpush.bf16.msra.mxu0 %v2733
    %3620 = vmatpush.bf16.msra.mxu0 %v2725
    %3621 = vmatpush.bf16.msra.mxu0 %v2717
    %3622 = vmatpush.bf16.msra.mxu0 %v2709
    %3623 = vmatpush.bf16.msra.mxu0 %v2701
    %3624 = vmatpush.bf16.msra.mxu0 %v2693
    %3625 = vmatmul.bf16.gmra.mxu0 %v239
    %v3626 = vpop.f32.mrf.mxu0
    %v3627 = vadd.f32 %v3614, %v3626
    %v3628 = vpop.f32.mrf.mxu0
    %3629 = vdwg.mxu0
    %3630 = vmatpush.bf16.msra.mxu0 %v2813
    %3631 = vmatpush.bf16.msra.mxu0 %v2805
    %3632 = vmatpush.bf16.msra.mxu0 %v2797
    %3633 = vmatpush.bf16.msra.mxu0 %v2789
    %3634 = vmatpush.bf16.msra.mxu0 %v2781
    %3635 = vmatpush.bf16.msra.mxu0 %v2773
    %3636 = vmatpush.bf16.msra.mxu0 %v2765
    %3637 = vmatpush.bf16.msra.mxu0 %v2757
    %3638 = vmatmul.bf16.gmra.mxu0 %v240
    %v3639 = vpop.f32.mrf.mxu0
    %v3640 = vadd.f32 %v3627, %v3639
    %v3641 = vpop.f32.mrf.mxu0
    %3642 = vdwg.mxu0
    %3643 = vmatpush.bf16.msra.mxu0 %v2366
    %3644 = vmatpush.bf16.msra.mxu0 %v2358
    %3645 = vmatpush.bf16.msra.mxu0 %v2350
    %3646 = vmatpush.bf16.msra.mxu0 %v2342
    %3647 = vmatpush.bf16.msra.mxu0 %v2334
    %3648 = vmatpush.bf16.msra.mxu0 %v2326
    %3649 = vmatpush.bf16.msra.mxu0 %v2318
    %3650 = vmatpush.bf16.msra.mxu0 %v2310
    %3651 = vmatmul.bf16.gmra.mxu0 %v233
    %v3652 = vpop.f32.mrf.mxu0
    %v3653 = vadd.f32 %v758, %v3652
    %v3654 = vpop.f32.mrf.mxu0
    %3655 = vdwg.mxu0
    %3656 = vmatpush.bf16.msra.mxu0 %v2430
    %3657 = vmatpush.bf16.msra.mxu0 %v2422
    %3658 = vmatpush.bf16.msra.mxu0 %v2414
    %3659 = vmatpush.bf16.msra.mxu0 %v2406
    %3660 = vmatpush.bf16.msra.mxu0 %v2398
    %3661 = vmatpush.bf16.msra.mxu0 %v2390
    %3662 = vmatpush.bf16.msra.mxu0 %v2382
    %3663 = vmatpush.bf16.msra.mxu0 %v2374
    %3664 = vmatmul.bf16.gmra.mxu0 %v234
    %v3665 = vpop.f32.mrf.mxu0
    %v3666 = vadd.f32 %v3653, %v3665
    %v3667 = vpop.f32.mrf.mxu0
    %3668 = vdwg.mxu0
    %3669 = vmatpush.bf16.msra.mxu0 %v2494
    %3670 = vmatpush.bf16.msra.mxu0 %v2486
    %3671 = vmatpush.bf16.msra.mxu0 %v2478
    %3672 = vmatpush.bf16.msra.mxu0 %v2470
    %3673 = vmatpush.bf16.msra.mxu0 %v2462
    %3674 = vmatpush.bf16.msra.mxu0 %v2454
    %3675 = vmatpush.bf16.msra.mxu0 %v2446
    %3676 = vmatpush.bf16.msra.mxu0 %v2438
    %3677 = vmatmul.bf16.gmra.mxu0 %v235
    %v3678 = vpop.f32.mrf.mxu0
    %v3679 = vadd.f32 %v3666, %v3678
    %v3680 = vpop.f32.mrf.mxu0
    %3681 = vdwg.mxu0
    %3682 = vmatpush.bf16.msra.mxu0 %v2558
    %3683 = vmatpush.bf16.msra.mxu0 %v2550
    %3684 = vmatpush.bf16.msra.mxu0 %v2542
    %3685 = vmatpush.bf16.msra.mxu0 %v2534
    %3686 = vmatpush.bf16.msra.mxu0 %v2526
    %3687 = vmatpush.bf16.msra.mxu0 %v2518
    %3688 = vmatpush.bf16.msra.mxu0 %v2510
    %3689 = vmatpush.bf16.msra.mxu0 %v2502
    %3690 = vmatmul.bf16.gmra.mxu0 %v236
    %v3691 = vpop.f32.mrf.mxu0
    %v3692 = vadd.f32 %v3679, %v3691
    %v3693 = vpop.f32.mrf.mxu0
    %3694 = vdwg.mxu0
    %3695 = vmatpush.bf16.msra.mxu0 %v2622
    %3696 = vmatpush.bf16.msra.mxu0 %v2614
    %3697 = vmatpush.bf16.msra.mxu0 %v2606
    %3698 = vmatpush.bf16.msra.mxu0 %v2598
    %3699 = vmatpush.bf16.msra.mxu0 %v2590
    %3700 = vmatpush.bf16.msra.mxu0 %v2582
    %3701 = vmatpush.bf16.msra.mxu0 %v2574
    %3702 = vmatpush.bf16.msra.mxu0 %v2566
    %3703 = vmatmul.bf16.gmra.mxu0 %v237
    %v3704 = vpop.f32.mrf.mxu0
    %v3705 = vadd.f32 %v3692, %v3704
    %v3706 = vpop.f32.mrf.mxu0
    %3707 = vdwg.mxu0
    %3708 = vmatpush.bf16.msra.mxu0 %v2686
    %3709 = vmatpush.bf16.msra.mxu0 %v2678
    %3710 = vmatpush.bf16.msra.mxu0 %v2670
    %3711 = vmatpush.bf16.msra.mxu0 %v2662
    %3712 = vmatpush.bf16.msra.mxu0 %v2654
    %3713 = vmatpush.bf16.msra.mxu0 %v2646
    %3714 = vmatpush.bf16.msra.mxu0 %v2638
    %3715 = vmatpush.bf16.msra.mxu0 %v2630
    %3716 = vmatmul.bf16.gmra.mxu0 %v238
    %v3717 = vpop.f32.mrf.mxu0
    %v3718 = vadd.f32 %v3705, %v3717
    %v3719 = vpop.f32.mrf.mxu0
    %3720 = vdwg.mxu0
    %3721 = vmatpush.bf16.msra.mxu0 %v2750
    %3722 = vmatpush.bf16.msra.mxu0 %v2742
    %3723 = vmatpush.bf16.msra.mxu0 %v2734
    %3724 = vmatpush.bf16.msra.mxu0 %v2726
    %3725 = vmatpush.bf16.msra.mxu0 %v2718
    %3726 = vmatpush.bf16.msra.mxu0 %v2710
    %3727 = vmatpush.bf16.msra.mxu0 %v2702
    %3728 = vmatpush.bf16.msra.mxu0 %v2694
    %3729 = vmatmul.bf16.gmra.mxu0 %v239
    %v3730 = vpop.f32.mrf.mxu0
    %v3731 = vadd.f32 %v3718, %v3730
    %v3732 = vpop.f32.mrf.mxu0
    %3733 = vdwg.mxu0
    %3734 = vmatpush.bf16.msra.mxu0 %v2814
    %3735 = vmatpush.bf16.msra.mxu0 %v2806
    %3736 = vmatpush.bf16.msra.mxu0 %v2798
    %3737 = vmatpush.bf16.msra.mxu0 %v2790
    %3738 = vmatpush.bf16.msra.mxu0 %v2782
    %3739 = vmatpush.bf16.msra.mxu0 %v2774
    %3740 = vmatpush.bf16.msra.mxu0 %v2766
    %3741 = vmatpush.bf16.msra.mxu0 %v2758
    %3742 = vmatmul.bf16.gmra.mxu0 %v240
    %v3743 = vpop.f32.mrf.mxu0
    %v3744 = vadd.f32 %v3731, %v3743
    %v3745 = vpop.f32.mrf.mxu0
    %3746 = vdwg.mxu0
    %3747 = vmatpush.bf16.msra.mxu0 %v2367
    %3748 = vmatpush.bf16.msra.mxu0 %v2359
    %3749 = vmatpush.bf16.msra.mxu0 %v2351
    %3750 = vmatpush.bf16.msra.mxu0 %v2343
    %3751 = vmatpush.bf16.msra.mxu0 %v2335
    %3752 = vmatpush.bf16.msra.mxu0 %v2327
    %3753 = vmatpush.bf16.msra.mxu0 %v2319
    %3754 = vmatpush.bf16.msra.mxu0 %v2311
    %3755 = vmatmul.bf16.gmra.mxu0 %v233
    %v3756 = vpop.f32.mrf.mxu0
    %v3757 = vadd.f32 %v759, %v3756
    %v3758 = vpop.f32.mrf.mxu0
    %3759 = vdwg.mxu0
    %3760 = vmatpush.bf16.msra.mxu0 %v2431
    %3761 = vmatpush.bf16.msra.mxu0 %v2423
    %3762 = vmatpush.bf16.msra.mxu0 %v2415
    %3763 = vmatpush.bf16.msra.mxu0 %v2407
    %3764 = vmatpush.bf16.msra.mxu0 %v2399
    %3765 = vmatpush.bf16.msra.mxu0 %v2391
    %3766 = vmatpush.bf16.msra.mxu0 %v2383
    %3767 = vmatpush.bf16.msra.mxu0 %v2375
    %3768 = vmatmul.bf16.gmra.mxu0 %v234
    %v3769 = vpop.f32.mrf.mxu0
    %v3770 = vadd.f32 %v3757, %v3769
    %v3771 = vpop.f32.mrf.mxu0
    %3772 = vdwg.mxu0
    %3773 = vmatpush.bf16.msra.mxu0 %v2495
    %3774 = vmatpush.bf16.msra.mxu0 %v2487
    %3775 = vmatpush.bf16.msra.mxu0 %v2479
    %3776 = vmatpush.bf16.msra.mxu0 %v2471
    %3777 = vmatpush.bf16.msra.mxu0 %v2463
    %3778 = vmatpush.bf16.msra.mxu0 %v2455
    %3779 = vmatpush.bf16.msra.mxu0 %v2447
    %3780 = vmatpush.bf16.msra.mxu0 %v2439
    %3781 = vmatmul.bf16.gmra.mxu0 %v235
    %v3782 = vpop.f32.mrf.mxu0
    %v3783 = vadd.f32 %v3770, %v3782
    %v3784 = vpop.f32.mrf.mxu0
    %3785 = vdwg.mxu0
    %3786 = vmatpush.bf16.msra.mxu0 %v2559
    %3787 = vmatpush.bf16.msra.mxu0 %v2551
    %3788 = vmatpush.bf16.msra.mxu0 %v2543
    %3789 = vmatpush.bf16.msra.mxu0 %v2535
    %3790 = vmatpush.bf16.msra.mxu0 %v2527
    %3791 = vmatpush.bf16.msra.mxu0 %v2519
    %3792 = vmatpush.bf16.msra.mxu0 %v2511
    %3793 = vmatpush.bf16.msra.mxu0 %v2503
    %3794 = vmatmul.bf16.gmra.mxu0 %v236
    %v3795 = vpop.f32.mrf.mxu0
    %v3796 = vadd.f32 %v3783, %v3795
    %v3797 = vpop.f32.mrf.mxu0
    %3798 = vdwg.mxu0
    %3799 = vmatpush.bf16.msra.mxu0 %v2623
    %3800 = vmatpush.bf16.msra.mxu0 %v2615
    %3801 = vmatpush.bf16.msra.mxu0 %v2607
    %3802 = vmatpush.bf16.msra.mxu0 %v2599
    %3803 = vmatpush.bf16.msra.mxu0 %v2591
    %3804 = vmatpush.bf16.msra.mxu0 %v2583
    %3805 = vmatpush.bf16.msra.mxu0 %v2575
    %3806 = vmatpush.bf16.msra.mxu0 %v2567
    %3807 = vmatmul.bf16.gmra.mxu0 %v237
    %v3808 = vpop.f32.mrf.mxu0
    %v3809 = vadd.f32 %v3796, %v3808
    %v3810 = vpop.f32.mrf.mxu0
    %3811 = vdwg.mxu0
    %3812 = vmatpush.bf16.msra.mxu0 %v2687
    %3813 = vmatpush.bf16.msra.mxu0 %v2679
    %3814 = vmatpush.bf16.msra.mxu0 %v2671
    %3815 = vmatpush.bf16.msra.mxu0 %v2663
    %3816 = vmatpush.bf16.msra.mxu0 %v2655
    %3817 = vmatpush.bf16.msra.mxu0 %v2647
    %3818 = vmatpush.bf16.msra.mxu0 %v2639
    %3819 = vmatpush.bf16.msra.mxu0 %v2631
    %3820 = vmatmul.bf16.gmra.mxu0 %v238
    %v3821 = vpop.f32.mrf.mxu0
    %v3822 = vadd.f32 %v3809, %v3821
    %v3823 = vpop.f32.mrf.mxu0
    %3824 = vdwg.mxu0
    %3825 = vmatpush.bf16.msra.mxu0 %v2751
    %3826 = vmatpush.bf16.msra.mxu0 %v2743
    %3827 = vmatpush.bf16.msra.mxu0 %v2735
    %3828 = vmatpush.bf16.msra.mxu0 %v2727
    %3829 = vmatpush.bf16.msra.mxu0 %v2719
    %3830 = vmatpush.bf16.msra.mxu0 %v2711
    %3831 = vmatpush.bf16.msra.mxu0 %v2703
    %3832 = vmatpush.bf16.msra.mxu0 %v2695
    %3833 = vmatmul.bf16.gmra.mxu0 %v239
    %v3834 = vpop.f32.mrf.mxu0
    %v3835 = vadd.f32 %v3822, %v3834
    %v3836 = vpop.f32.mrf.mxu0
    %3837 = vdwg.mxu0
    %3838 = vmatpush.bf16.msra.mxu0 %v2815
    %3839 = vmatpush.bf16.msra.mxu0 %v2807
    %3840 = vmatpush.bf16.msra.mxu0 %v2799
    %3841 = vmatpush.bf16.msra.mxu0 %v2791
    %3842 = vmatpush.bf16.msra.mxu0 %v2783
    %3843 = vmatpush.bf16.msra.mxu0 %v2775
    %3844 = vmatpush.bf16.msra.mxu0 %v2767
    %3845 = vmatpush.bf16.msra.mxu0 %v2759
    %3846 = vmatmul.bf16.gmra.mxu0 %v240
    %v3847 = vpop.f32.mrf.mxu0
    %v3848 = vadd.f32 %v3835, %v3847
    %v3849 = vpop.f32.mrf.mxu0
    %3850 = vdwg.mxu0
    %3851 = vmatpush.bf16.msra.mxu0 %v2368
    %3852 = vmatpush.bf16.msra.mxu0 %v2360
    %3853 = vmatpush.bf16.msra.mxu0 %v2352
    %3854 = vmatpush.bf16.msra.mxu0 %v2344
    %3855 = vmatpush.bf16.msra.mxu0 %v2336
    %3856 = vmatpush.bf16.msra.mxu0 %v2328
    %3857 = vmatpush.bf16.msra.mxu0 %v2320
    %3858 = vmatpush.bf16.msra.mxu0 %v2312
    %3859 = vmatmul.bf16.gmra.mxu0 %v233
    %v3860 = vpop.f32.mrf.mxu0
    %v3861 = vadd.f32 %v760, %v3860
    %v3862 = vpop.f32.mrf.mxu0
    %3863 = vdwg.mxu0
    %3864 = vmatpush.bf16.msra.mxu0 %v2432
    %3865 = vmatpush.bf16.msra.mxu0 %v2424
    %3866 = vmatpush.bf16.msra.mxu0 %v2416
    %3867 = vmatpush.bf16.msra.mxu0 %v2408
    %3868 = vmatpush.bf16.msra.mxu0 %v2400
    %3869 = vmatpush.bf16.msra.mxu0 %v2392
    %3870 = vmatpush.bf16.msra.mxu0 %v2384
    %3871 = vmatpush.bf16.msra.mxu0 %v2376
    %3872 = vmatmul.bf16.gmra.mxu0 %v234
    %v3873 = vpop.f32.mrf.mxu0
    %v3874 = vadd.f32 %v3861, %v3873
    %v3875 = vpop.f32.mrf.mxu0
    %3876 = vdwg.mxu0
    %3877 = vmatpush.bf16.msra.mxu0 %v2496
    %3878 = vmatpush.bf16.msra.mxu0 %v2488
    %3879 = vmatpush.bf16.msra.mxu0 %v2480
    %3880 = vmatpush.bf16.msra.mxu0 %v2472
    %3881 = vmatpush.bf16.msra.mxu0 %v2464
    %3882 = vmatpush.bf16.msra.mxu0 %v2456
    %3883 = vmatpush.bf16.msra.mxu0 %v2448
    %3884 = vmatpush.bf16.msra.mxu0 %v2440
    %3885 = vmatmul.bf16.gmra.mxu0 %v235
    %v3886 = vpop.f32.mrf.mxu0
    %v3887 = vadd.f32 %v3874, %v3886
    %v3888 = vpop.f32.mrf.mxu0
    %3889 = vdwg.mxu0
    %3890 = vmatpush.bf16.msra.mxu0 %v2560
    %3891 = vmatpush.bf16.msra.mxu0 %v2552
    %3892 = vmatpush.bf16.msra.mxu0 %v2544
    %3893 = vmatpush.bf16.msra.mxu0 %v2536
    %3894 = vmatpush.bf16.msra.mxu0 %v2528
    %3895 = vmatpush.bf16.msra.mxu0 %v2520
    %3896 = vmatpush.bf16.msra.mxu0 %v2512
    %3897 = vmatpush.bf16.msra.mxu0 %v2504
    %3898 = vmatmul.bf16.gmra.mxu0 %v236
    %v3899 = vpop.f32.mrf.mxu0
    %v3900 = vadd.f32 %v3887, %v3899
    %v3901 = vpop.f32.mrf.mxu0
    %3902 = vdwg.mxu0
    %3903 = vmatpush.bf16.msra.mxu0 %v2624
    %3904 = vmatpush.bf16.msra.mxu0 %v2616
    %3905 = vmatpush.bf16.msra.mxu0 %v2608
    %3906 = vmatpush.bf16.msra.mxu0 %v2600
    %3907 = vmatpush.bf16.msra.mxu0 %v2592
    %3908 = vmatpush.bf16.msra.mxu0 %v2584
    %3909 = vmatpush.bf16.msra.mxu0 %v2576
    %3910 = vmatpush.bf16.msra.mxu0 %v2568
    %3911 = vmatmul.bf16.gmra.mxu0 %v237
    %v3912 = vpop.f32.mrf.mxu0
    %v3913 = vadd.f32 %v3900, %v3912
    %v3914 = vpop.f32.mrf.mxu0
    %3915 = vdwg.mxu0
    %3916 = vmatpush.bf16.msra.mxu0 %v2688
    %3917 = vmatpush.bf16.msra.mxu0 %v2680
    %3918 = vmatpush.bf16.msra.mxu0 %v2672
    %3919 = vmatpush.bf16.msra.mxu0 %v2664
    %3920 = vmatpush.bf16.msra.mxu0 %v2656
    %3921 = vmatpush.bf16.msra.mxu0 %v2648
    %3922 = vmatpush.bf16.msra.mxu0 %v2640
    %3923 = vmatpush.bf16.msra.mxu0 %v2632
    %3924 = vmatmul.bf16.gmra.mxu0 %v238
    %v3925 = vpop.f32.mrf.mxu0
    %v3926 = vadd.f32 %v3913, %v3925
    %v3927 = vpop.f32.mrf.mxu0
    %3928 = vdwg.mxu0
    %3929 = vmatpush.bf16.msra.mxu0 %v2752
    %3930 = vmatpush.bf16.msra.mxu0 %v2744
    %3931 = vmatpush.bf16.msra.mxu0 %v2736
    %3932 = vmatpush.bf16.msra.mxu0 %v2728
    %3933 = vmatpush.bf16.msra.mxu0 %v2720
    %3934 = vmatpush.bf16.msra.mxu0 %v2712
    %3935 = vmatpush.bf16.msra.mxu0 %v2704
    %3936 = vmatpush.bf16.msra.mxu0 %v2696
    %3937 = vmatmul.bf16.gmra.mxu0 %v239
    %v3938 = vpop.f32.mrf.mxu0
    %v3939 = vadd.f32 %v3926, %v3938
    %v3940 = vpop.f32.mrf.mxu0
    %3941 = vdwg.mxu0
    %3942 = vmatpush.bf16.msra.mxu0 %v2816
    %3943 = vmatpush.bf16.msra.mxu0 %v2808
    %3944 = vmatpush.bf16.msra.mxu0 %v2800
    %3945 = vmatpush.bf16.msra.mxu0 %v2792
    %3946 = vmatpush.bf16.msra.mxu0 %v2784
    %3947 = vmatpush.bf16.msra.mxu0 %v2776
    %3948 = vmatpush.bf16.msra.mxu0 %v2768
    %3949 = vmatpush.bf16.msra.mxu0 %v2760
    %3950 = vmatmul.bf16.gmra.mxu0 %v240
    %v3951 = vpop.f32.mrf.mxu0
    %v3952 = vadd.f32 %v3939, %v3951
    %v3953 = vpop.f32.mrf.mxu0
    %3954 = vdwg.mxu0
    %3955 = vmatpush.bf16.msra.mxu0 %v2369
    %3956 = vmatpush.bf16.msra.mxu0 %v2361
    %3957 = vmatpush.bf16.msra.mxu0 %v2353
    %3958 = vmatpush.bf16.msra.mxu0 %v2345
    %3959 = vmatpush.bf16.msra.mxu0 %v2337
    %3960 = vmatpush.bf16.msra.mxu0 %v2329
    %3961 = vmatpush.bf16.msra.mxu0 %v2321
    %3962 = vmatpush.bf16.msra.mxu0 %v2313
    %3963 = vmatmul.bf16.gmra.mxu0 %v233
    %v3964 = vpop.f32.mrf.mxu0
    %v3965 = vadd.f32 %v761, %v3964
    %v3966 = vpop.f32.mrf.mxu0
    %3967 = vdwg.mxu0
    %3968 = vmatpush.bf16.msra.mxu0 %v2433
    %3969 = vmatpush.bf16.msra.mxu0 %v2425
    %3970 = vmatpush.bf16.msra.mxu0 %v2417
    %3971 = vmatpush.bf16.msra.mxu0 %v2409
    %3972 = vmatpush.bf16.msra.mxu0 %v2401
    %3973 = vmatpush.bf16.msra.mxu0 %v2393
    %3974 = vmatpush.bf16.msra.mxu0 %v2385
    %3975 = vmatpush.bf16.msra.mxu0 %v2377
    %3976 = vmatmul.bf16.gmra.mxu0 %v234
    %v3977 = vpop.f32.mrf.mxu0
    %v3978 = vadd.f32 %v3965, %v3977
    %v3979 = vpop.f32.mrf.mxu0
    %3980 = vdwg.mxu0
    %3981 = vmatpush.bf16.msra.mxu0 %v2497
    %3982 = vmatpush.bf16.msra.mxu0 %v2489
    %3983 = vmatpush.bf16.msra.mxu0 %v2481
    %3984 = vmatpush.bf16.msra.mxu0 %v2473
    %3985 = vmatpush.bf16.msra.mxu0 %v2465
    %3986 = vmatpush.bf16.msra.mxu0 %v2457
    %3987 = vmatpush.bf16.msra.mxu0 %v2449
    %3988 = vmatpush.bf16.msra.mxu0 %v2441
    %3989 = vmatmul.bf16.gmra.mxu0 %v235
    %v3990 = vpop.f32.mrf.mxu0
    %v3991 = vadd.f32 %v3978, %v3990
    %v3992 = vpop.f32.mrf.mxu0
    %3993 = vdwg.mxu0
    %3994 = vmatpush.bf16.msra.mxu0 %v2561
    %3995 = vmatpush.bf16.msra.mxu0 %v2553
    %3996 = vmatpush.bf16.msra.mxu0 %v2545
    %3997 = vmatpush.bf16.msra.mxu0 %v2537
    %3998 = vmatpush.bf16.msra.mxu0 %v2529
    %3999 = vmatpush.bf16.msra.mxu0 %v2521
    %4000 = vmatpush.bf16.msra.mxu0 %v2513
    %4001 = vmatpush.bf16.msra.mxu0 %v2505
    %4002 = vmatmul.bf16.gmra.mxu0 %v236
    %v4003 = vpop.f32.mrf.mxu0
    %v4004 = vadd.f32 %v3991, %v4003
    %v4005 = vpop.f32.mrf.mxu0
    %4006 = vdwg.mxu0
    %4007 = vmatpush.bf16.msra.mxu0 %v2625
    %4008 = vmatpush.bf16.msra.mxu0 %v2617
    %4009 = vmatpush.bf16.msra.mxu0 %v2609
    %4010 = vmatpush.bf16.msra.mxu0 %v2601
    %4011 = vmatpush.bf16.msra.mxu0 %v2593
    %4012 = vmatpush.bf16.msra.mxu0 %v2585
    %4013 = vmatpush.bf16.msra.mxu0 %v2577
    %4014 = vmatpush.bf16.msra.mxu0 %v2569
    %4015 = vmatmul.bf16.gmra.mxu0 %v237
    %v4016 = vpop.f32.mrf.mxu0
    %v4017 = vadd.f32 %v4004, %v4016
    %v4018 = vpop.f32.mrf.mxu0
    %4019 = vdwg.mxu0
    %4020 = vmatpush.bf16.msra.mxu0 %v2689
    %4021 = vmatpush.bf16.msra.mxu0 %v2681
    %4022 = vmatpush.bf16.msra.mxu0 %v2673
    %4023 = vmatpush.bf16.msra.mxu0 %v2665
    %4024 = vmatpush.bf16.msra.mxu0 %v2657
    %4025 = vmatpush.bf16.msra.mxu0 %v2649
    %4026 = vmatpush.bf16.msra.mxu0 %v2641
    %4027 = vmatpush.bf16.msra.mxu0 %v2633
    %4028 = vmatmul.bf16.gmra.mxu0 %v238
    %v4029 = vpop.f32.mrf.mxu0
    %v4030 = vadd.f32 %v4017, %v4029
    %v4031 = vpop.f32.mrf.mxu0
    %4032 = vdwg.mxu0
    %4033 = vmatpush.bf16.msra.mxu0 %v2753
    %4034 = vmatpush.bf16.msra.mxu0 %v2745
    %4035 = vmatpush.bf16.msra.mxu0 %v2737
    %4036 = vmatpush.bf16.msra.mxu0 %v2729
    %4037 = vmatpush.bf16.msra.mxu0 %v2721
    %4038 = vmatpush.bf16.msra.mxu0 %v2713
    %4039 = vmatpush.bf16.msra.mxu0 %v2705
    %4040 = vmatpush.bf16.msra.mxu0 %v2697
    %4041 = vmatmul.bf16.gmra.mxu0 %v239
    %v4042 = vpop.f32.mrf.mxu0
    %v4043 = vadd.f32 %v4030, %v4042
    %v4044 = vpop.f32.mrf.mxu0
    %4045 = vdwg.mxu0
    %4046 = vmatpush.bf16.msra.mxu0 %v2817
    %4047 = vmatpush.bf16.msra.mxu0 %v2809
    %4048 = vmatpush.bf16.msra.mxu0 %v2801
    %4049 = vmatpush.bf16.msra.mxu0 %v2793
    %4050 = vmatpush.bf16.msra.mxu0 %v2785
    %4051 = vmatpush.bf16.msra.mxu0 %v2777
    %4052 = vmatpush.bf16.msra.mxu0 %v2769
    %4053 = vmatpush.bf16.msra.mxu0 %v2761
    %4054 = vmatmul.bf16.gmra.mxu0 %v240
    %v4055 = vpop.f32.mrf.mxu0
    %v4056 = vadd.f32 %v4043, %v4055
    %v4057 = vpop.f32.mrf.mxu0
    %4058 = vdwg.mxu0
    %4059 = vmatpush.bf16.msra.mxu0 %v2370
    %4060 = vmatpush.bf16.msra.mxu0 %v2362
    %4061 = vmatpush.bf16.msra.mxu0 %v2354
    %4062 = vmatpush.bf16.msra.mxu0 %v2346
    %4063 = vmatpush.bf16.msra.mxu0 %v2338
    %4064 = vmatpush.bf16.msra.mxu0 %v2330
    %4065 = vmatpush.bf16.msra.mxu0 %v2322
    %4066 = vmatpush.bf16.msra.mxu0 %v2314
    %4067 = vmatmul.bf16.gmra.mxu0 %v233
    %v4068 = vpop.f32.mrf.mxu0
    %v4069 = vadd.f32 %v762, %v4068
    %v4070 = vpop.f32.mrf.mxu0
    %4071 = vdwg.mxu0
    %4072 = vmatpush.bf16.msra.mxu0 %v2434
    %4073 = vmatpush.bf16.msra.mxu0 %v2426
    %4074 = vmatpush.bf16.msra.mxu0 %v2418
    %4075 = vmatpush.bf16.msra.mxu0 %v2410
    %4076 = vmatpush.bf16.msra.mxu0 %v2402
    %4077 = vmatpush.bf16.msra.mxu0 %v2394
    %4078 = vmatpush.bf16.msra.mxu0 %v2386
    %4079 = vmatpush.bf16.msra.mxu0 %v2378
    %4080 = vmatmul.bf16.gmra.mxu0 %v234
    %v4081 = vpop.f32.mrf.mxu0
    %v4082 = vadd.f32 %v4069, %v4081
    %v4083 = vpop.f32.mrf.mxu0
    %4084 = vdwg.mxu0
    %4085 = vmatpush.bf16.msra.mxu0 %v2498
    %4086 = vmatpush.bf16.msra.mxu0 %v2490
    %4087 = vmatpush.bf16.msra.mxu0 %v2482
    %4088 = vmatpush.bf16.msra.mxu0 %v2474
    %4089 = vmatpush.bf16.msra.mxu0 %v2466
    %4090 = vmatpush.bf16.msra.mxu0 %v2458
    %4091 = vmatpush.bf16.msra.mxu0 %v2450
    %4092 = vmatpush.bf16.msra.mxu0 %v2442
    %4093 = vmatmul.bf16.gmra.mxu0 %v235
    %v4094 = vpop.f32.mrf.mxu0
    %v4095 = vadd.f32 %v4082, %v4094
    %v4096 = vpop.f32.mrf.mxu0
    %4097 = vdwg.mxu0
    %4098 = vmatpush.bf16.msra.mxu0 %v2562
    %4099 = vmatpush.bf16.msra.mxu0 %v2554
    %4100 = vmatpush.bf16.msra.mxu0 %v2546
    %4101 = vmatpush.bf16.msra.mxu0 %v2538
    %4102 = vmatpush.bf16.msra.mxu0 %v2530
    %4103 = vmatpush.bf16.msra.mxu0 %v2522
    %4104 = vmatpush.bf16.msra.mxu0 %v2514
    %4105 = vmatpush.bf16.msra.mxu0 %v2506
    %4106 = vmatmul.bf16.gmra.mxu0 %v236
    %v4107 = vpop.f32.mrf.mxu0
    %v4108 = vadd.f32 %v4095, %v4107
    %v4109 = vpop.f32.mrf.mxu0
    %4110 = vdwg.mxu0
    %4111 = vmatpush.bf16.msra.mxu0 %v2626
    %4112 = vmatpush.bf16.msra.mxu0 %v2618
    %4113 = vmatpush.bf16.msra.mxu0 %v2610
    %4114 = vmatpush.bf16.msra.mxu0 %v2602
    %4115 = vmatpush.bf16.msra.mxu0 %v2594
    %4116 = vmatpush.bf16.msra.mxu0 %v2586
    %4117 = vmatpush.bf16.msra.mxu0 %v2578
    %4118 = vmatpush.bf16.msra.mxu0 %v2570
    %4119 = vmatmul.bf16.gmra.mxu0 %v237
    %v4120 = vpop.f32.mrf.mxu0
    %v4121 = vadd.f32 %v4108, %v4120
    %v4122 = vpop.f32.mrf.mxu0
    %4123 = vdwg.mxu0
    %4124 = vmatpush.bf16.msra.mxu0 %v2690
    %4125 = vmatpush.bf16.msra.mxu0 %v2682
    %4126 = vmatpush.bf16.msra.mxu0 %v2674
    %4127 = vmatpush.bf16.msra.mxu0 %v2666
    %4128 = vmatpush.bf16.msra.mxu0 %v2658
    %4129 = vmatpush.bf16.msra.mxu0 %v2650
    %4130 = vmatpush.bf16.msra.mxu0 %v2642
    %4131 = vmatpush.bf16.msra.mxu0 %v2634
    %4132 = vmatmul.bf16.gmra.mxu0 %v238
    %v4133 = vpop.f32.mrf.mxu0
    %v4134 = vadd.f32 %v4121, %v4133
    %v4135 = vpop.f32.mrf.mxu0
    %4136 = vdwg.mxu0
    %4137 = vmatpush.bf16.msra.mxu0 %v2754
    %4138 = vmatpush.bf16.msra.mxu0 %v2746
    %4139 = vmatpush.bf16.msra.mxu0 %v2738
    %4140 = vmatpush.bf16.msra.mxu0 %v2730
    %4141 = vmatpush.bf16.msra.mxu0 %v2722
    %4142 = vmatpush.bf16.msra.mxu0 %v2714
    %4143 = vmatpush.bf16.msra.mxu0 %v2706
    %4144 = vmatpush.bf16.msra.mxu0 %v2698
    %4145 = vmatmul.bf16.gmra.mxu0 %v239
    %v4146 = vpop.f32.mrf.mxu0
    %v4147 = vadd.f32 %v4134, %v4146
    %v4148 = vpop.f32.mrf.mxu0
    %4149 = vdwg.mxu0
    %4150 = vmatpush.bf16.msra.mxu0 %v2818
    %4151 = vmatpush.bf16.msra.mxu0 %v2810
    %4152 = vmatpush.bf16.msra.mxu0 %v2802
    %4153 = vmatpush.bf16.msra.mxu0 %v2794
    %4154 = vmatpush.bf16.msra.mxu0 %v2786
    %4155 = vmatpush.bf16.msra.mxu0 %v2778
    %4156 = vmatpush.bf16.msra.mxu0 %v2770
    %4157 = vmatpush.bf16.msra.mxu0 %v2762
    %4158 = vmatmul.bf16.gmra.mxu0 %v240
    %v4159 = vpop.f32.mrf.mxu0
    %v4160 = vadd.f32 %v4147, %v4159
    %v4161 = vpop.f32.mrf.mxu0
    %4162 = vdwg.mxu0
    %v4163 = vmax.f32 %v3432, 0.0
    %v4164 = vmax.f32 %v3536, 0.0
    %v4165 = vmax.f32 %v3640, 0.0
    %v4166 = vmax.f32 %v3744, 0.0
    %v4167 = vmax.f32 %v3848, 0.0
    %v4168 = vmax.f32 %v3952, 0.0
    %v4169 = vmax.f32 %v4056, 0.0
    %v4170 = vmax.f32 %v4160, 0.0
    %v4171 = vpack.c.bf16 %v4163, %v4163
    %v4172 = vpack.c.bf16 %v4164, %v4164
    %v4173 = vpack.c.bf16 %v4165, %v4165
    %v4174 = vpack.c.bf16 %v4166, %v4166
    %v4175 = vpack.c.bf16 %v4167, %v4167
    %v4176 = vpack.c.bf16 %v4168, %v4168
    %v4177 = vpack.c.bf16 %v4169, %v4169
    %v4178 = vpack.c.bf16 %v4170, %v4170
    %v4179 = vld [vmem:[#allocation10] sm:$0xff]
    %v4180 = vld [vmem:[#allocation10 + $0x8] sm:$0xff]
    %v4181 = vld [vmem:[#allocation10 + $0x10] sm:$0xff]
    %v4182 = vld [vmem:[#allocation10 + $0x18] sm:$0xf]
    %v4183 = vld [vmem:[#allocation10 + $0x1c] sm:$0xff]
    %v4184 = vld [vmem:[#allocation10 + $0x24] sm:$0xff]
    %v4185 = vld [vmem:[#allocation10 + $0x2c] sm:$0xff]
    %v4186 = vld [vmem:[#allocation10 + $0x34] sm:$0xf]
    %v4187 = vld [vmem:[#allocation10 + $0x38] sm:$0xff]
    %v4188 = vld [vmem:[#allocation10 + $0x40] sm:$0xff]
    %v4189 = vld [vmem:[#allocation10 + $0x48] sm:$0xff]
    %v4190 = vld [vmem:[#allocation10 + $0x50] sm:$0xf]
    %v4191 = vld [vmem:[#allocation10 + $0x54] sm:$0xff]
    %v4192 = vld [vmem:[#allocation10 + $0x5c] sm:$0xff]
    %v4193 = vld [vmem:[#allocation10 + $0x64] sm:$0xff]
    %v4194 = vld [vmem:[#allocation10 + $0x6c] sm:$0xf]
    %v4195 = vld [vmem:[#allocation10 + $0x70] sm:$0xff]
    %v4196 = vld [vmem:[#allocation10 + $0x78] sm:$0xff]
    %v4197 = vld [vmem:[#allocation10 + $0x80] sm:$0xff]
    %v4198 = vld [vmem:[#allocation10 + $0x88] sm:$0xf]
    %v4199 = vld [vmem:[#allocation10 + $0x8c] sm:$0xff]
    %v4200 = vld [vmem:[#allocation10 + $0x94] sm:$0xff]
    %v4201 = vld [vmem:[#allocation10 + $0x9c] sm:$0xff]
    %v4202 = vld [vmem:[#allocation10 + $0xa4] sm:$0xf]
    %v4203 = vld [vmem:[#allocation10 + $0xa8] sm:$0xff]
    %v4204 = vld [vmem:[#allocation10 + $0xb0] sm:$0xff]
    %v4205 = vld [vmem:[#allocation10 + $0xb8] sm:$0xff]
    %v4206 = vld [vmem:[#allocation10 + $0xc0] sm:$0xf]
    %v4207 = vld [vmem:[#allocation10 + $0xc4] sm:$0xff]
    %v4208 = vld [vmem:[#allocation10 + $0xcc] sm:$0xff]
    %v4209 = vld [vmem:[#allocation10 + $0xd4] sm:$0xff]
    %v4210 = vld [vmem:[#allocation10 + $0xdc] sm:$0xf]
    %v4211 = vld [vmem:[#allocation10 + $0xe0] sm:$0xff]
    %v4212 = vld [vmem:[#allocation10 + $0xe8] sm:$0xff]
    %v4213 = vld [vmem:[#allocation10 + $0xf0] sm:$0xff]
    %v4214 = vld [vmem:[#allocation10 + $0xf8] sm:$0xf]
    %v4215 = vld [vmem:[#allocation10 + $0xfc] sm:$0xff]
    %v4216 = vld [vmem:[#allocation10 + $0x104] sm:$0xff]
    %v4217 = vld [vmem:[#allocation10 + $0x10c] sm:$0xff]
    %v4218 = vld [vmem:[#allocation10 + $0x114] sm:$0xf]
    %v4219 = vld [vmem:[#allocation10 + $0x118] sm:$0xff]
    %v4220 = vld [vmem:[#allocation10 + $0x120] sm:$0xff]
    %v4221 = vld [vmem:[#allocation10 + $0x128] sm:$0xff]
    %v4222 = vld [vmem:[#allocation10 + $0x130] sm:$0xf]
    %v4223 = vld [vmem:[#allocation10 + $0x134] sm:$0xff]
    %v4224 = vld [vmem:[#allocation10 + $0x13c] sm:$0xff]
    %v4225 = vld [vmem:[#allocation10 + $0x144] sm:$0xff]
    %v4226 = vld [vmem:[#allocation10 + $0x14c] sm:$0xf]
    %v4227 = vld [vmem:[#allocation10 + $0x150] sm:$0xff]
    %v4228 = vld [vmem:[#allocation10 + $0x158] sm:$0xff]
    %v4229 = vld [vmem:[#allocation10 + $0x160] sm:$0xff]
    %v4230 = vld [vmem:[#allocation10 + $0x168] sm:$0xf]
    %v4231 = vld [vmem:[#allocation10 + $0x16c] sm:$0xff]
    %v4232 = vld [vmem:[#allocation10 + $0x174] sm:$0xff]
    %v4233 = vld [vmem:[#allocation10 + $0x17c] sm:$0xff]
    %v4234 = vld [vmem:[#allocation10 + $0x184] sm:$0xf]
    %v4235 = vld [vmem:[#allocation10 + $0x188] sm:$0xff]
    %v4236 = vld [vmem:[#allocation10 + $0x190] sm:$0xff]
    %v4237 = vld [vmem:[#allocation10 + $0x198] sm:$0xff]
    %v4238 = vld [vmem:[#allocation10 + $0x1a0] sm:$0xf]
    %v4239 = vld [vmem:[#allocation10 + $0x1a4] sm:$0xff]
    %v4240 = vld [vmem:[#allocation10 + $0x1ac] sm:$0xff]
    %v4241 = vld [vmem:[#allocation10 + $0x1b4] sm:$0xff]
    %v4242 = vld [vmem:[#allocation10 + $0x1bc] sm:$0xf]
    %v4243 = vld [vmem:[#allocation10 + $0x1c0] sm:$0xff]
    %v4244 = vld [vmem:[#allocation10 + $0x1c8] sm:$0xff]
    %v4245 = vld [vmem:[#allocation10 + $0x1d0] sm:$0xff]
    %v4246 = vld [vmem:[#allocation10 + $0x1d8] sm:$0xf]
    %v4247 = vld [vmem:[#allocation10 + $0x1dc] sm:$0xff]
    %v4248 = vld [vmem:[#allocation10 + $0x1e4] sm:$0xff]
    %v4249 = vld [vmem:[#allocation10 + $0x1ec] sm:$0xff]
    %v4250 = vld [vmem:[#allocation10 + $0x1f4] sm:$0xf]
    %v4251 = vld [vmem:[#allocation10 + $0x1f8] sm:$0xff]
    %v4252 = vld [vmem:[#allocation10 + $0x200] sm:$0xff]
    %v4253 = vld [vmem:[#allocation10 + $0x208] sm:$0xff]
    %v4254 = vld [vmem:[#allocation10 + $0x210] sm:$0xf]
    %v4255 = vld [vmem:[#allocation10 + $0x214] sm:$0xff]
    %v4256 = vld [vmem:[#allocation10 + $0x21c] sm:$0xff]
    %v4257 = vld [vmem:[#allocation10 + $0x224] sm:$0xff]
    %v4258 = vld [vmem:[#allocation10 + $0x22c] sm:$0xf]
    %v4259 = vld [vmem:[#allocation10 + $0x230] sm:$0xff]
    %v4260 = vld [vmem:[#allocation10 + $0x238] sm:$0xff]
    %v4261 = vld [vmem:[#allocation10 + $0x240] sm:$0xff]
    %v4262 = vld [vmem:[#allocation10 + $0x248] sm:$0xf]
    %v4263 = vld [vmem:[#allocation10 + $0x24c] sm:$0xff]
    %v4264 = vld [vmem:[#allocation10 + $0x254] sm:$0xff]
    %v4265 = vld [vmem:[#allocation10 + $0x25c] sm:$0xff]
    %v4266 = vld [vmem:[#allocation10 + $0x264] sm:$0xf]
    %v4267 = vld [vmem:[#allocation10 + $0x268] sm:$0xff]
    %v4268 = vld [vmem:[#allocation10 + $0x270] sm:$0xff]
    %v4269 = vld [vmem:[#allocation10 + $0x278] sm:$0xff]
    %v4270 = vld [vmem:[#allocation10 + $0x280] sm:$0xf]
    %v4271 = vld [vmem:[#allocation10 + $0x284] sm:$0xff]
    %v4272 = vld [vmem:[#allocation10 + $0x28c] sm:$0xff]
    %v4273 = vld [vmem:[#allocation10 + $0x294] sm:$0xff]
    %v4274 = vld [vmem:[#allocation10 + $0x29c] sm:$0xf]
    %v4275 = vld [vmem:[#allocation10 + $0x2a0] sm:$0xff]
    %v4276 = vld [vmem:[#allocation10 + $0x2a8] sm:$0xff]
    %v4277 = vld [vmem:[#allocation10 + $0x2b0] sm:$0xff]
    %v4278 = vld [vmem:[#allocation10 + $0x2b8] sm:$0xf]
    %v4279 = vld [vmem:[#allocation10 + $0x2bc] sm:$0xff]
    %v4280 = vld [vmem:[#allocation10 + $0x2c4] sm:$0xff]
    %v4281 = vld [vmem:[#allocation10 + $0x2cc] sm:$0xff]
    %v4282 = vld [vmem:[#allocation10 + $0x2d4] sm:$0xf]
    %v4283 = vld [vmem:[#allocation10 + $0x2d8] sm:$0xff]
    %v4284 = vld [vmem:[#allocation10 + $0x2e0] sm:$0xff]
    %v4285 = vld [vmem:[#allocation10 + $0x2e8] sm:$0xff]
    %v4286 = vld [vmem:[#allocation10 + $0x2f0] sm:$0xf]
    %v4287 = vld [vmem:[#allocation10 + $0x2f4] sm:$0xff]
    %v4288 = vld [vmem:[#allocation10 + $0x2fc] sm:$0xff]
    %v4289 = vld [vmem:[#allocation10 + $0x304] sm:$0xff]
    %v4290 = vld [vmem:[#allocation10 + $0x30c] sm:$0xf]
    %v4291 = vld [vmem:[#allocation10 + $0x310] sm:$0xff]
    %v4292 = vld [vmem:[#allocation10 + $0x318] sm:$0xff]
    %v4293 = vld [vmem:[#allocation10 + $0x320] sm:$0xff]
    %v4294 = vld [vmem:[#allocation10 + $0x328] sm:$0xf]
    %v4295 = vld [vmem:[#allocation10 + $0x32c] sm:$0xff]
    %v4296 = vld [vmem:[#allocation10 + $0x334] sm:$0xff]
    %v4297 = vld [vmem:[#allocation10 + $0x33c] sm:$0xff]
    %v4298 = vld [vmem:[#allocation10 + $0x344] sm:$0xf]
    %v4299 = vld [vmem:[#allocation10 + $0x348] sm:$0xff]
    %v4300 = vld [vmem:[#allocation10 + $0x350] sm:$0xff]
    %v4301 = vld [vmem:[#allocation10 + $0x358] sm:$0xff]
    %v4302 = vld [vmem:[#allocation10 + $0x360] sm:$0xf]
    %v4303 = vld [vmem:[#allocation10 + $0x364] sm:$0xff]
    %v4304 = vld [vmem:[#allocation10 + $0x36c] sm:$0xff]
    %v4305 = vld [vmem:[#allocation10 + $0x374] sm:$0xff]
    %v4306 = vld [vmem:[#allocation10 + $0x37c] sm:$0xf]
    %v4307 = vld [vmem:[#allocation10 + $0x380] sm:$0xff]
    %v4308 = vld [vmem:[#allocation10 + $0x388] sm:$0xff]
    %v4309 = vld [vmem:[#allocation10 + $0x390] sm:$0xff]
    %v4310 = vld [vmem:[#allocation10 + $0x398] sm:$0xf]
    %v4311 = vld [vmem:[#allocation10 + $0x39c] sm:$0xff]
    %v4312 = vld [vmem:[#allocation10 + $0x3a4] sm:$0xff]
    %v4313 = vld [vmem:[#allocation10 + $0x3ac] sm:$0xff]
    %v4314 = vld [vmem:[#allocation10 + $0x3b4] sm:$0xf]
    %v4315 = vld [vmem:[#allocation10 + $0x3b8] sm:$0xff]
    %v4316 = vld [vmem:[#allocation10 + $0x3c0] sm:$0xff]
    %v4317 = vld [vmem:[#allocation10 + $0x3c8] sm:$0xff]
    %v4318 = vld [vmem:[#allocation10 + $0x3d0] sm:$0xf]
    %v4319 = vld [vmem:[#allocation10 + $0x3d4] sm:$0xff]
    %v4320 = vld [vmem:[#allocation10 + $0x3dc] sm:$0xff]
    %v4321 = vld [vmem:[#allocation10 + $0x3e4] sm:$0xff]
    %v4322 = vld [vmem:[#allocation10 + $0x3ec] sm:$0xf]
    %v4323 = vld [vmem:[#allocation10 + $0x3f0] sm:$0xff]
    %v4324 = vld [vmem:[#allocation10 + $0x3f8] sm:$0xff]
    %v4325 = vld [vmem:[#allocation10 + $0x400] sm:$0xff]
    %v4326 = vld [vmem:[#allocation10 + $0x408] sm:$0xf]
    %v4327 = vld [vmem:[#allocation10 + $0x40c] sm:$0xff]
    %v4328 = vld [vmem:[#allocation10 + $0x414] sm:$0xff]
    %v4329 = vld [vmem:[#allocation10 + $0x41c] sm:$0xff]
    %v4330 = vld [vmem:[#allocation10 + $0x424] sm:$0xf]
    %v4331 = vld [vmem:[#allocation10 + $0x428] sm:$0xff]
    %v4332 = vld [vmem:[#allocation10 + $0x430] sm:$0xff]
    %v4333 = vld [vmem:[#allocation10 + $0x438] sm:$0xff]
    %v4334 = vld [vmem:[#allocation10 + $0x440] sm:$0xf]
    %v4335 = vld [vmem:[#allocation10 + $0x444] sm:$0xff]
    %v4336 = vld [vmem:[#allocation10 + $0x44c] sm:$0xff]
    %v4337 = vld [vmem:[#allocation10 + $0x454] sm:$0xff]
    %v4338 = vld [vmem:[#allocation10 + $0x45c] sm:$0xf]
    %v4339 = vld [vmem:[#allocation10 + $0x460] sm:$0xff]
    %v4340 = vld [vmem:[#allocation10 + $0x468] sm:$0xff]
    %v4341 = vld [vmem:[#allocation10 + $0x470] sm:$0xff]
    %v4342 = vld [vmem:[#allocation10 + $0x478] sm:$0xf]
    %v4343 = vld [vmem:[#allocation10 + $0x47c] sm:$0xff]
    %v4344 = vld [vmem:[#allocation10 + $0x484] sm:$0xff]
    %v4345 = vld [vmem:[#allocation10 + $0x48c] sm:$0xff]
    %v4346 = vld [vmem:[#allocation10 + $0x494] sm:$0xf]
    %v4347 = vld [vmem:[#allocation10 + $0x498] sm:$0xff]
    %v4348 = vld [vmem:[#allocation10 + $0x4a0] sm:$0xff]
    %v4349 = vld [vmem:[#allocation10 + $0x4a8] sm:$0xff]
    %v4350 = vld [vmem:[#allocation10 + $0x4b0] sm:$0xf]
    %v4351 = vld [vmem:[#allocation10 + $0x4b4] sm:$0xff]
    %v4352 = vld [vmem:[#allocation10 + $0x4bc] sm:$0xff]
    %v4353 = vld [vmem:[#allocation10 + $0x4c4] sm:$0xff]
    %v4354 = vld [vmem:[#allocation10 + $0x4cc] sm:$0xf]
    %v4355 = vld [vmem:[#allocation10 + $0x4d0] sm:$0xff]
    %v4356 = vld [vmem:[#allocation10 + $0x4d8] sm:$0xff]
    %v4357 = vld [vmem:[#allocation10 + $0x4e0] sm:$0xff]
    %v4358 = vld [vmem:[#allocation10 + $0x4e8] sm:$0xf]
    %v4359 = vld [vmem:[#allocation10 + $0x4ec] sm:$0xff]
    %v4360 = vld [vmem:[#allocation10 + $0x4f4] sm:$0xff]
    %v4361 = vld [vmem:[#allocation10 + $0x4fc] sm:$0xff]
    %v4362 = vld [vmem:[#allocation10 + $0x504] sm:$0xf]
    %v4363 = vld [vmem:[#allocation10 + $0x508] sm:$0xff]
    %v4364 = vld [vmem:[#allocation10 + $0x510] sm:$0xff]
    %v4365 = vld [vmem:[#allocation10 + $0x518] sm:$0xff]
    %v4366 = vld [vmem:[#allocation10 + $0x520] sm:$0xf]
    %v4367 = vld [vmem:[#allocation10 + $0x524] sm:$0xff]
    %v4368 = vld [vmem:[#allocation10 + $0x52c] sm:$0xff]
    %v4369 = vld [vmem:[#allocation10 + $0x534] sm:$0xff]
    %v4370 = vld [vmem:[#allocation10 + $0x53c] sm:$0xf]
    %v4371 = vld [vmem:[#allocation10 + $0x540] sm:$0xff]
    %v4372 = vld [vmem:[#allocation10 + $0x548] sm:$0xff]
    %v4373 = vld [vmem:[#allocation10 + $0x550] sm:$0xff]
    %v4374 = vld [vmem:[#allocation10 + $0x558] sm:$0xf]
    %v4375 = vld [vmem:[#allocation10 + $0x55c] sm:$0xff]
    %v4376 = vld [vmem:[#allocation10 + $0x564] sm:$0xff]
    %v4377 = vld [vmem:[#allocation10 + $0x56c] sm:$0xff]
    %v4378 = vld [vmem:[#allocation10 + $0x574] sm:$0xf]
    %v4379 = vld [vmem:[#allocation10 + $0x578] sm:$0xff]
    %v4380 = vld [vmem:[#allocation10 + $0x580] sm:$0xff]
    %v4381 = vld [vmem:[#allocation10 + $0x588] sm:$0xff]
    %v4382 = vld [vmem:[#allocation10 + $0x590] sm:$0xf]
    %v4383 = vld [vmem:[#allocation10 + $0x594] sm:$0xff]
    %v4384 = vld [vmem:[#allocation10 + $0x59c] sm:$0xff]
    %v4385 = vld [vmem:[#allocation10 + $0x5a4] sm:$0xff]
    %v4386 = vld [vmem:[#allocation10 + $0x5ac] sm:$0xf]
    %v4387 = vld [vmem:[#allocation10 + $0x5b0] sm:$0xff]
    %v4388 = vld [vmem:[#allocation10 + $0x5b8] sm:$0xff]
    %v4389 = vld [vmem:[#allocation10 + $0x5c0] sm:$0xff]
    %v4390 = vld [vmem:[#allocation10 + $0x5c8] sm:$0xf]
    %v4391 = vld [vmem:[#allocation10 + $0x5cc] sm:$0xff]
    %v4392 = vld [vmem:[#allocation10 + $0x5d4] sm:$0xff]
    %v4393 = vld [vmem:[#allocation10 + $0x5dc] sm:$0xff]
    %v4394 = vld [vmem:[#allocation10 + $0x5e4] sm:$0xf]
    %v4395 = vld [vmem:[#allocation10 + $0x5e8] sm:$0xff]
    %v4396 = vld [vmem:[#allocation10 + $0x5f0] sm:$0xff]
    %v4397 = vld [vmem:[#allocation10 + $0x5f8] sm:$0xff]
    %v4398 = vld [vmem:[#allocation10 + $0x600] sm:$0xf]
    %v4399 = vld [vmem:[#allocation10 + $0x604] sm:$0xff]
    %v4400 = vld [vmem:[#allocation10 + $0x60c] sm:$0xff]
    %v4401 = vld [vmem:[#allocation10 + $0x614] sm:$0xff]
    %v4402 = vld [vmem:[#allocation10 + $0x61c] sm:$0xf]
    %v4403 = vld [vmem:[#allocation10 + $0x620] sm:$0xff]
    %v4404 = vld [vmem:[#allocation10 + $0x628] sm:$0xff]
    %v4405 = vld [vmem:[#allocation10 + $0x630] sm:$0xff]
    %v4406 = vld [vmem:[#allocation10 + $0x638] sm:$0xf]
    %v4407 = vld [vmem:[#allocation10 + $0x63c] sm:$0xff]
    %v4408 = vld [vmem:[#allocation10 + $0x644] sm:$0xff]
    %v4409 = vld [vmem:[#allocation10 + $0x64c] sm:$0xff]
    %v4410 = vld [vmem:[#allocation10 + $0x654] sm:$0xf]
    %v4411 = vld [vmem:[#allocation10 + $0x658] sm:$0xff]
    %v4412 = vld [vmem:[#allocation10 + $0x660] sm:$0xff]
    %v4413 = vld [vmem:[#allocation10 + $0x668] sm:$0xff]
    %v4414 = vld [vmem:[#allocation10 + $0x670] sm:$0xf]
    %v4415 = vld [vmem:[#allocation10 + $0x674] sm:$0xff]
    %v4416 = vld [vmem:[#allocation10 + $0x67c] sm:$0xff]
    %v4417 = vld [vmem:[#allocation10 + $0x684] sm:$0xff]
    %v4418 = vld [vmem:[#allocation10 + $0x68c] sm:$0xf]
    %v4419 = vld [vmem:[#allocation10 + $0x690] sm:$0xff]
    %v4420 = vld [vmem:[#allocation10 + $0x698] sm:$0xff]
    %v4421 = vld [vmem:[#allocation10 + $0x6a0] sm:$0xff]
    %v4422 = vld [vmem:[#allocation10 + $0x6a8] sm:$0xf]
    %v4423 = vld [vmem:[#allocation10 + $0x6ac] sm:$0xff]
    %v4424 = vld [vmem:[#allocation10 + $0x6b4] sm:$0xff]
    %v4425 = vld [vmem:[#allocation10 + $0x6bc] sm:$0xff]
    %v4426 = vld [vmem:[#allocation10 + $0x6c4] sm:$0xf]
    %v4427 = vld [vmem:[#allocation10 + $0x6c8] sm:$0xff]
    %v4428 = vld [vmem:[#allocation10 + $0x6d0] sm:$0xff]
    %v4429 = vld [vmem:[#allocation10 + $0x6d8] sm:$0xff]
    %v4430 = vld [vmem:[#allocation10 + $0x6e0] sm:$0xf]
    %v4431 = vld [vmem:[#allocation10 + $0x6e4] sm:$0xff]
    %v4432 = vld [vmem:[#allocation10 + $0x6ec] sm:$0xff]
    %v4433 = vld [vmem:[#allocation10 + $0x6f4] sm:$0xff]
    %v4434 = vld [vmem:[#allocation10 + $0x6fc] sm:$0xf]
    %v4435 = vld [vmem:[#allocation10 + $0x700] sm:$0xff]
    %v4436 = vld [vmem:[#allocation10 + $0x708] sm:$0xff]
    %v4437 = vld [vmem:[#allocation10 + $0x710] sm:$0xff]
    %v4438 = vld [vmem:[#allocation10 + $0x718] sm:$0xf]
    %v4439 = vld [vmem:[#allocation10 + $0x71c] sm:$0xff]
    %v4440 = vld [vmem:[#allocation10 + $0x724] sm:$0xff]
    %v4441 = vld [vmem:[#allocation10 + $0x72c] sm:$0xff]
    %v4442 = vld [vmem:[#allocation10 + $0x734] sm:$0xf]
    %v4443 = vld [vmem:[#allocation10 + $0x738] sm:$0xff]
    %v4444 = vld [vmem:[#allocation10 + $0x740] sm:$0xff]
    %v4445 = vld [vmem:[#allocation10 + $0x748] sm:$0xff]
    %v4446 = vld [vmem:[#allocation10 + $0x750] sm:$0xf]
    %v4447 = vld [vmem:[#allocation10 + $0x754] sm:$0xff]
    %v4448 = vld [vmem:[#allocation10 + $0x75c] sm:$0xff]
    %v4449 = vld [vmem:[#allocation10 + $0x764] sm:$0xff]
    %v4450 = vld [vmem:[#allocation10 + $0x76c] sm:$0xf]
    %v4451 = vld [vmem:[#allocation10 + $0x770] sm:$0xff]
    %v4452 = vld [vmem:[#allocation10 + $0x778] sm:$0xff]
    %v4453 = vld [vmem:[#allocation10 + $0x780] sm:$0xff]
    %v4454 = vld [vmem:[#allocation10 + $0x788] sm:$0xf]
    %v4455 = vld [vmem:[#allocation10 + $0x78c] sm:$0xff]
    %v4456 = vld [vmem:[#allocation10 + $0x794] sm:$0xff]
    %v4457 = vld [vmem:[#allocation10 + $0x79c] sm:$0xff]
    %v4458 = vld [vmem:[#allocation10 + $0x7a4] sm:$0xf]
    %v4459 = vld [vmem:[#allocation10 + $0x7a8] sm:$0xff]
    %v4460 = vld [vmem:[#allocation10 + $0x7b0] sm:$0xff]
    %v4461 = vld [vmem:[#allocation10 + $0x7b8] sm:$0xff]
    %v4462 = vld [vmem:[#allocation10 + $0x7c0] sm:$0xf]
    %v4463 = vld [vmem:[#allocation10 + $0x7c4] sm:$0xff]
    %v4464 = vld [vmem:[#allocation10 + $0x7cc] sm:$0xff]
    %v4465 = vld [vmem:[#allocation10 + $0x7d4] sm:$0xff]
    %v4466 = vld [vmem:[#allocation10 + $0x7dc] sm:$0xf]
    %v4467 = vld [vmem:[#allocation10 + $0x7e0] sm:$0xff]
    %v4468 = vld [vmem:[#allocation10 + $0x7e8] sm:$0xff]
    %v4469 = vld [vmem:[#allocation10 + $0x7f0] sm:$0xff]
    %v4470 = vld [vmem:[#allocation10 + $0x7f8] sm:$0xf]
    %v4471 = vld [vmem:[#allocation10 + $0x7fc] sm:$0xff]
    %v4472 = vld [vmem:[#allocation10 + $0x804] sm:$0xff]
    %v4473 = vld [vmem:[#allocation10 + $0x80c] sm:$0xff]
    %v4474 = vld [vmem:[#allocation10 + $0x814] sm:$0xf]
    %v4475 = vld [vmem:[#allocation10 + $0x818] sm:$0xff]
    %v4476 = vld [vmem:[#allocation10 + $0x820] sm:$0xff]
    %v4477 = vld [vmem:[#allocation10 + $0x828] sm:$0xff]
    %v4478 = vld [vmem:[#allocation10 + $0x830] sm:$0xf]
    %v4479 = vld [vmem:[#allocation10 + $0x834] sm:$0xff]
    %v4480 = vld [vmem:[#allocation10 + $0x83c] sm:$0xff]
    %v4481 = vld [vmem:[#allocation10 + $0x844] sm:$0xff]
    %v4482 = vld [vmem:[#allocation10 + $0x84c] sm:$0xf]
    %v4483 = vld [vmem:[#allocation10 + $0x850] sm:$0xff]
    %v4484 = vld [vmem:[#allocation10 + $0x858] sm:$0xff]
    %v4485 = vld [vmem:[#allocation10 + $0x860] sm:$0xff]
    %v4486 = vld [vmem:[#allocation10 + $0x868] sm:$0xf]
    %v4487 = vld [vmem:[#allocation10 + $0x86c] sm:$0xff]
    %v4488 = vld [vmem:[#allocation10 + $0x874] sm:$0xff]
    %v4489 = vld [vmem:[#allocation10 + $0x87c] sm:$0xff]
    %v4490 = vld [vmem:[#allocation10 + $0x884] sm:$0xf]
    %v4491 = vld [vmem:[#allocation10 + $0x888] sm:$0xff]
    %v4492 = vld [vmem:[#allocation10 + $0x890] sm:$0xff]
    %v4493 = vld [vmem:[#allocation10 + $0x898] sm:$0xff]
    %v4494 = vld [vmem:[#allocation10 + $0x8a0] sm:$0xf]
    %v4495 = vld [vmem:[#allocation10 + $0x8a4] sm:$0xff]
    %v4496 = vld [vmem:[#allocation10 + $0x8ac] sm:$0xff]
    %v4497 = vld [vmem:[#allocation10 + $0x8b4] sm:$0xff]
    %v4498 = vld [vmem:[#allocation10 + $0x8bc] sm:$0xf]
    %v4499 = vld [vmem:[#allocation10 + $0x8c0] sm:$0xff]
    %v4500 = vld [vmem:[#allocation10 + $0x8c8] sm:$0xff]
    %v4501 = vld [vmem:[#allocation10 + $0x8d0] sm:$0xff]
    %v4502 = vld [vmem:[#allocation10 + $0x8d8] sm:$0xf]
    %v4503 = vld [vmem:[#allocation10 + $0x8dc] sm:$0xff]
    %v4504 = vld [vmem:[#allocation10 + $0x8e4] sm:$0xff]
    %v4505 = vld [vmem:[#allocation10 + $0x8ec] sm:$0xff]
    %v4506 = vld [vmem:[#allocation10 + $0x8f4] sm:$0xf]
    %v4507 = vld [vmem:[#allocation10 + $0x8f8] sm:$0xff]
    %v4508 = vld [vmem:[#allocation10 + $0x900] sm:$0xff]
    %v4509 = vld [vmem:[#allocation10 + $0x908] sm:$0xff]
    %v4510 = vld [vmem:[#allocation10 + $0x910] sm:$0xf]
    %v4511 = vld [vmem:[#allocation10 + $0x914] sm:$0xff]
    %v4512 = vld [vmem:[#allocation10 + $0x91c] sm:$0xff]
    %v4513 = vld [vmem:[#allocation10 + $0x924] sm:$0xff]
    %v4514 = vld [vmem:[#allocation10 + $0x92c] sm:$0xf]
    %v4515 = vld [vmem:[#allocation10 + $0x930] sm:$0xff]
    %v4516 = vld [vmem:[#allocation10 + $0x938] sm:$0xff]
    %v4517 = vld [vmem:[#allocation10 + $0x940] sm:$0xff]
    %v4518 = vld [vmem:[#allocation10 + $0x948] sm:$0xf]
    %v4519 = vld [vmem:[#allocation10 + $0x94c] sm:$0xff]
    %v4520 = vld [vmem:[#allocation10 + $0x954] sm:$0xff]
    %v4521 = vld [vmem:[#allocation10 + $0x95c] sm:$0xff]
    %v4522 = vld [vmem:[#allocation10 + $0x964] sm:$0xf]
    %v4523 = vld [vmem:[#allocation10 + $0x968] sm:$0xff]
    %v4524 = vld [vmem:[#allocation10 + $0x970] sm:$0xff]
    %v4525 = vld [vmem:[#allocation10 + $0x978] sm:$0xff]
    %v4526 = vld [vmem:[#allocation10 + $0x980] sm:$0xf]
    %v4527 = vld [vmem:[#allocation10 + $0x984] sm:$0xff]
    %v4528 = vld [vmem:[#allocation10 + $0x98c] sm:$0xff]
    %v4529 = vld [vmem:[#allocation10 + $0x994] sm:$0xff]
    %v4530 = vld [vmem:[#allocation10 + $0x99c] sm:$0xf]
    %v4531 = vld [vmem:[#allocation10 + $0x9a0] sm:$0xff]
    %v4532 = vld [vmem:[#allocation10 + $0x9a8] sm:$0xff]
    %v4533 = vld [vmem:[#allocation10 + $0x9b0] sm:$0xff]
    %v4534 = vld [vmem:[#allocation10 + $0x9b8] sm:$0xf]
    %v4535 = vld [vmem:[#allocation10 + $0x9bc] sm:$0xff]
    %v4536 = vld [vmem:[#allocation10 + $0x9c4] sm:$0xff]
    %v4537 = vld [vmem:[#allocation10 + $0x9cc] sm:$0xff]
    %v4538 = vld [vmem:[#allocation10 + $0x9d4] sm:$0xf]
    %v4539 = vld [vmem:[#allocation10 + $0x9d8] sm:$0xff]
    %v4540 = vld [vmem:[#allocation10 + $0x9e0] sm:$0xff]
    %v4541 = vld [vmem:[#allocation10 + $0x9e8] sm:$0xff]
    %v4542 = vld [vmem:[#allocation10 + $0x9f0] sm:$0xf]
    %v4543 = vld [vmem:[#allocation10 + $0x9f4] sm:$0xff]
    %v4544 = vld [vmem:[#allocation10 + $0x9fc] sm:$0xff]
    %v4545 = vld [vmem:[#allocation10 + $0xa04] sm:$0xff]
    %v4546 = vld [vmem:[#allocation10 + $0xa0c] sm:$0xf]
    %v4547 = vld [vmem:[#allocation10 + $0xa10] sm:$0xff]
    %v4548 = vld [vmem:[#allocation10 + $0xa18] sm:$0xff]
    %v4549 = vld [vmem:[#allocation10 + $0xa20] sm:$0xff]
    %v4550 = vld [vmem:[#allocation10 + $0xa28] sm:$0xf]
    %v4551 = vld [vmem:[#allocation10 + $0xa2c] sm:$0xff]
    %v4552 = vld [vmem:[#allocation10 + $0xa34] sm:$0xff]
    %v4553 = vld [vmem:[#allocation10 + $0xa3c] sm:$0xff]
    %v4554 = vld [vmem:[#allocation10 + $0xa44] sm:$0xf]
    %v4555 = vld [vmem:[#allocation10 + $0xa48] sm:$0xff]
    %v4556 = vld [vmem:[#allocation10 + $0xa50] sm:$0xff]
    %v4557 = vld [vmem:[#allocation10 + $0xa58] sm:$0xff]
    %v4558 = vld [vmem:[#allocation10 + $0xa60] sm:$0xf]
    %v4559 = vld [vmem:[#allocation10 + $0xa64] sm:$0xff]
    %v4560 = vld [vmem:[#allocation10 + $0xa6c] sm:$0xff]
    %v4561 = vld [vmem:[#allocation10 + $0xa74] sm:$0xff]
    %v4562 = vld [vmem:[#allocation10 + $0xa7c] sm:$0xf]
    %v4563 = vld [vmem:[#allocation10 + $0xa80] sm:$0xff]
    %v4564 = vld [vmem:[#allocation10 + $0xa88] sm:$0xff]
    %v4565 = vld [vmem:[#allocation10 + $0xa90] sm:$0xff]
    %v4566 = vld [vmem:[#allocation10 + $0xa98] sm:$0xf]
    %v4567 = vld [vmem:[#allocation10 + $0xa9c] sm:$0xff]
    %v4568 = vld [vmem:[#allocation10 + $0xaa4] sm:$0xff]
    %v4569 = vld [vmem:[#allocation10 + $0xaac] sm:$0xff]
    %v4570 = vld [vmem:[#allocation10 + $0xab4] sm:$0xf]
    %v4571 = vld [vmem:[#allocation10 + $0xab8] sm:$0xff]
    %v4572 = vld [vmem:[#allocation10 + $0xac0] sm:$0xff]
    %v4573 = vld [vmem:[#allocation10 + $0xac8] sm:$0xff]
    %v4574 = vld [vmem:[#allocation10 + $0xad0] sm:$0xf]
    %v4575 = vld [vmem:[#allocation10 + $0xad4] sm:$0xff]
    %v4576 = vld [vmem:[#allocation10 + $0xadc] sm:$0xff]
    %v4577 = vld [vmem:[#allocation10 + $0xae4] sm:$0xff]
    %v4578 = vld [vmem:[#allocation10 + $0xaec] sm:$0xf]
    %v4579 = vld [vmem:[#allocation10 + $0xaf0] sm:$0xff]
    %v4580 = vld [vmem:[#allocation10 + $0xaf8] sm:$0xff]
    %v4581 = vld [vmem:[#allocation10 + $0xb00] sm:$0xff]
    %v4582 = vld [vmem:[#allocation10 + $0xb08] sm:$0xf]
    %v4583 = vld [vmem:[#allocation10 + $0xb0c] sm:$0xff]
    %v4584 = vld [vmem:[#allocation10 + $0xb14] sm:$0xff]
    %v4585 = vld [vmem:[#allocation10 + $0xb1c] sm:$0xff]
    %v4586 = vld [vmem:[#allocation10 + $0xb24] sm:$0xf]
    %v4587 = vld [vmem:[#allocation10 + $0xb28] sm:$0xff]
    %v4588 = vld [vmem:[#allocation10 + $0xb30] sm:$0xff]
    %v4589 = vld [vmem:[#allocation10 + $0xb38] sm:$0xff]
    %v4590 = vld [vmem:[#allocation10 + $0xb40] sm:$0xf]
    %v4591 = vld [vmem:[#allocation10 + $0xb44] sm:$0xff]
    %v4592 = vld [vmem:[#allocation10 + $0xb4c] sm:$0xff]
    %v4593 = vld [vmem:[#allocation10 + $0xb54] sm:$0xff]
    %v4594 = vld [vmem:[#allocation10 + $0xb5c] sm:$0xf]
    %v4595 = vld [vmem:[#allocation10 + $0xb60] sm:$0xff]
    %v4596 = vld [vmem:[#allocation10 + $0xb68] sm:$0xff]
    %v4597 = vld [vmem:[#allocation10 + $0xb70] sm:$0xff]
    %v4598 = vld [vmem:[#allocation10 + $0xb78] sm:$0xf]
    %v4599 = vld [vmem:[#allocation10 + $0xb7c] sm:$0xff]
    %v4600 = vld [vmem:[#allocation10 + $0xb84] sm:$0xff]
    %v4601 = vld [vmem:[#allocation10 + $0xb8c] sm:$0xff]
    %v4602 = vld [vmem:[#allocation10 + $0xb94] sm:$0xf]
    %v4603 = vld [vmem:[#allocation10 + $0xb98] sm:$0xff]
    %v4604 = vld [vmem:[#allocation10 + $0xba0] sm:$0xff]
    %v4605 = vld [vmem:[#allocation10 + $0xba8] sm:$0xff]
    %v4606 = vld [vmem:[#allocation10 + $0xbb0] sm:$0xf]
    %v4607 = vld [vmem:[#allocation10 + $0xbb4] sm:$0xff]
    %v4608 = vld [vmem:[#allocation10 + $0xbbc] sm:$0xff]
    %v4609 = vld [vmem:[#allocation10 + $0xbc4] sm:$0xff]
    %v4610 = vld [vmem:[#allocation10 + $0xbcc] sm:$0xf]
    %v4611 = vld [vmem:[#allocation10 + $0xbd0] sm:$0xff]
    %v4612 = vld [vmem:[#allocation10 + $0xbd8] sm:$0xff]
    %v4613 = vld [vmem:[#allocation10 + $0xbe0] sm:$0xff]
    %v4614 = vld [vmem:[#allocation10 + $0xbe8] sm:$0xf]
    %v4615 = vld [vmem:[#allocation10 + $0xbec] sm:$0xff]
    %v4616 = vld [vmem:[#allocation10 + $0xbf4] sm:$0xff]
    %v4617 = vld [vmem:[#allocation10 + $0xbfc] sm:$0xff]
    %v4618 = vld [vmem:[#allocation10 + $0xc04] sm:$0xf]
    %v4619 = vld [vmem:[#allocation10 + $0xc08] sm:$0xff]
    %v4620 = vld [vmem:[#allocation10 + $0xc10] sm:$0xff]
    %v4621 = vld [vmem:[#allocation10 + $0xc18] sm:$0xff]
    %v4622 = vld [vmem:[#allocation10 + $0xc20] sm:$0xf]
    %v4623 = vld [vmem:[#allocation10 + $0xc24] sm:$0xff]
    %v4624 = vld [vmem:[#allocation10 + $0xc2c] sm:$0xff]
    %v4625 = vld [vmem:[#allocation10 + $0xc34] sm:$0xff]
    %v4626 = vld [vmem:[#allocation10 + $0xc3c] sm:$0xf]
    %v4627 = vld [vmem:[#allocation10 + $0xc40] sm:$0xff]
    %v4628 = vld [vmem:[#allocation10 + $0xc48] sm:$0xff]
    %v4629 = vld [vmem:[#allocation10 + $0xc50] sm:$0xff]
    %v4630 = vld [vmem:[#allocation10 + $0xc58] sm:$0xf]
    %v4631 = vld [vmem:[#allocation10 + $0xc5c] sm:$0xff]
    %v4632 = vld [vmem:[#allocation10 + $0xc64] sm:$0xff]
    %v4633 = vld [vmem:[#allocation10 + $0xc6c] sm:$0xff]
    %v4634 = vld [vmem:[#allocation10 + $0xc74] sm:$0xf]
    %v4635 = vld [vmem:[#allocation10 + $0xc78] sm:$0xff]
    %v4636 = vld [vmem:[#allocation10 + $0xc80] sm:$0xff]
    %v4637 = vld [vmem:[#allocation10 + $0xc88] sm:$0xff]
    %v4638 = vld [vmem:[#allocation10 + $0xc90] sm:$0xf]
    %v4639 = vld [vmem:[#allocation10 + $0xc94] sm:$0xff]
    %v4640 = vld [vmem:[#allocation10 + $0xc9c] sm:$0xff]
    %v4641 = vld [vmem:[#allocation10 + $0xca4] sm:$0xff]
    %v4642 = vld [vmem:[#allocation10 + $0xcac] sm:$0xf]
    %v4643 = vld [vmem:[#allocation10 + $0xcb0] sm:$0xff]
    %v4644 = vld [vmem:[#allocation10 + $0xcb8] sm:$0xff]
    %v4645 = vld [vmem:[#allocation10 + $0xcc0] sm:$0xff]
    %v4646 = vld [vmem:[#allocation10 + $0xcc8] sm:$0xf]
    %v4647 = vld [vmem:[#allocation10 + $0xccc] sm:$0xff]
    %v4648 = vld [vmem:[#allocation10 + $0xcd4] sm:$0xff]
    %v4649 = vld [vmem:[#allocation10 + $0xcdc] sm:$0xff]
    %v4650 = vld [vmem:[#allocation10 + $0xce4] sm:$0xf]
    %v4651 = vld [vmem:[#allocation10 + $0xce8] sm:$0xff]
    %v4652 = vld [vmem:[#allocation10 + $0xcf0] sm:$0xff]
    %v4653 = vld [vmem:[#allocation10 + $0xcf8] sm:$0xff]
    %v4654 = vld [vmem:[#allocation10 + $0xd00] sm:$0xf]
    %v4655 = vld [vmem:[#allocation10 + $0xd04] sm:$0xff]
    %v4656 = vld [vmem:[#allocation10 + $0xd0c] sm:$0xff]
    %v4657 = vld [vmem:[#allocation10 + $0xd14] sm:$0xff]
    %v4658 = vld [vmem:[#allocation10 + $0xd1c] sm:$0xf]
    %v4659 = vld [vmem:[#allocation10 + $0xd20] sm:$0xff]
    %v4660 = vld [vmem:[#allocation10 + $0xd28] sm:$0xff]
    %v4661 = vld [vmem:[#allocation10 + $0xd30] sm:$0xff]
    %v4662 = vld [vmem:[#allocation10 + $0xd38] sm:$0xf]
    %v4663 = vld [vmem:[#allocation10 + $0xd3c] sm:$0xff]
    %v4664 = vld [vmem:[#allocation10 + $0xd44] sm:$0xff]
    %v4665 = vld [vmem:[#allocation10 + $0xd4c] sm:$0xff]
    %v4666 = vld [vmem:[#allocation10 + $0xd54] sm:$0xf]
    %v4667 = vld [vmem:[#allocation10 + $0xd58] sm:$0xff]
    %v4668 = vld [vmem:[#allocation10 + $0xd60] sm:$0xff]
    %v4669 = vld [vmem:[#allocation10 + $0xd68] sm:$0xff]
    %v4670 = vld [vmem:[#allocation10 + $0xd70] sm:$0xf]
    %v4671 = vld [vmem:[#allocation10 + $0xd74] sm:$0xff]
    %v4672 = vld [vmem:[#allocation10 + $0xd7c] sm:$0xff]
    %v4673 = vld [vmem:[#allocation10 + $0xd84] sm:$0xff]
    %v4674 = vld [vmem:[#allocation10 + $0xd8c] sm:$0xf]
    %v4675 = vld [vmem:[#allocation10 + $0xd90] sm:$0xff]
    %v4676 = vld [vmem:[#allocation10 + $0xd98] sm:$0xff]
    %v4677 = vld [vmem:[#allocation10 + $0xda0] sm:$0xff]
    %v4678 = vld [vmem:[#allocation10 + $0xda8] sm:$0xf]
    %v4679 = vld [vmem:[#allocation10 + $0xdac] sm:$0xff]
    %v4680 = vld [vmem:[#allocation10 + $0xdb4] sm:$0xff]
    %v4681 = vld [vmem:[#allocation10 + $0xdbc] sm:$0xff]
    %v4682 = vld [vmem:[#allocation10 + $0xdc4] sm:$0xf]
    %v4683 = vld [vmem:[#allocation10 + $0xdc8] sm:$0xff]
    %v4684 = vld [vmem:[#allocation10 + $0xdd0] sm:$0xff]
    %v4685 = vld [vmem:[#allocation10 + $0xdd8] sm:$0xff]
    %v4686 = vld [vmem:[#allocation10 + $0xde0] sm:$0xf]
    %v4687 = vld [vmem:[#allocation10 + $0xde4] sm:$0xff]
    %v4688 = vld [vmem:[#allocation10 + $0xdec] sm:$0xff]
    %v4689 = vld [vmem:[#allocation10 + $0xdf4] sm:$0xff]
    %v4690 = vld [vmem:[#allocation10 + $0xdfc] sm:$0xf]
    %v4691 = vld [vmem:[#allocation11] sm:$0xff]
    %v4693 = vperm.slane %v4691, 0
    %v4694 = vperm.slane %v4691, 1
    %v4695 = vperm.slane %v4691, 2
    %v4696 = vperm.slane %v4691, 3
    %v4697 = vperm.slane %v4691, 4
    %v4698 = vperm.slane %v4691, 5
    %v4699 = vperm.slane %v4691, 6
    %v5219 = vunpack.c.l.b16 %v4179
    %v5220 = vunpack.c.h.b16 %v4179
    %v5221 = vunpack.c.l.b16 %v4180
    %v5222 = vunpack.c.h.b16 %v4180
    %v5223 = vunpack.c.l.b16 %v4181
    %v5224 = vunpack.c.h.b16 %v4181
    %v5225 = vunpack.c.l.b16 %v4182
    %v5226 = vunpack.c.l.b16 %v4183
    %v5227 = vunpack.c.h.b16 %v4183
    %v5228 = vunpack.c.l.b16 %v4184
    %v5229 = vunpack.c.h.b16 %v4184
    %v5230 = vunpack.c.l.b16 %v4185
    %v5231 = vunpack.c.h.b16 %v4185
    %v5232 = vunpack.c.l.b16 %v4186
    %v5233 = vunpack.c.l.b16 %v4187
    %v5234 = vunpack.c.h.b16 %v4187
    %v5235 = vunpack.c.l.b16 %v4188
    %v5236 = vunpack.c.h.b16 %v4188
    %v5237 = vunpack.c.l.b16 %v4189
    %v5238 = vunpack.c.h.b16 %v4189
    %v5239 = vunpack.c.l.b16 %v4190
    %v5240 = vunpack.c.l.b16 %v4191
    %v5241 = vunpack.c.h.b16 %v4191
    %v5242 = vunpack.c.l.b16 %v4192
    %v5243 = vunpack.c.h.b16 %v4192
    %v5244 = vunpack.c.l.b16 %v4193
    %v5245 = vunpack.c.h.b16 %v4193
    %v5246 = vunpack.c.l.b16 %v4194
    %v5247 = vunpack.c.l.b16 %v4195
    %v5248 = vunpack.c.h.b16 %v4195
    %v5249 = vunpack.c.l.b16 %v4196
    %v5250 = vunpack.c.h.b16 %v4196
    %v5251 = vunpack.c.l.b16 %v4197
    %v5252 = vunpack.c.h.b16 %v4197
    %v5253 = vunpack.c.l.b16 %v4198
    %v5254 = vunpack.c.l.b16 %v4199
    %v5255 = vunpack.c.h.b16 %v4199
    %v5256 = vunpack.c.l.b16 %v4200
    %v5257 = vunpack.c.h.b16 %v4200
    %v5258 = vunpack.c.l.b16 %v4201
    %v5259 = vunpack.c.h.b16 %v4201
    %v5260 = vunpack.c.l.b16 %v4202
    %v5261 = vunpack.c.l.b16 %v4203
    %v5262 = vunpack.c.h.b16 %v4203
    %v5263 = vunpack.c.l.b16 %v4204
    %v5264 = vunpack.c.h.b16 %v4204
    %v5265 = vunpack.c.l.b16 %v4205
    %v5266 = vunpack.c.h.b16 %v4205
    %v5267 = vunpack.c.l.b16 %v4206
    %v5268 = vunpack.c.l.b16 %v4207
    %v5269 = vunpack.c.h.b16 %v4207
    %v5270 = vunpack.c.l.b16 %v4208
    %v5271 = vunpack.c.h.b16 %v4208
    %v5272 = vunpack.c.l.b16 %v4209
    %v5273 = vunpack.c.h.b16 %v4209
    %v5274 = vunpack.c.l.b16 %v4210
    %v5275 = vunpack.c.l.b16 %v4211
    %v5276 = vunpack.c.h.b16 %v4211
    %v5277 = vunpack.c.l.b16 %v4212
    %v5278 = vunpack.c.h.b16 %v4212
    %v5279 = vunpack.c.l.b16 %v4213
    %v5280 = vunpack.c.h.b16 %v4213
    %v5281 = vunpack.c.l.b16 %v4214
    %v5282 = vunpack.c.l.b16 %v4215
    %v5283 = vunpack.c.h.b16 %v4215
    %v5284 = vunpack.c.l.b16 %v4216
    %v5285 = vunpack.c.h.b16 %v4216
    %v5286 = vunpack.c.l.b16 %v4217
    %v5287 = vunpack.c.h.b16 %v4217
    %v5288 = vunpack.c.l.b16 %v4218
    %v5289 = vunpack.c.l.b16 %v4219
    %v5290 = vunpack.c.h.b16 %v4219
    %v5291 = vunpack.c.l.b16 %v4220
    %v5292 = vunpack.c.h.b16 %v4220
    %v5293 = vunpack.c.l.b16 %v4221
    %v5294 = vunpack.c.h.b16 %v4221
    %v5295 = vunpack.c.l.b16 %v4222
    %v5296 = vunpack.c.l.b16 %v4223
    %v5297 = vunpack.c.h.b16 %v4223
    %v5298 = vunpack.c.l.b16 %v4224
    %v5299 = vunpack.c.h.b16 %v4224
    %v5300 = vunpack.c.l.b16 %v4225
    %v5301 = vunpack.c.h.b16 %v4225
    %v5302 = vunpack.c.l.b16 %v4226
    %v5303 = vunpack.c.l.b16 %v4227
    %v5304 = vunpack.c.h.b16 %v4227
    %v5305 = vunpack.c.l.b16 %v4228
    %v5306 = vunpack.c.h.b16 %v4228
    %v5307 = vunpack.c.l.b16 %v4229
    %v5308 = vunpack.c.h.b16 %v4229
    %v5309 = vunpack.c.l.b16 %v4230
    %v5310 = vunpack.c.l.b16 %v4231
    %v5311 = vunpack.c.h.b16 %v4231
    %v5312 = vunpack.c.l.b16 %v4232
    %v5313 = vunpack.c.h.b16 %v4232
    %v5314 = vunpack.c.l.b16 %v4233
    %v5315 = vunpack.c.h.b16 %v4233
    %v5316 = vunpack.c.l.b16 %v4234
    %v5317 = vunpack.c.l.b16 %v4235
    %v5318 = vunpack.c.h.b16 %v4235
    %v5319 = vunpack.c.l.b16 %v4236
    %v5320 = vunpack.c.h.b16 %v4236
    %v5321 = vunpack.c.l.b16 %v4237
    %v5322 = vunpack.c.h.b16 %v4237
    %v5323 = vunpack.c.l.b16 %v4238
    %v5324 = vunpack.c.l.b16 %v4239
    %v5325 = vunpack.c.h.b16 %v4239
    %v5326 = vunpack.c.l.b16 %v4240
    %v5327 = vunpack.c.h.b16 %v4240
    %v5328 = vunpack.c.l.b16 %v4241
    %v5329 = vunpack.c.h.b16 %v4241
    %v5330 = vunpack.c.l.b16 %v4242
    %v5331 = vunpack.c.l.b16 %v4243
    %v5332 = vunpack.c.h.b16 %v4243
    %v5333 = vunpack.c.l.b16 %v4244
    %v5334 = vunpack.c.h.b16 %v4244
    %v5335 = vunpack.c.l.b16 %v4245
    %v5336 = vunpack.c.h.b16 %v4245
    %v5337 = vunpack.c.l.b16 %v4246
    %v5338 = vunpack.c.l.b16 %v4247
    %v5339 = vunpack.c.h.b16 %v4247
    %v5340 = vunpack.c.l.b16 %v4248
    %v5341 = vunpack.c.h.b16 %v4248
    %v5342 = vunpack.c.l.b16 %v4249
    %v5343 = vunpack.c.h.b16 %v4249
    %v5344 = vunpack.c.l.b16 %v4250
    %v5345 = vunpack.c.l.b16 %v4251
    %v5346 = vunpack.c.h.b16 %v4251
    %v5347 = vunpack.c.l.b16 %v4252
    %v5348 = vunpack.c.h.b16 %v4252
    %v5349 = vunpack.c.l.b16 %v4253
    %v5350 = vunpack.c.h.b16 %v4253
    %v5351 = vunpack.c.l.b16 %v4254
    %v5352 = vunpack.c.l.b16 %v4255
    %v5353 = vunpack.c.h.b16 %v4255
    %v5354 = vunpack.c.l.b16 %v4256
    %v5355 = vunpack.c.h.b16 %v4256
    %v5356 = vunpack.c.l.b16 %v4257
    %v5357 = vunpack.c.h.b16 %v4257
    %v5358 = vunpack.c.l.b16 %v4258
    %v5359 = vunpack.c.l.b16 %v4259
    %v5360 = vunpack.c.h.b16 %v4259
    %v5361 = vunpack.c.l.b16 %v4260
    %v5362 = vunpack.c.h.b16 %v4260
    %v5363 = vunpack.c.l.b16 %v4261
    %v5364 = vunpack.c.h.b16 %v4261
    %v5365 = vunpack.c.l.b16 %v4262
    %v5366 = vunpack.c.l.b16 %v4263
    %v5367 = vunpack.c.h.b16 %v4263
    %v5368 = vunpack.c.l.b16 %v4264
    %v5369 = vunpack.c.h.b16 %v4264
    %v5370 = vunpack.c.l.b16 %v4265
    %v5371 = vunpack.c.h.b16 %v4265
    %v5372 = vunpack.c.l.b16 %v4266
    %v5373 = vunpack.c.l.b16 %v4267
    %v5374 = vunpack.c.h.b16 %v4267
    %v5375 = vunpack.c.l.b16 %v4268
    %v5376 = vunpack.c.h.b16 %v4268
    %v5377 = vunpack.c.l.b16 %v4269
    %v5378 = vunpack.c.h.b16 %v4269
    %v5379 = vunpack.c.l.b16 %v4270
    %v5380 = vunpack.c.l.b16 %v4271
    %v5381 = vunpack.c.h.b16 %v4271
    %v5382 = vunpack.c.l.b16 %v4272
    %v5383 = vunpack.c.h.b16 %v4272
    %v5384 = vunpack.c.l.b16 %v4273
    %v5385 = vunpack.c.h.b16 %v4273
    %v5386 = vunpack.c.l.b16 %v4274
    %v5387 = vunpack.c.l.b16 %v4275
    %v5388 = vunpack.c.h.b16 %v4275
    %v5389 = vunpack.c.l.b16 %v4276
    %v5390 = vunpack.c.h.b16 %v4276
    %v5391 = vunpack.c.l.b16 %v4277
    %v5392 = vunpack.c.h.b16 %v4277
    %v5393 = vunpack.c.l.b16 %v4278
    %v5394 = vunpack.c.l.b16 %v4279
    %v5395 = vunpack.c.h.b16 %v4279
    %v5396 = vunpack.c.l.b16 %v4280
    %v5397 = vunpack.c.h.b16 %v4280
    %v5398 = vunpack.c.l.b16 %v4281
    %v5399 = vunpack.c.h.b16 %v4281
    %v5400 = vunpack.c.l.b16 %v4282
    %v5401 = vunpack.c.l.b16 %v4283
    %v5402 = vunpack.c.h.b16 %v4283
    %v5403 = vunpack.c.l.b16 %v4284
    %v5404 = vunpack.c.h.b16 %v4284
    %v5405 = vunpack.c.l.b16 %v4285
    %v5406 = vunpack.c.h.b16 %v4285
    %v5407 = vunpack.c.l.b16 %v4286
    %v5408 = vunpack.c.l.b16 %v4287
    %v5409 = vunpack.c.h.b16 %v4287
    %v5410 = vunpack.c.l.b16 %v4288
    %v5411 = vunpack.c.h.b16 %v4288
    %v5412 = vunpack.c.l.b16 %v4289
    %v5413 = vunpack.c.h.b16 %v4289
    %v5414 = vunpack.c.l.b16 %v4290
    %v5415 = vunpack.c.l.b16 %v4291
    %v5416 = vunpack.c.h.b16 %v4291
    %v5417 = vunpack.c.l.b16 %v4292
    %v5418 = vunpack.c.h.b16 %v4292
    %v5419 = vunpack.c.l.b16 %v4293
    %v5420 = vunpack.c.h.b16 %v4293
    %v5421 = vunpack.c.l.b16 %v4294
    %v5422 = vunpack.c.l.b16 %v4295
    %v5423 = vunpack.c.h.b16 %v4295
    %v5424 = vunpack.c.l.b16 %v4296
    %v5425 = vunpack.c.h.b16 %v4296
    %v5426 = vunpack.c.l.b16 %v4297
    %v5427 = vunpack.c.h.b16 %v4297
    %v5428 = vunpack.c.l.b16 %v4298
    %v5429 = vunpack.c.l.b16 %v4299
    %v5430 = vunpack.c.h.b16 %v4299
    %v5431 = vunpack.c.l.b16 %v4300
    %v5432 = vunpack.c.h.b16 %v4300
    %v5433 = vunpack.c.l.b16 %v4301
    %v5434 = vunpack.c.h.b16 %v4301
    %v5435 = vunpack.c.l.b16 %v4302
    %v5436 = vunpack.c.l.b16 %v4303
    %v5437 = vunpack.c.h.b16 %v4303
    %v5438 = vunpack.c.l.b16 %v4304
    %v5439 = vunpack.c.h.b16 %v4304
    %v5440 = vunpack.c.l.b16 %v4305
    %v5441 = vunpack.c.h.b16 %v4305
    %v5442 = vunpack.c.l.b16 %v4306
    %v5443 = vunpack.c.l.b16 %v4307
    %v5444 = vunpack.c.h.b16 %v4307
    %v5445 = vunpack.c.l.b16 %v4308
    %v5446 = vunpack.c.h.b16 %v4308
    %v5447 = vunpack.c.l.b16 %v4309
    %v5448 = vunpack.c.h.b16 %v4309
    %v5449 = vunpack.c.l.b16 %v4310
    %v5450 = vunpack.c.l.b16 %v4311
    %v5451 = vunpack.c.h.b16 %v4311
    %v5452 = vunpack.c.l.b16 %v4312
    %v5453 = vunpack.c.h.b16 %v4312
    %v5454 = vunpack.c.l.b16 %v4313
    %v5455 = vunpack.c.h.b16 %v4313
    %v5456 = vunpack.c.l.b16 %v4314
    %v5457 = vunpack.c.l.b16 %v4315
    %v5458 = vunpack.c.h.b16 %v4315
    %v5459 = vunpack.c.l.b16 %v4316
    %v5460 = vunpack.c.h.b16 %v4316
    %v5461 = vunpack.c.l.b16 %v4317
    %v5462 = vunpack.c.h.b16 %v4317
    %v5463 = vunpack.c.l.b16 %v4318
    %v5464 = vunpack.c.l.b16 %v4319
    %v5465 = vunpack.c.h.b16 %v4319
    %v5466 = vunpack.c.l.b16 %v4320
    %v5467 = vunpack.c.h.b16 %v4320
    %v5468 = vunpack.c.l.b16 %v4321
    %v5469 = vunpack.c.h.b16 %v4321
    %v5470 = vunpack.c.l.b16 %v4322
    %v5471 = vunpack.c.l.b16 %v4323
    %v5472 = vunpack.c.h.b16 %v4323
    %v5473 = vunpack.c.l.b16 %v4324
    %v5474 = vunpack.c.h.b16 %v4324
    %v5475 = vunpack.c.l.b16 %v4325
    %v5476 = vunpack.c.h.b16 %v4325
    %v5477 = vunpack.c.l.b16 %v4326
    %v5478 = vunpack.c.l.b16 %v4327
    %v5479 = vunpack.c.h.b16 %v4327
    %v5480 = vunpack.c.l.b16 %v4328
    %v5481 = vunpack.c.h.b16 %v4328
    %v5482 = vunpack.c.l.b16 %v4329
    %v5483 = vunpack.c.h.b16 %v4329
    %v5484 = vunpack.c.l.b16 %v4330
    %v5485 = vunpack.c.l.b16 %v4331
    %v5486 = vunpack.c.h.b16 %v4331
    %v5487 = vunpack.c.l.b16 %v4332
    %v5488 = vunpack.c.h.b16 %v4332
    %v5489 = vunpack.c.l.b16 %v4333
    %v5490 = vunpack.c.h.b16 %v4333
    %v5491 = vunpack.c.l.b16 %v4334
    %v5492 = vunpack.c.l.b16 %v4335
    %v5493 = vunpack.c.h.b16 %v4335
    %v5494 = vunpack.c.l.b16 %v4336
    %v5495 = vunpack.c.h.b16 %v4336
    %v5496 = vunpack.c.l.b16 %v4337
    %v5497 = vunpack.c.h.b16 %v4337
    %v5498 = vunpack.c.l.b16 %v4338
    %v5499 = vunpack.c.l.b16 %v4339
    %v5500 = vunpack.c.h.b16 %v4339
    %v5501 = vunpack.c.l.b16 %v4340
    %v5502 = vunpack.c.h.b16 %v4340
    %v5503 = vunpack.c.l.b16 %v4341
    %v5504 = vunpack.c.h.b16 %v4341
    %v5505 = vunpack.c.l.b16 %v4342
    %v5506 = vunpack.c.l.b16 %v4343
    %v5507 = vunpack.c.h.b16 %v4343
    %v5508 = vunpack.c.l.b16 %v4344
    %v5509 = vunpack.c.h.b16 %v4344
    %v5510 = vunpack.c.l.b16 %v4345
    %v5511 = vunpack.c.h.b16 %v4345
    %v5512 = vunpack.c.l.b16 %v4346
    %v5513 = vunpack.c.l.b16 %v4347
    %v5514 = vunpack.c.h.b16 %v4347
    %v5515 = vunpack.c.l.b16 %v4348
    %v5516 = vunpack.c.h.b16 %v4348
    %v5517 = vunpack.c.l.b16 %v4349
    %v5518 = vunpack.c.h.b16 %v4349
    %v5519 = vunpack.c.l.b16 %v4350
    %v5520 = vunpack.c.l.b16 %v4351
    %v5521 = vunpack.c.h.b16 %v4351
    %v5522 = vunpack.c.l.b16 %v4352
    %v5523 = vunpack.c.h.b16 %v4352
    %v5524 = vunpack.c.l.b16 %v4353
    %v5525 = vunpack.c.h.b16 %v4353
    %v5526 = vunpack.c.l.b16 %v4354
    %v5527 = vunpack.c.l.b16 %v4355
    %v5528 = vunpack.c.h.b16 %v4355
    %v5529 = vunpack.c.l.b16 %v4356
    %v5530 = vunpack.c.h.b16 %v4356
    %v5531 = vunpack.c.l.b16 %v4357
    %v5532 = vunpack.c.h.b16 %v4357
    %v5533 = vunpack.c.l.b16 %v4358
    %v5534 = vunpack.c.l.b16 %v4359
    %v5535 = vunpack.c.h.b16 %v4359
    %v5536 = vunpack.c.l.b16 %v4360
    %v5537 = vunpack.c.h.b16 %v4360
    %v5538 = vunpack.c.l.b16 %v4361
    %v5539 = vunpack.c.h.b16 %v4361
    %v5540 = vunpack.c.l.b16 %v4362
    %v5541 = vunpack.c.l.b16 %v4363
    %v5542 = vunpack.c.h.b16 %v4363
    %v5543 = vunpack.c.l.b16 %v4364
    %v5544 = vunpack.c.h.b16 %v4364
    %v5545 = vunpack.c.l.b16 %v4365
    %v5546 = vunpack.c.h.b16 %v4365
    %v5547 = vunpack.c.l.b16 %v4366
    %v5548 = vunpack.c.l.b16 %v4367
    %v5549 = vunpack.c.h.b16 %v4367
    %v5550 = vunpack.c.l.b16 %v4368
    %v5551 = vunpack.c.h.b16 %v4368
    %v5552 = vunpack.c.l.b16 %v4369
    %v5553 = vunpack.c.h.b16 %v4369
    %v5554 = vunpack.c.l.b16 %v4370
    %v5555 = vunpack.c.l.b16 %v4371
    %v5556 = vunpack.c.h.b16 %v4371
    %v5557 = vunpack.c.l.b16 %v4372
    %v5558 = vunpack.c.h.b16 %v4372
    %v5559 = vunpack.c.l.b16 %v4373
    %v5560 = vunpack.c.h.b16 %v4373
    %v5561 = vunpack.c.l.b16 %v4374
    %v5562 = vunpack.c.l.b16 %v4375
    %v5563 = vunpack.c.h.b16 %v4375
    %v5564 = vunpack.c.l.b16 %v4376
    %v5565 = vunpack.c.h.b16 %v4376
    %v5566 = vunpack.c.l.b16 %v4377
    %v5567 = vunpack.c.h.b16 %v4377
    %v5568 = vunpack.c.l.b16 %v4378
    %v5569 = vunpack.c.l.b16 %v4379
    %v5570 = vunpack.c.h.b16 %v4379
    %v5571 = vunpack.c.l.b16 %v4380
    %v5572 = vunpack.c.h.b16 %v4380
    %v5573 = vunpack.c.l.b16 %v4381
    %v5574 = vunpack.c.h.b16 %v4381
    %v5575 = vunpack.c.l.b16 %v4382
    %v5576 = vunpack.c.l.b16 %v4383
    %v5577 = vunpack.c.h.b16 %v4383
    %v5578 = vunpack.c.l.b16 %v4384
    %v5579 = vunpack.c.h.b16 %v4384
    %v5580 = vunpack.c.l.b16 %v4385
    %v5581 = vunpack.c.h.b16 %v4385
    %v5582 = vunpack.c.l.b16 %v4386
    %v5583 = vunpack.c.l.b16 %v4387
    %v5584 = vunpack.c.h.b16 %v4387
    %v5585 = vunpack.c.l.b16 %v4388
    %v5586 = vunpack.c.h.b16 %v4388
    %v5587 = vunpack.c.l.b16 %v4389
    %v5588 = vunpack.c.h.b16 %v4389
    %v5589 = vunpack.c.l.b16 %v4390
    %v5590 = vunpack.c.l.b16 %v4391
    %v5591 = vunpack.c.h.b16 %v4391
    %v5592 = vunpack.c.l.b16 %v4392
    %v5593 = vunpack.c.h.b16 %v4392
    %v5594 = vunpack.c.l.b16 %v4393
    %v5595 = vunpack.c.h.b16 %v4393
    %v5596 = vunpack.c.l.b16 %v4394
    %v5597 = vunpack.c.l.b16 %v4395
    %v5598 = vunpack.c.h.b16 %v4395
    %v5599 = vunpack.c.l.b16 %v4396
    %v5600 = vunpack.c.h.b16 %v4396
    %v5601 = vunpack.c.l.b16 %v4397
    %v5602 = vunpack.c.h.b16 %v4397
    %v5603 = vunpack.c.l.b16 %v4398
    %v5604 = vunpack.c.l.b16 %v4399
    %v5605 = vunpack.c.h.b16 %v4399
    %v5606 = vunpack.c.l.b16 %v4400
    %v5607 = vunpack.c.h.b16 %v4400
    %v5608 = vunpack.c.l.b16 %v4401
    %v5609 = vunpack.c.h.b16 %v4401
    %v5610 = vunpack.c.l.b16 %v4402
    %v5611 = vunpack.c.l.b16 %v4403
    %v5612 = vunpack.c.h.b16 %v4403
    %v5613 = vunpack.c.l.b16 %v4404
    %v5614 = vunpack.c.h.b16 %v4404
    %v5615 = vunpack.c.l.b16 %v4405
    %v5616 = vunpack.c.h.b16 %v4405
    %v5617 = vunpack.c.l.b16 %v4406
    %v5618 = vunpack.c.l.b16 %v4407
    %v5619 = vunpack.c.h.b16 %v4407
    %v5620 = vunpack.c.l.b16 %v4408
    %v5621 = vunpack.c.h.b16 %v4408
    %v5622 = vunpack.c.l.b16 %v4409
    %v5623 = vunpack.c.h.b16 %v4409
    %v5624 = vunpack.c.l.b16 %v4410
    %v5625 = vunpack.c.l.b16 %v4411
    %v5626 = vunpack.c.h.b16 %v4411
    %v5627 = vunpack.c.l.b16 %v4412
    %v5628 = vunpack.c.h.b16 %v4412
    %v5629 = vunpack.c.l.b16 %v4413
    %v5630 = vunpack.c.h.b16 %v4413
    %v5631 = vunpack.c.l.b16 %v4414
    %v5632 = vunpack.c.l.b16 %v4415
    %v5633 = vunpack.c.h.b16 %v4415
    %v5634 = vunpack.c.l.b16 %v4416
    %v5635 = vunpack.c.h.b16 %v4416
    %v5636 = vunpack.c.l.b16 %v4417
    %v5637 = vunpack.c.h.b16 %v4417
    %v5638 = vunpack.c.l.b16 %v4418
    %v5639 = vunpack.c.l.b16 %v4419
    %v5640 = vunpack.c.h.b16 %v4419
    %v5641 = vunpack.c.l.b16 %v4420
    %v5642 = vunpack.c.h.b16 %v4420
    %v5643 = vunpack.c.l.b16 %v4421
    %v5644 = vunpack.c.h.b16 %v4421
    %v5645 = vunpack.c.l.b16 %v4422
    %v5646 = vunpack.c.l.b16 %v4423
    %v5647 = vunpack.c.h.b16 %v4423
    %v5648 = vunpack.c.l.b16 %v4424
    %v5649 = vunpack.c.h.b16 %v4424
    %v5650 = vunpack.c.l.b16 %v4425
    %v5651 = vunpack.c.h.b16 %v4425
    %v5652 = vunpack.c.l.b16 %v4426
    %v5653 = vunpack.c.l.b16 %v4427
    %v5654 = vunpack.c.h.b16 %v4427
    %v5655 = vunpack.c.l.b16 %v4428
    %v5656 = vunpack.c.h.b16 %v4428
    %v5657 = vunpack.c.l.b16 %v4429
    %v5658 = vunpack.c.h.b16 %v4429
    %v5659 = vunpack.c.l.b16 %v4430
    %v5660 = vunpack.c.l.b16 %v4431
    %v5661 = vunpack.c.h.b16 %v4431
    %v5662 = vunpack.c.l.b16 %v4432
    %v5663 = vunpack.c.h.b16 %v4432
    %v5664 = vunpack.c.l.b16 %v4433
    %v5665 = vunpack.c.h.b16 %v4433
    %v5666 = vunpack.c.l.b16 %v4434
    %v5667 = vunpack.c.l.b16 %v4435
    %v5668 = vunpack.c.h.b16 %v4435
    %v5669 = vunpack.c.l.b16 %v4436
    %v5670 = vunpack.c.h.b16 %v4436
    %v5671 = vunpack.c.l.b16 %v4437
    %v5672 = vunpack.c.h.b16 %v4437
    %v5673 = vunpack.c.l.b16 %v4438
    %v5674 = vunpack.c.l.b16 %v4439
    %v5675 = vunpack.c.h.b16 %v4439
    %v5676 = vunpack.c.l.b16 %v4440
    %v5677 = vunpack.c.h.b16 %v4440
    %v5678 = vunpack.c.l.b16 %v4441
    %v5679 = vunpack.c.h.b16 %v4441
    %v5680 = vunpack.c.l.b16 %v4442
    %v5681 = vunpack.c.l.b16 %v4443
    %v5682 = vunpack.c.h.b16 %v4443
    %v5683 = vunpack.c.l.b16 %v4444
    %v5684 = vunpack.c.h.b16 %v4444
    %v5685 = vunpack.c.l.b16 %v4445
    %v5686 = vunpack.c.h.b16 %v4445
    %v5687 = vunpack.c.l.b16 %v4446
    %v5688 = vunpack.c.l.b16 %v4447
    %v5689 = vunpack.c.h.b16 %v4447
    %v5690 = vunpack.c.l.b16 %v4448
    %v5691 = vunpack.c.h.b16 %v4448
    %v5692 = vunpack.c.l.b16 %v4449
    %v5693 = vunpack.c.h.b16 %v4449
    %v5694 = vunpack.c.l.b16 %v4450
    %v5695 = vunpack.c.l.b16 %v4451
    %v5696 = vunpack.c.h.b16 %v4451
    %v5697 = vunpack.c.l.b16 %v4452
    %v5698 = vunpack.c.h.b16 %v4452
    %v5699 = vunpack.c.l.b16 %v4453
    %v5700 = vunpack.c.h.b16 %v4453
    %v5701 = vunpack.c.l.b16 %v4454
    %v5702 = vunpack.c.l.b16 %v4455
    %v5703 = vunpack.c.h.b16 %v4455
    %v5704 = vunpack.c.l.b16 %v4456
    %v5705 = vunpack.c.h.b16 %v4456
    %v5706 = vunpack.c.l.b16 %v4457
    %v5707 = vunpack.c.h.b16 %v4457
    %v5708 = vunpack.c.l.b16 %v4458
    %v5709 = vunpack.c.l.b16 %v4459
    %v5710 = vunpack.c.h.b16 %v4459
    %v5711 = vunpack.c.l.b16 %v4460
    %v5712 = vunpack.c.h.b16 %v4460
    %v5713 = vunpack.c.l.b16 %v4461
    %v5714 = vunpack.c.h.b16 %v4461
    %v5715 = vunpack.c.l.b16 %v4462
    %v5716 = vunpack.c.l.b16 %v4463
    %v5717 = vunpack.c.h.b16 %v4463
    %v5718 = vunpack.c.l.b16 %v4464
    %v5719 = vunpack.c.h.b16 %v4464
    %v5720 = vunpack.c.l.b16 %v4465
    %v5721 = vunpack.c.h.b16 %v4465
    %v5722 = vunpack.c.l.b16 %v4466
    %v5723 = vunpack.c.l.b16 %v4467
    %v5724 = vunpack.c.h.b16 %v4467
    %v5725 = vunpack.c.l.b16 %v4468
    %v5726 = vunpack.c.h.b16 %v4468
    %v5727 = vunpack.c.l.b16 %v4469
    %v5728 = vunpack.c.h.b16 %v4469
    %v5729 = vunpack.c.l.b16 %v4470
    %v5730 = vunpack.c.l.b16 %v4471
    %v5731 = vunpack.c.h.b16 %v4471
    %v5732 = vunpack.c.l.b16 %v4472
    %v5733 = vunpack.c.h.b16 %v4472
    %v5734 = vunpack.c.l.b16 %v4473
    %v5735 = vunpack.c.h.b16 %v4473
    %v5736 = vunpack.c.l.b16 %v4474
    %v5737 = vunpack.c.l.b16 %v4475
    %v5738 = vunpack.c.h.b16 %v4475
    %v5739 = vunpack.c.l.b16 %v4476
    %v5740 = vunpack.c.h.b16 %v4476
    %v5741 = vunpack.c.l.b16 %v4477
    %v5742 = vunpack.c.h.b16 %v4477
    %v5743 = vunpack.c.l.b16 %v4478
    %v5744 = vunpack.c.l.b16 %v4479
    %v5745 = vunpack.c.h.b16 %v4479
    %v5746 = vunpack.c.l.b16 %v4480
    %v5747 = vunpack.c.h.b16 %v4480
    %v5748 = vunpack.c.l.b16 %v4481
    %v5749 = vunpack.c.h.b16 %v4481
    %v5750 = vunpack.c.l.b16 %v4482
    %v5751 = vunpack.c.l.b16 %v4483
    %v5752 = vunpack.c.h.b16 %v4483
    %v5753 = vunpack.c.l.b16 %v4484
    %v5754 = vunpack.c.h.b16 %v4484
    %v5755 = vunpack.c.l.b16 %v4485
    %v5756 = vunpack.c.h.b16 %v4485
    %v5757 = vunpack.c.l.b16 %v4486
    %v5758 = vunpack.c.l.b16 %v4487
    %v5759 = vunpack.c.h.b16 %v4487
    %v5760 = vunpack.c.l.b16 %v4488
    %v5761 = vunpack.c.h.b16 %v4488
    %v5762 = vunpack.c.l.b16 %v4489
    %v5763 = vunpack.c.h.b16 %v4489
    %v5764 = vunpack.c.l.b16 %v4490
    %v5765 = vunpack.c.l.b16 %v4491
    %v5766 = vunpack.c.h.b16 %v4491
    %v5767 = vunpack.c.l.b16 %v4492
    %v5768 = vunpack.c.h.b16 %v4492
    %v5769 = vunpack.c.l.b16 %v4493
    %v5770 = vunpack.c.h.b16 %v4493
    %v5771 = vunpack.c.l.b16 %v4494
    %v5772 = vunpack.c.l.b16 %v4495
    %v5773 = vunpack.c.h.b16 %v4495
    %v5774 = vunpack.c.l.b16 %v4496
    %v5775 = vunpack.c.h.b16 %v4496
    %v5776 = vunpack.c.l.b16 %v4497
    %v5777 = vunpack.c.h.b16 %v4497
    %v5778 = vunpack.c.l.b16 %v4498
    %v5779 = vunpack.c.l.b16 %v4499
    %v5780 = vunpack.c.h.b16 %v4499
    %v5781 = vunpack.c.l.b16 %v4500
    %v5782 = vunpack.c.h.b16 %v4500
    %v5783 = vunpack.c.l.b16 %v4501
    %v5784 = vunpack.c.h.b16 %v4501
    %v5785 = vunpack.c.l.b16 %v4502
    %v5786 = vunpack.c.l.b16 %v4503
    %v5787 = vunpack.c.h.b16 %v4503
    %v5788 = vunpack.c.l.b16 %v4504
    %v5789 = vunpack.c.h.b16 %v4504
    %v5790 = vunpack.c.l.b16 %v4505
    %v5791 = vunpack.c.h.b16 %v4505
    %v5792 = vunpack.c.l.b16 %v4506
    %v5793 = vunpack.c.l.b16 %v4507
    %v5794 = vunpack.c.h.b16 %v4507
    %v5795 = vunpack.c.l.b16 %v4508
    %v5796 = vunpack.c.h.b16 %v4508
    %v5797 = vunpack.c.l.b16 %v4509
    %v5798 = vunpack.c.h.b16 %v4509
    %v5799 = vunpack.c.l.b16 %v4510
    %v5800 = vunpack.c.l.b16 %v4511
    %v5801 = vunpack.c.h.b16 %v4511
    %v5802 = vunpack.c.l.b16 %v4512
    %v5803 = vunpack.c.h.b16 %v4512
    %v5804 = vunpack.c.l.b16 %v4513
    %v5805 = vunpack.c.h.b16 %v4513
    %v5806 = vunpack.c.l.b16 %v4514
    %v5807 = vunpack.c.l.b16 %v4515
    %v5808 = vunpack.c.h.b16 %v4515
    %v5809 = vunpack.c.l.b16 %v4516
    %v5810 = vunpack.c.h.b16 %v4516
    %v5811 = vunpack.c.l.b16 %v4517
    %v5812 = vunpack.c.h.b16 %v4517
    %v5813 = vunpack.c.l.b16 %v4518
    %v5814 = vunpack.c.l.b16 %v4519
    %v5815 = vunpack.c.h.b16 %v4519
    %v5816 = vunpack.c.l.b16 %v4520
    %v5817 = vunpack.c.h.b16 %v4520
    %v5818 = vunpack.c.l.b16 %v4521
    %v5819 = vunpack.c.h.b16 %v4521
    %v5820 = vunpack.c.l.b16 %v4522
    %v5821 = vunpack.c.l.b16 %v4523
    %v5822 = vunpack.c.h.b16 %v4523
    %v5823 = vunpack.c.l.b16 %v4524
    %v5824 = vunpack.c.h.b16 %v4524
    %v5825 = vunpack.c.l.b16 %v4525
    %v5826 = vunpack.c.h.b16 %v4525
    %v5827 = vunpack.c.l.b16 %v4526
    %v5828 = vunpack.c.l.b16 %v4527
    %v5829 = vunpack.c.h.b16 %v4527
    %v5830 = vunpack.c.l.b16 %v4528
    %v5831 = vunpack.c.h.b16 %v4528
    %v5832 = vunpack.c.l.b16 %v4529
    %v5833 = vunpack.c.h.b16 %v4529
    %v5834 = vunpack.c.l.b16 %v4530
    %v5835 = vunpack.c.l.b16 %v4531
    %v5836 = vunpack.c.h.b16 %v4531
    %v5837 = vunpack.c.l.b16 %v4532
    %v5838 = vunpack.c.h.b16 %v4532
    %v5839 = vunpack.c.l.b16 %v4533
    %v5840 = vunpack.c.h.b16 %v4533
    %v5841 = vunpack.c.l.b16 %v4534
    %v5842 = vunpack.c.l.b16 %v4535
    %v5843 = vunpack.c.h.b16 %v4535
    %v5844 = vunpack.c.l.b16 %v4536
    %v5845 = vunpack.c.h.b16 %v4536
    %v5846 = vunpack.c.l.b16 %v4537
    %v5847 = vunpack.c.h.b16 %v4537
    %v5848 = vunpack.c.l.b16 %v4538
    %v5849 = vunpack.c.l.b16 %v4539
    %v5850 = vunpack.c.h.b16 %v4539
    %v5851 = vunpack.c.l.b16 %v4540
    %v5852 = vunpack.c.h.b16 %v4540
    %v5853 = vunpack.c.l.b16 %v4541
    %v5854 = vunpack.c.h.b16 %v4541
    %v5855 = vunpack.c.l.b16 %v4542
    %v5856 = vunpack.c.l.b16 %v4543
    %v5857 = vunpack.c.h.b16 %v4543
    %v5858 = vunpack.c.l.b16 %v4544
    %v5859 = vunpack.c.h.b16 %v4544
    %v5860 = vunpack.c.l.b16 %v4545
    %v5861 = vunpack.c.h.b16 %v4545
    %v5862 = vunpack.c.l.b16 %v4546
    %v5863 = vunpack.c.l.b16 %v4547
    %v5864 = vunpack.c.h.b16 %v4547
    %v5865 = vunpack.c.l.b16 %v4548
    %v5866 = vunpack.c.h.b16 %v4548
    %v5867 = vunpack.c.l.b16 %v4549
    %v5868 = vunpack.c.h.b16 %v4549
    %v5869 = vunpack.c.l.b16 %v4550
    %v5870 = vunpack.c.l.b16 %v4551
    %v5871 = vunpack.c.h.b16 %v4551
    %v5872 = vunpack.c.l.b16 %v4552
    %v5873 = vunpack.c.h.b16 %v4552
    %v5874 = vunpack.c.l.b16 %v4553
    %v5875 = vunpack.c.h.b16 %v4553
    %v5876 = vunpack.c.l.b16 %v4554
    %v5877 = vunpack.c.l.b16 %v4555
    %v5878 = vunpack.c.h.b16 %v4555
    %v5879 = vunpack.c.l.b16 %v4556
    %v5880 = vunpack.c.h.b16 %v4556
    %v5881 = vunpack.c.l.b16 %v4557
    %v5882 = vunpack.c.h.b16 %v4557
    %v5883 = vunpack.c.l.b16 %v4558
    %v5884 = vunpack.c.l.b16 %v4559
    %v5885 = vunpack.c.h.b16 %v4559
    %v5886 = vunpack.c.l.b16 %v4560
    %v5887 = vunpack.c.h.b16 %v4560
    %v5888 = vunpack.c.l.b16 %v4561
    %v5889 = vunpack.c.h.b16 %v4561
    %v5890 = vunpack.c.l.b16 %v4562
    %v5891 = vunpack.c.l.b16 %v4563
    %v5892 = vunpack.c.h.b16 %v4563
    %v5893 = vunpack.c.l.b16 %v4564
    %v5894 = vunpack.c.h.b16 %v4564
    %v5895 = vunpack.c.l.b16 %v4565
    %v5896 = vunpack.c.h.b16 %v4565
    %v5897 = vunpack.c.l.b16 %v4566
    %v5898 = vunpack.c.l.b16 %v4567
    %v5899 = vunpack.c.h.b16 %v4567
    %v5900 = vunpack.c.l.b16 %v4568
    %v5901 = vunpack.c.h.b16 %v4568
    %v5902 = vunpack.c.l.b16 %v4569
    %v5903 = vunpack.c.h.b16 %v4569
    %v5904 = vunpack.c.l.b16 %v4570
    %v5905 = vunpack.c.l.b16 %v4571
    %v5906 = vunpack.c.h.b16 %v4571
    %v5907 = vunpack.c.l.b16 %v4572
    %v5908 = vunpack.c.h.b16 %v4572
    %v5909 = vunpack.c.l.b16 %v4573
    %v5910 = vunpack.c.h.b16 %v4573
    %v5911 = vunpack.c.l.b16 %v4574
    %v5912 = vunpack.c.l.b16 %v4575
    %v5913 = vunpack.c.h.b16 %v4575
    %v5914 = vunpack.c.l.b16 %v4576
    %v5915 = vunpack.c.h.b16 %v4576
    %v5916 = vunpack.c.l.b16 %v4577
    %v5917 = vunpack.c.h.b16 %v4577
    %v5918 = vunpack.c.l.b16 %v4578
    %v5919 = vunpack.c.l.b16 %v4579
    %v5920 = vunpack.c.h.b16 %v4579
    %v5921 = vunpack.c.l.b16 %v4580
    %v5922 = vunpack.c.h.b16 %v4580
    %v5923 = vunpack.c.l.b16 %v4581
    %v5924 = vunpack.c.h.b16 %v4581
    %v5925 = vunpack.c.l.b16 %v4582
    %v5926 = vunpack.c.l.b16 %v4583
    %v5927 = vunpack.c.h.b16 %v4583
    %v5928 = vunpack.c.l.b16 %v4584
    %v5929 = vunpack.c.h.b16 %v4584
    %v5930 = vunpack.c.l.b16 %v4585
    %v5931 = vunpack.c.h.b16 %v4585
    %v5932 = vunpack.c.l.b16 %v4586
    %v5933 = vunpack.c.l.b16 %v4587
    %v5934 = vunpack.c.h.b16 %v4587
    %v5935 = vunpack.c.l.b16 %v4588
    %v5936 = vunpack.c.h.b16 %v4588
    %v5937 = vunpack.c.l.b16 %v4589
    %v5938 = vunpack.c.h.b16 %v4589
    %v5939 = vunpack.c.l.b16 %v4590
    %v5940 = vunpack.c.l.b16 %v4591
    %v5941 = vunpack.c.h.b16 %v4591
    %v5942 = vunpack.c.l.b16 %v4592
    %v5943 = vunpack.c.h.b16 %v4592
    %v5944 = vunpack.c.l.b16 %v4593
    %v5945 = vunpack.c.h.b16 %v4593
    %v5946 = vunpack.c.l.b16 %v4594
    %v5947 = vunpack.c.l.b16 %v4595
    %v5948 = vunpack.c.h.b16 %v4595
    %v5949 = vunpack.c.l.b16 %v4596
    %v5950 = vunpack.c.h.b16 %v4596
    %v5951 = vunpack.c.l.b16 %v4597
    %v5952 = vunpack.c.h.b16 %v4597
    %v5953 = vunpack.c.l.b16 %v4598
    %v5954 = vunpack.c.l.b16 %v4599
    %v5955 = vunpack.c.h.b16 %v4599
    %v5956 = vunpack.c.l.b16 %v4600
    %v5957 = vunpack.c.h.b16 %v4600
    %v5958 = vunpack.c.l.b16 %v4601
    %v5959 = vunpack.c.h.b16 %v4601
    %v5960 = vunpack.c.l.b16 %v4602
    %v5961 = vunpack.c.l.b16 %v4603
    %v5962 = vunpack.c.h.b16 %v4603
    %v5963 = vunpack.c.l.b16 %v4604
    %v5964 = vunpack.c.h.b16 %v4604
    %v5965 = vunpack.c.l.b16 %v4605
    %v5966 = vunpack.c.h.b16 %v4605
    %v5967 = vunpack.c.l.b16 %v4606
    %v5968 = vunpack.c.l.b16 %v4607
    %v5969 = vunpack.c.h.b16 %v4607
    %v5970 = vunpack.c.l.b16 %v4608
    %v5971 = vunpack.c.h.b16 %v4608
    %v5972 = vunpack.c.l.b16 %v4609
    %v5973 = vunpack.c.h.b16 %v4609
    %v5974 = vunpack.c.l.b16 %v4610
    %v5975 = vunpack.c.l.b16 %v4611
    %v5976 = vunpack.c.h.b16 %v4611
    %v5977 = vunpack.c.l.b16 %v4612
    %v5978 = vunpack.c.h.b16 %v4612
    %v5979 = vunpack.c.l.b16 %v4613
    %v5980 = vunpack.c.h.b16 %v4613
    %v5981 = vunpack.c.l.b16 %v4614
    %v5982 = vunpack.c.l.b16 %v4615
    %v5983 = vunpack.c.h.b16 %v4615
    %v5984 = vunpack.c.l.b16 %v4616
    %v5985 = vunpack.c.h.b16 %v4616
    %v5986 = vunpack.c.l.b16 %v4617
    %v5987 = vunpack.c.h.b16 %v4617
    %v5988 = vunpack.c.l.b16 %v4618
    %v5989 = vunpack.c.l.b16 %v4619
    %v5990 = vunpack.c.h.b16 %v4619
    %v5991 = vunpack.c.l.b16 %v4620
    %v5992 = vunpack.c.h.b16 %v4620
    %v5993 = vunpack.c.l.b16 %v4621
    %v5994 = vunpack.c.h.b16 %v4621
    %v5995 = vunpack.c.l.b16 %v4622
    %v5996 = vunpack.c.l.b16 %v4623
    %v5997 = vunpack.c.h.b16 %v4623
    %v5998 = vunpack.c.l.b16 %v4624
    %v5999 = vunpack.c.h.b16 %v4624
    %v6000 = vunpack.c.l.b16 %v4625
    %v6001 = vunpack.c.h.b16 %v4625
    %v6002 = vunpack.c.l.b16 %v4626
    %v6003 = vunpack.c.l.b16 %v4627
    %v6004 = vunpack.c.h.b16 %v4627
    %v6005 = vunpack.c.l.b16 %v4628
    %v6006 = vunpack.c.h.b16 %v4628
    %v6007 = vunpack.c.l.b16 %v4629
    %v6008 = vunpack.c.h.b16 %v4629
    %v6009 = vunpack.c.l.b16 %v4630
    %v6010 = vunpack.c.l.b16 %v4631
    %v6011 = vunpack.c.h.b16 %v4631
    %v6012 = vunpack.c.l.b16 %v4632
    %v6013 = vunpack.c.h.b16 %v4632
    %v6014 = vunpack.c.l.b16 %v4633
    %v6015 = vunpack.c.h.b16 %v4633
    %v6016 = vunpack.c.l.b16 %v4634
    %v6017 = vunpack.c.l.b16 %v4635
    %v6018 = vunpack.c.h.b16 %v4635
    %v6019 = vunpack.c.l.b16 %v4636
    %v6020 = vunpack.c.h.b16 %v4636
    %v6021 = vunpack.c.l.b16 %v4637
    %v6022 = vunpack.c.h.b16 %v4637
    %v6023 = vunpack.c.l.b16 %v4638
    %v6024 = vunpack.c.l.b16 %v4639
    %v6025 = vunpack.c.h.b16 %v4639
    %v6026 = vunpack.c.l.b16 %v4640
    %v6027 = vunpack.c.h.b16 %v4640
    %v6028 = vunpack.c.l.b16 %v4641
    %v6029 = vunpack.c.h.b16 %v4641
    %v6030 = vunpack.c.l.b16 %v4642
    %v6031 = vunpack.c.l.b16 %v4643
    %v6032 = vunpack.c.h.b16 %v4643
    %v6033 = vunpack.c.l.b16 %v4644
    %v6034 = vunpack.c.h.b16 %v4644
    %v6035 = vunpack.c.l.b16 %v4645
    %v6036 = vunpack.c.h.b16 %v4645
    %v6037 = vunpack.c.l.b16 %v4646
    %v6038 = vunpack.c.l.b16 %v4647
    %v6039 = vunpack.c.h.b16 %v4647
    %v6040 = vunpack.c.l.b16 %v4648
    %v6041 = vunpack.c.h.b16 %v4648
    %v6042 = vunpack.c.l.b16 %v4649
    %v6043 = vunpack.c.h.b16 %v4649
    %v6044 = vunpack.c.l.b16 %v4650
    %v6045 = vunpack.c.l.b16 %v4651
    %v6046 = vunpack.c.h.b16 %v4651
    %v6047 = vunpack.c.l.b16 %v4652
    %v6048 = vunpack.c.h.b16 %v4652
    %v6049 = vunpack.c.l.b16 %v4653
    %v6050 = vunpack.c.h.b16 %v4653
    %v6051 = vunpack.c.l.b16 %v4654
    %v6052 = vunpack.c.l.b16 %v4655
    %v6053 = vunpack.c.h.b16 %v4655
    %v6054 = vunpack.c.l.b16 %v4656
    %v6055 = vunpack.c.h.b16 %v4656
    %v6056 = vunpack.c.l.b16 %v4657
    %v6057 = vunpack.c.h.b16 %v4657
    %v6058 = vunpack.c.l.b16 %v4658
    %v6059 = vunpack.c.l.b16 %v4659
    %v6060 = vunpack.c.h.b16 %v4659
    %v6061 = vunpack.c.l.b16 %v4660
    %v6062 = vunpack.c.h.b16 %v4660
    %v6063 = vunpack.c.l.b16 %v4661
    %v6064 = vunpack.c.h.b16 %v4661
    %v6065 = vunpack.c.l.b16 %v4662
    %v6066 = vunpack.c.l.b16 %v4663
    %v6067 = vunpack.c.h.b16 %v4663
    %v6068 = vunpack.c.l.b16 %v4664
    %v6069 = vunpack.c.h.b16 %v4664
    %v6070 = vunpack.c.l.b16 %v4665
    %v6071 = vunpack.c.h.b16 %v4665
    %v6072 = vunpack.c.l.b16 %v4666
    %v6073 = vunpack.c.l.b16 %v4667
    %v6074 = vunpack.c.h.b16 %v4667
    %v6075 = vunpack.c.l.b16 %v4668
    %v6076 = vunpack.c.h.b16 %v4668
    %v6077 = vunpack.c.l.b16 %v4669
    %v6078 = vunpack.c.h.b16 %v4669
    %v6079 = vunpack.c.l.b16 %v4670
    %v6080 = vunpack.c.l.b16 %v4671
    %v6081 = vunpack.c.h.b16 %v4671
    %v6082 = vunpack.c.l.b16 %v4672
    %v6083 = vunpack.c.h.b16 %v4672
    %v6084 = vunpack.c.l.b16 %v4673
    %v6085 = vunpack.c.h.b16 %v4673
    %v6086 = vunpack.c.l.b16 %v4674
    %v6087 = vunpack.c.l.b16 %v4675
    %v6088 = vunpack.c.h.b16 %v4675
    %v6089 = vunpack.c.l.b16 %v4676
    %v6090 = vunpack.c.h.b16 %v4676
    %v6091 = vunpack.c.l.b16 %v4677
    %v6092 = vunpack.c.h.b16 %v4677
    %v6093 = vunpack.c.l.b16 %v4678
    %v6094 = vunpack.c.l.b16 %v4679
    %v6095 = vunpack.c.h.b16 %v4679
    %v6096 = vunpack.c.l.b16 %v4680
    %v6097 = vunpack.c.h.b16 %v4680
    %v6098 = vunpack.c.l.b16 %v4681
    %v6099 = vunpack.c.h.b16 %v4681
    %v6100 = vunpack.c.l.b16 %v4682
    %v6101 = vunpack.c.l.b16 %v4683
    %v6102 = vunpack.c.h.b16 %v4683
    %v6103 = vunpack.c.l.b16 %v4684
    %v6104 = vunpack.c.h.b16 %v4684
    %v6105 = vunpack.c.l.b16 %v4685
    %v6106 = vunpack.c.h.b16 %v4685
    %v6107 = vunpack.c.l.b16 %v4686
    %v6108 = vunpack.c.l.b16 %v4687
    %v6109 = vunpack.c.h.b16 %v4687
    %v6110 = vunpack.c.l.b16 %v4688
    %v6111 = vunpack.c.h.b16 %v4688
    %v6112 = vunpack.c.l.b16 %v4689
    %v6113 = vunpack.c.h.b16 %v4689
    %v6114 = vunpack.c.l.b16 %v4690
    %v6115 = vpack.c.b16 %v5226, %v5219
    %v6116 = vpack.c.b16 %v5227, %v5220
    %v6117 = vpack.c.b16 %v5228, %v5221
    %v6118 = vpack.c.b16 %v5229, %v5222
    %v6119 = vpack.c.b16 %v5230, %v5223
    %v6120 = vpack.c.b16 %v5231, %v5224
    %v6121 = vpack.c.b16 %v5232, %v5225
    %v6122 = vpack.c.b16 %v5240, %v5233
    %v6123 = vpack.c.b16 %v5241, %v5234
    %v6124 = vpack.c.b16 %v5242, %v5235
    %v6125 = vpack.c.b16 %v5243, %v5236
    %v6126 = vpack.c.b16 %v5244, %v5237
    %v6127 = vpack.c.b16 %v5245, %v5238
    %v6128 = vpack.c.b16 %v5246, %v5239
    %v6129 = vpack.c.b16 %v5254, %v5247
    %v6130 = vpack.c.b16 %v5255, %v5248
    %v6131 = vpack.c.b16 %v5256, %v5249
    %v6132 = vpack.c.b16 %v5257, %v5250
    %v6133 = vpack.c.b16 %v5258, %v5251
    %v6134 = vpack.c.b16 %v5259, %v5252
    %v6135 = vpack.c.b16 %v5260, %v5253
    %v6136 = vpack.c.b16 %v5268, %v5261
    %v6137 = vpack.c.b16 %v5269, %v5262
    %v6138 = vpack.c.b16 %v5270, %v5263
    %v6139 = vpack.c.b16 %v5271, %v5264
    %v6140 = vpack.c.b16 %v5272, %v5265
    %v6141 = vpack.c.b16 %v5273, %v5266
    %v6142 = vpack.c.b16 %v5274, %v5267
    %v6143 = vpack.c.b16 %v5282, %v5275
    %v6144 = vpack.c.b16 %v5283, %v5276
    %v6145 = vpack.c.b16 %v5284, %v5277
    %v6146 = vpack.c.b16 %v5285, %v5278
    %v6147 = vpack.c.b16 %v5286, %v5279
    %v6148 = vpack.c.b16 %v5287, %v5280
    %v6149 = vpack.c.b16 %v5288, %v5281
    %v6150 = vpack.c.b16 %v5296, %v5289
    %v6151 = vpack.c.b16 %v5297, %v5290
    %v6152 = vpack.c.b16 %v5298, %v5291
    %v6153 = vpack.c.b16 %v5299, %v5292
    %v6154 = vpack.c.b16 %v5300, %v5293
    %v6155 = vpack.c.b16 %v5301, %v5294
    %v6156 = vpack.c.b16 %v5302, %v5295
    %v6157 = vpack.c.b16 %v5310, %v5303
    %v6158 = vpack.c.b16 %v5311, %v5304
    %v6159 = vpack.c.b16 %v5312, %v5305
    %v6160 = vpack.c.b16 %v5313, %v5306
    %v6161 = vpack.c.b16 %v5314, %v5307
    %v6162 = vpack.c.b16 %v5315, %v5308
    %v6163 = vpack.c.b16 %v5316, %v5309
    %v6164 = vpack.c.b16 %v5324, %v5317
    %v6165 = vpack.c.b16 %v5325, %v5318
    %v6166 = vpack.c.b16 %v5326, %v5319
    %v6167 = vpack.c.b16 %v5327, %v5320
    %v6168 = vpack.c.b16 %v5328, %v5321
    %v6169 = vpack.c.b16 %v5329, %v5322
    %v6170 = vpack.c.b16 %v5330, %v5323
    %v6171 = vpack.c.b16 %v5338, %v5331
    %v6172 = vpack.c.b16 %v5339, %v5332
    %v6173 = vpack.c.b16 %v5340, %v5333
    %v6174 = vpack.c.b16 %v5341, %v5334
    %v6175 = vpack.c.b16 %v5342, %v5335
    %v6176 = vpack.c.b16 %v5343, %v5336
    %v6177 = vpack.c.b16 %v5344, %v5337
    %v6178 = vpack.c.b16 %v5352, %v5345
    %v6179 = vpack.c.b16 %v5353, %v5346
    %v6180 = vpack.c.b16 %v5354, %v5347
    %v6181 = vpack.c.b16 %v5355, %v5348
    %v6182 = vpack.c.b16 %v5356, %v5349
    %v6183 = vpack.c.b16 %v5357, %v5350
    %v6184 = vpack.c.b16 %v5358, %v5351
    %v6185 = vpack.c.b16 %v5366, %v5359
    %v6186 = vpack.c.b16 %v5367, %v5360
    %v6187 = vpack.c.b16 %v5368, %v5361
    %v6188 = vpack.c.b16 %v5369, %v5362
    %v6189 = vpack.c.b16 %v5370, %v5363
    %v6190 = vpack.c.b16 %v5371, %v5364
    %v6191 = vpack.c.b16 %v5372, %v5365
    %v6192 = vpack.c.b16 %v5380, %v5373
    %v6193 = vpack.c.b16 %v5381, %v5374
    %v6194 = vpack.c.b16 %v5382, %v5375
    %v6195 = vpack.c.b16 %v5383, %v5376
    %v6196 = vpack.c.b16 %v5384, %v5377
    %v6197 = vpack.c.b16 %v5385, %v5378
    %v6198 = vpack.c.b16 %v5386, %v5379
    %v6199 = vpack.c.b16 %v5394, %v5387
    %v6200 = vpack.c.b16 %v5395, %v5388
    %v6201 = vpack.c.b16 %v5396, %v5389
    %v6202 = vpack.c.b16 %v5397, %v5390
    %v6203 = vpack.c.b16 %v5398, %v5391
    %v6204 = vpack.c.b16 %v5399, %v5392
    %v6205 = vpack.c.b16 %v5400, %v5393
    %v6206 = vpack.c.b16 %v5408, %v5401
    %v6207 = vpack.c.b16 %v5409, %v5402
    %v6208 = vpack.c.b16 %v5410, %v5403
    %v6209 = vpack.c.b16 %v5411, %v5404
    %v6210 = vpack.c.b16 %v5412, %v5405
    %v6211 = vpack.c.b16 %v5413, %v5406
    %v6212 = vpack.c.b16 %v5414, %v5407
    %v6213 = vpack.c.b16 %v5422, %v5415
    %v6214 = vpack.c.b16 %v5423, %v5416
    %v6215 = vpack.c.b16 %v5424, %v5417
    %v6216 = vpack.c.b16 %v5425, %v5418
    %v6217 = vpack.c.b16 %v5426, %v5419
    %v6218 = vpack.c.b16 %v5427, %v5420
    %v6219 = vpack.c.b16 %v5428, %v5421
    %v6220 = vpack.c.b16 %v5436, %v5429
    %v6221 = vpack.c.b16 %v5437, %v5430
    %v6222 = vpack.c.b16 %v5438, %v5431
    %v6223 = vpack.c.b16 %v5439, %v5432
    %v6224 = vpack.c.b16 %v5440, %v5433
    %v6225 = vpack.c.b16 %v5441, %v5434
    %v6226 = vpack.c.b16 %v5442, %v5435
    %v6227 = vpack.c.b16 %v5450, %v5443
    %v6228 = vpack.c.b16 %v5451, %v5444
    %v6229 = vpack.c.b16 %v5452, %v5445
    %v6230 = vpack.c.b16 %v5453, %v5446
    %v6231 = vpack.c.b16 %v5454, %v5447
    %v6232 = vpack.c.b16 %v5455, %v5448
    %v6233 = vpack.c.b16 %v5456, %v5449
    %v6234 = vpack.c.b16 %v5464, %v5457
    %v6235 = vpack.c.b16 %v5465, %v5458
    %v6236 = vpack.c.b16 %v5466, %v5459
    %v6237 = vpack.c.b16 %v5467, %v5460
    %v6238 = vpack.c.b16 %v5468, %v5461
    %v6239 = vpack.c.b16 %v5469, %v5462
    %v6240 = vpack.c.b16 %v5470, %v5463
    %v6241 = vpack.c.b16 %v5478, %v5471
    %v6242 = vpack.c.b16 %v5479, %v5472
    %v6243 = vpack.c.b16 %v5480, %v5473
    %v6244 = vpack.c.b16 %v5481, %v5474
    %v6245 = vpack.c.b16 %v5482, %v5475
    %v6246 = vpack.c.b16 %v5483, %v5476
    %v6247 = vpack.c.b16 %v5484, %v5477
    %v6248 = vpack.c.b16 %v5492, %v5485
    %v6249 = vpack.c.b16 %v5493, %v5486
    %v6250 = vpack.c.b16 %v5494, %v5487
    %v6251 = vpack.c.b16 %v5495, %v5488
    %v6252 = vpack.c.b16 %v5496, %v5489
    %v6253 = vpack.c.b16 %v5497, %v5490
    %v6254 = vpack.c.b16 %v5498, %v5491
    %v6255 = vpack.c.b16 %v5506, %v5499
    %v6256 = vpack.c.b16 %v5507, %v5500
    %v6257 = vpack.c.b16 %v5508, %v5501
    %v6258 = vpack.c.b16 %v5509, %v5502
    %v6259 = vpack.c.b16 %v5510, %v5503
    %v6260 = vpack.c.b16 %v5511, %v5504
    %v6261 = vpack.c.b16 %v5512, %v5505
    %v6262 = vpack.c.b16 %v5520, %v5513
    %v6263 = vpack.c.b16 %v5521, %v5514
    %v6264 = vpack.c.b16 %v5522, %v5515
    %v6265 = vpack.c.b16 %v5523, %v5516
    %v6266 = vpack.c.b16 %v5524, %v5517
    %v6267 = vpack.c.b16 %v5525, %v5518
    %v6268 = vpack.c.b16 %v5526, %v5519
    %v6269 = vpack.c.b16 %v5534, %v5527
    %v6270 = vpack.c.b16 %v5535, %v5528
    %v6271 = vpack.c.b16 %v5536, %v5529
    %v6272 = vpack.c.b16 %v5537, %v5530
    %v6273 = vpack.c.b16 %v5538, %v5531
    %v6274 = vpack.c.b16 %v5539, %v5532
    %v6275 = vpack.c.b16 %v5540, %v5533
    %v6276 = vpack.c.b16 %v5548, %v5541
    %v6277 = vpack.c.b16 %v5549, %v5542
    %v6278 = vpack.c.b16 %v5550, %v5543
    %v6279 = vpack.c.b16 %v5551, %v5544
    %v6280 = vpack.c.b16 %v5552, %v5545
    %v6281 = vpack.c.b16 %v5553, %v5546
    %v6282 = vpack.c.b16 %v5554, %v5547
    %v6283 = vpack.c.b16 %v5562, %v5555
    %v6284 = vpack.c.b16 %v5563, %v5556
    %v6285 = vpack.c.b16 %v5564, %v5557
    %v6286 = vpack.c.b16 %v5565, %v5558
    %v6287 = vpack.c.b16 %v5566, %v5559
    %v6288 = vpack.c.b16 %v5567, %v5560
    %v6289 = vpack.c.b16 %v5568, %v5561
    %v6290 = vpack.c.b16 %v5576, %v5569
    %v6291 = vpack.c.b16 %v5577, %v5570
    %v6292 = vpack.c.b16 %v5578, %v5571
    %v6293 = vpack.c.b16 %v5579, %v5572
    %v6294 = vpack.c.b16 %v5580, %v5573
    %v6295 = vpack.c.b16 %v5581, %v5574
    %v6296 = vpack.c.b16 %v5582, %v5575
    %v6297 = vpack.c.b16 %v5590, %v5583
    %v6298 = vpack.c.b16 %v5591, %v5584
    %v6299 = vpack.c.b16 %v5592, %v5585
    %v6300 = vpack.c.b16 %v5593, %v5586
    %v6301 = vpack.c.b16 %v5594, %v5587
    %v6302 = vpack.c.b16 %v5595, %v5588
    %v6303 = vpack.c.b16 %v5596, %v5589
    %v6304 = vpack.c.b16 %v5604, %v5597
    %v6305 = vpack.c.b16 %v5605, %v5598
    %v6306 = vpack.c.b16 %v5606, %v5599
    %v6307 = vpack.c.b16 %v5607, %v5600
    %v6308 = vpack.c.b16 %v5608, %v5601
    %v6309 = vpack.c.b16 %v5609, %v5602
    %v6310 = vpack.c.b16 %v5610, %v5603
    %v6311 = vpack.c.b16 %v5618, %v5611
    %v6312 = vpack.c.b16 %v5619, %v5612
    %v6313 = vpack.c.b16 %v5620, %v5613
    %v6314 = vpack.c.b16 %v5621, %v5614
    %v6315 = vpack.c.b16 %v5622, %v5615
    %v6316 = vpack.c.b16 %v5623, %v5616
    %v6317 = vpack.c.b16 %v5624, %v5617
    %v6318 = vpack.c.b16 %v5632, %v5625
    %v6319 = vpack.c.b16 %v5633, %v5626
    %v6320 = vpack.c.b16 %v5634, %v5627
    %v6321 = vpack.c.b16 %v5635, %v5628
    %v6322 = vpack.c.b16 %v5636, %v5629
    %v6323 = vpack.c.b16 %v5637, %v5630
    %v6324 = vpack.c.b16 %v5638, %v5631
    %v6325 = vpack.c.b16 %v5646, %v5639
    %v6326 = vpack.c.b16 %v5647, %v5640
    %v6327 = vpack.c.b16 %v5648, %v5641
    %v6328 = vpack.c.b16 %v5649, %v5642
    %v6329 = vpack.c.b16 %v5650, %v5643
    %v6330 = vpack.c.b16 %v5651, %v5644
    %v6331 = vpack.c.b16 %v5652, %v5645
    %v6332 = vpack.c.b16 %v5660, %v5653
    %v6333 = vpack.c.b16 %v5661, %v5654
    %v6334 = vpack.c.b16 %v5662, %v5655
    %v6335 = vpack.c.b16 %v5663, %v5656
    %v6336 = vpack.c.b16 %v5664, %v5657
    %v6337 = vpack.c.b16 %v5665, %v5658
    %v6338 = vpack.c.b16 %v5666, %v5659
    %v6339 = vpack.c.b16 %v5674, %v5667
    %v6340 = vpack.c.b16 %v5675, %v5668
    %v6341 = vpack.c.b16 %v5676, %v5669
    %v6342 = vpack.c.b16 %v5677, %v5670
    %v6343 = vpack.c.b16 %v5678, %v5671
    %v6344 = vpack.c.b16 %v5679, %v5672
    %v6345 = vpack.c.b16 %v5680, %v5673
    %v6346 = vpack.c.b16 %v5688, %v5681
    %v6347 = vpack.c.b16 %v5689, %v5682
    %v6348 = vpack.c.b16 %v5690, %v5683
    %v6349 = vpack.c.b16 %v5691, %v5684
    %v6350 = vpack.c.b16 %v5692, %v5685
    %v6351 = vpack.c.b16 %v5693, %v5686
    %v6352 = vpack.c.b16 %v5694, %v5687
    %v6353 = vpack.c.b16 %v5702, %v5695
    %v6354 = vpack.c.b16 %v5703, %v5696
    %v6355 = vpack.c.b16 %v5704, %v5697
    %v6356 = vpack.c.b16 %v5705, %v5698
    %v6357 = vpack.c.b16 %v5706, %v5699
    %v6358 = vpack.c.b16 %v5707, %v5700
    %v6359 = vpack.c.b16 %v5708, %v5701
    %v6360 = vpack.c.b16 %v5716, %v5709
    %v6361 = vpack.c.b16 %v5717, %v5710
    %v6362 = vpack.c.b16 %v5718, %v5711
    %v6363 = vpack.c.b16 %v5719, %v5712
    %v6364 = vpack.c.b16 %v5720, %v5713
    %v6365 = vpack.c.b16 %v5721, %v5714
    %v6366 = vpack.c.b16 %v5722, %v5715
    %v6367 = vpack.c.b16 %v5730, %v5723
    %v6368 = vpack.c.b16 %v5731, %v5724
    %v6369 = vpack.c.b16 %v5732, %v5725
    %v6370 = vpack.c.b16 %v5733, %v5726
    %v6371 = vpack.c.b16 %v5734, %v5727
    %v6372 = vpack.c.b16 %v5735, %v5728
    %v6373 = vpack.c.b16 %v5736, %v5729
    %v6374 = vpack.c.b16 %v5744, %v5737
    %v6375 = vpack.c.b16 %v5745, %v5738
    %v6376 = vpack.c.b16 %v5746, %v5739
    %v6377 = vpack.c.b16 %v5747, %v5740
    %v6378 = vpack.c.b16 %v5748, %v5741
    %v6379 = vpack.c.b16 %v5749, %v5742
    %v6380 = vpack.c.b16 %v5750, %v5743
    %v6381 = vpack.c.b16 %v5758, %v5751
    %v6382 = vpack.c.b16 %v5759, %v5752
    %v6383 = vpack.c.b16 %v5760, %v5753
    %v6384 = vpack.c.b16 %v5761, %v5754
    %v6385 = vpack.c.b16 %v5762, %v5755
    %v6386 = vpack.c.b16 %v5763, %v5756
    %v6387 = vpack.c.b16 %v5764, %v5757
    %v6388 = vpack.c.b16 %v5772, %v5765
    %v6389 = vpack.c.b16 %v5773, %v5766
    %v6390 = vpack.c.b16 %v5774, %v5767
    %v6391 = vpack.c.b16 %v5775, %v5768
    %v6392 = vpack.c.b16 %v5776, %v5769
    %v6393 = vpack.c.b16 %v5777, %v5770
    %v6394 = vpack.c.b16 %v5778, %v5771
    %v6395 = vpack.c.b16 %v5786, %v5779
    %v6396 = vpack.c.b16 %v5787, %v5780
    %v6397 = vpack.c.b16 %v5788, %v5781
    %v6398 = vpack.c.b16 %v5789, %v5782
    %v6399 = vpack.c.b16 %v5790, %v5783
    %v6400 = vpack.c.b16 %v5791, %v5784
    %v6401 = vpack.c.b16 %v5792, %v5785
    %v6402 = vpack.c.b16 %v5800, %v5793
    %v6403 = vpack.c.b16 %v5801, %v5794
    %v6404 = vpack.c.b16 %v5802, %v5795
    %v6405 = vpack.c.b16 %v5803, %v5796
    %v6406 = vpack.c.b16 %v5804, %v5797
    %v6407 = vpack.c.b16 %v5805, %v5798
    %v6408 = vpack.c.b16 %v5806, %v5799
    %v6409 = vpack.c.b16 %v5814, %v5807
    %v6410 = vpack.c.b16 %v5815, %v5808
    %v6411 = vpack.c.b16 %v5816, %v5809
    %v6412 = vpack.c.b16 %v5817, %v5810
    %v6413 = vpack.c.b16 %v5818, %v5811
    %v6414 = vpack.c.b16 %v5819, %v5812
    %v6415 = vpack.c.b16 %v5820, %v5813
    %v6416 = vpack.c.b16 %v5828, %v5821
    %v6417 = vpack.c.b16 %v5829, %v5822
    %v6418 = vpack.c.b16 %v5830, %v5823
    %v6419 = vpack.c.b16 %v5831, %v5824
    %v6420 = vpack.c.b16 %v5832, %v5825
    %v6421 = vpack.c.b16 %v5833, %v5826
    %v6422 = vpack.c.b16 %v5834, %v5827
    %v6423 = vpack.c.b16 %v5842, %v5835
    %v6424 = vpack.c.b16 %v5843, %v5836
    %v6425 = vpack.c.b16 %v5844, %v5837
    %v6426 = vpack.c.b16 %v5845, %v5838
    %v6427 = vpack.c.b16 %v5846, %v5839
    %v6428 = vpack.c.b16 %v5847, %v5840
    %v6429 = vpack.c.b16 %v5848, %v5841
    %v6430 = vpack.c.b16 %v5856, %v5849
    %v6431 = vpack.c.b16 %v5857, %v5850
    %v6432 = vpack.c.b16 %v5858, %v5851
    %v6433 = vpack.c.b16 %v5859, %v5852
    %v6434 = vpack.c.b16 %v5860, %v5853
    %v6435 = vpack.c.b16 %v5861, %v5854
    %v6436 = vpack.c.b16 %v5862, %v5855
    %v6437 = vpack.c.b16 %v5870, %v5863
    %v6438 = vpack.c.b16 %v5871, %v5864
    %v6439 = vpack.c.b16 %v5872, %v5865
    %v6440 = vpack.c.b16 %v5873, %v5866
    %v6441 = vpack.c.b16 %v5874, %v5867
    %v6442 = vpack.c.b16 %v5875, %v5868
    %v6443 = vpack.c.b16 %v5876, %v5869
    %v6444 = vpack.c.b16 %v5884, %v5877
    %v6445 = vpack.c.b16 %v5885, %v5878
    %v6446 = vpack.c.b16 %v5886, %v5879
    %v6447 = vpack.c.b16 %v5887, %v5880
    %v6448 = vpack.c.b16 %v5888, %v5881
    %v6449 = vpack.c.b16 %v5889, %v5882
    %v6450 = vpack.c.b16 %v5890, %v5883
    %v6451 = vpack.c.b16 %v5898, %v5891
    %v6452 = vpack.c.b16 %v5899, %v5892
    %v6453 = vpack.c.b16 %v5900, %v5893
    %v6454 = vpack.c.b16 %v5901, %v5894
    %v6455 = vpack.c.b16 %v5902, %v5895
    %v6456 = vpack.c.b16 %v5903, %v5896
    %v6457 = vpack.c.b16 %v5904, %v5897
    %v6458 = vpack.c.b16 %v5912, %v5905
    %v6459 = vpack.c.b16 %v5913, %v5906
    %v6460 = vpack.c.b16 %v5914, %v5907
    %v6461 = vpack.c.b16 %v5915, %v5908
    %v6462 = vpack.c.b16 %v5916, %v5909
    %v6463 = vpack.c.b16 %v5917, %v5910
    %v6464 = vpack.c.b16 %v5918, %v5911
    %v6465 = vpack.c.b16 %v5926, %v5919
    %v6466 = vpack.c.b16 %v5927, %v5920
    %v6467 = vpack.c.b16 %v5928, %v5921
    %v6468 = vpack.c.b16 %v5929, %v5922
    %v6469 = vpack.c.b16 %v5930, %v5923
    %v6470 = vpack.c.b16 %v5931, %v5924
    %v6471 = vpack.c.b16 %v5932, %v5925
    %v6472 = vpack.c.b16 %v5940, %v5933
    %v6473 = vpack.c.b16 %v5941, %v5934
    %v6474 = vpack.c.b16 %v5942, %v5935
    %v6475 = vpack.c.b16 %v5943, %v5936
    %v6476 = vpack.c.b16 %v5944, %v5937
    %v6477 = vpack.c.b16 %v5945, %v5938
    %v6478 = vpack.c.b16 %v5946, %v5939
    %v6479 = vpack.c.b16 %v5954, %v5947
    %v6480 = vpack.c.b16 %v5955, %v5948
    %v6481 = vpack.c.b16 %v5956, %v5949
    %v6482 = vpack.c.b16 %v5957, %v5950
    %v6483 = vpack.c.b16 %v5958, %v5951
    %v6484 = vpack.c.b16 %v5959, %v5952
    %v6485 = vpack.c.b16 %v5960, %v5953
    %v6486 = vpack.c.b16 %v5968, %v5961
    %v6487 = vpack.c.b16 %v5969, %v5962
    %v6488 = vpack.c.b16 %v5970, %v5963
    %v6489 = vpack.c.b16 %v5971, %v5964
    %v6490 = vpack.c.b16 %v5972, %v5965
    %v6491 = vpack.c.b16 %v5973, %v5966
    %v6492 = vpack.c.b16 %v5974, %v5967
    %v6493 = vpack.c.b16 %v5982, %v5975
    %v6494 = vpack.c.b16 %v5983, %v5976
    %v6495 = vpack.c.b16 %v5984, %v5977
    %v6496 = vpack.c.b16 %v5985, %v5978
    %v6497 = vpack.c.b16 %v5986, %v5979
    %v6498 = vpack.c.b16 %v5987, %v5980
    %v6499 = vpack.c.b16 %v5988, %v5981
    %v6500 = vpack.c.b16 %v5996, %v5989
    %v6501 = vpack.c.b16 %v5997, %v5990
    %v6502 = vpack.c.b16 %v5998, %v5991
    %v6503 = vpack.c.b16 %v5999, %v5992
    %v6504 = vpack.c.b16 %v6000, %v5993
    %v6505 = vpack.c.b16 %v6001, %v5994
    %v6506 = vpack.c.b16 %v6002, %v5995
    %v6507 = vpack.c.b16 %v6010, %v6003
    %v6508 = vpack.c.b16 %v6011, %v6004
    %v6509 = vpack.c.b16 %v6012, %v6005
    %v6510 = vpack.c.b16 %v6013, %v6006
    %v6511 = vpack.c.b16 %v6014, %v6007
    %v6512 = vpack.c.b16 %v6015, %v6008
    %v6513 = vpack.c.b16 %v6016, %v6009
    %v6514 = vpack.c.b16 %v6024, %v6017
    %v6515 = vpack.c.b16 %v6025, %v6018
    %v6516 = vpack.c.b16 %v6026, %v6019
    %v6517 = vpack.c.b16 %v6027, %v6020
    %v6518 = vpack.c.b16 %v6028, %v6021
    %v6519 = vpack.c.b16 %v6029, %v6022
    %v6520 = vpack.c.b16 %v6030, %v6023
    %v6521 = vpack.c.b16 %v6038, %v6031
    %v6522 = vpack.c.b16 %v6039, %v6032
    %v6523 = vpack.c.b16 %v6040, %v6033
    %v6524 = vpack.c.b16 %v6041, %v6034
    %v6525 = vpack.c.b16 %v6042, %v6035
    %v6526 = vpack.c.b16 %v6043, %v6036
    %v6527 = vpack.c.b16 %v6044, %v6037
    %v6528 = vpack.c.b16 %v6052, %v6045
    %v6529 = vpack.c.b16 %v6053, %v6046
    %v6530 = vpack.c.b16 %v6054, %v6047
    %v6531 = vpack.c.b16 %v6055, %v6048
    %v6532 = vpack.c.b16 %v6056, %v6049
    %v6533 = vpack.c.b16 %v6057, %v6050
    %v6534 = vpack.c.b16 %v6058, %v6051
    %v6535 = vpack.c.b16 %v6066, %v6059
    %v6536 = vpack.c.b16 %v6067, %v6060
    %v6537 = vpack.c.b16 %v6068, %v6061
    %v6538 = vpack.c.b16 %v6069, %v6062
    %v6539 = vpack.c.b16 %v6070, %v6063
    %v6540 = vpack.c.b16 %v6071, %v6064
    %v6541 = vpack.c.b16 %v6072, %v6065
    %v6542 = vpack.c.b16 %v6080, %v6073
    %v6543 = vpack.c.b16 %v6081, %v6074
    %v6544 = vpack.c.b16 %v6082, %v6075
    %v6545 = vpack.c.b16 %v6083, %v6076
    %v6546 = vpack.c.b16 %v6084, %v6077
    %v6547 = vpack.c.b16 %v6085, %v6078
    %v6548 = vpack.c.b16 %v6086, %v6079
    %v6549 = vpack.c.b16 %v6094, %v6087
    %v6550 = vpack.c.b16 %v6095, %v6088
    %v6551 = vpack.c.b16 %v6096, %v6089
    %v6552 = vpack.c.b16 %v6097, %v6090
    %v6553 = vpack.c.b16 %v6098, %v6091
    %v6554 = vpack.c.b16 %v6099, %v6092
    %v6555 = vpack.c.b16 %v6100, %v6093
    %v6556 = vpack.c.b16 %v6108, %v6101
    %v6557 = vpack.c.b16 %v6109, %v6102
    %v6558 = vpack.c.b16 %v6110, %v6103
    %v6559 = vpack.c.b16 %v6111, %v6104
    %v6560 = vpack.c.b16 %v6112, %v6105
    %v6561 = vpack.c.b16 %v6113, %v6106
    %v6562 = vpack.c.b16 %v6114, %v6107
    %7011 = vmatpush.bf16.msra.mxu0 %v6164
    %7012 = vmatpush.bf16.msra.mxu0 %v6157
    %7013 = vmatpush.bf16.msra.mxu0 %v6150
    %7014 = vmatpush.bf16.msra.mxu0 %v6143
    %7015 = vmatpush.bf16.msra.mxu0 %v6136
    %7016 = vmatpush.bf16.msra.mxu0 %v6129
    %7017 = vmatpush.bf16.msra.mxu0 %v6122
    %7018 = vmatpush.bf16.msra.mxu0 %v6115
    %7019 = vmatmul.bf16.gmra.mxu0 %v4171
    %v7020 = vpop.f32.mrf.mxu0
    %v7021 = vadd.f32 %v4693, %v7020
    %v7022 = vpop.f32.mrf.mxu0
    %7023 = vdwg.mxu0
    %7024 = vmatpush.bf16.msra.mxu0 %v6220
    %7025 = vmatpush.bf16.msra.mxu0 %v6213
    %7026 = vmatpush.bf16.msra.mxu0 %v6206
    %7027 = vmatpush.bf16.msra.mxu0 %v6199
    %7028 = vmatpush.bf16.msra.mxu0 %v6192
    %7029 = vmatpush.bf16.msra.mxu0 %v6185
    %7030 = vmatpush.bf16.msra.mxu0 %v6178
    %7031 = vmatpush.bf16.msra.mxu0 %v6171
    %7032 = vmatmul.bf16.gmra.mxu0 %v4172
    %v7033 = vpop.f32.mrf.mxu0
    %v7034 = vadd.f32 %v7021, %v7033
    %v7035 = vpop.f32.mrf.mxu0
    %7036 = vdwg.mxu0
    %7037 = vmatpush.bf16.msra.mxu0 %v6276
    %7038 = vmatpush.bf16.msra.mxu0 %v6269
    %7039 = vmatpush.bf16.msra.mxu0 %v6262
    %7040 = vmatpush.bf16.msra.mxu0 %v6255
    %7041 = vmatpush.bf16.msra.mxu0 %v6248
    %7042 = vmatpush.bf16.msra.mxu0 %v6241
    %7043 = vmatpush.bf16.msra.mxu0 %v6234
    %7044 = vmatpush.bf16.msra.mxu0 %v6227
    %7045 = vmatmul.bf16.gmra.mxu0 %v4173
    %v7046 = vpop.f32.mrf.mxu0
    %v7047 = vadd.f32 %v7034, %v7046
    %v7048 = vpop.f32.mrf.mxu0
    %7049 = vdwg.mxu0
    %7050 = vmatpush.bf16.msra.mxu0 %v6332
    %7051 = vmatpush.bf16.msra.mxu0 %v6325
    %7052 = vmatpush.bf16.msra.mxu0 %v6318
    %7053 = vmatpush.bf16.msra.mxu0 %v6311
    %7054 = vmatpush.bf16.msra.mxu0 %v6304
    %7055 = vmatpush.bf16.msra.mxu0 %v6297
    %7056 = vmatpush.bf16.msra.mxu0 %v6290
    %7057 = vmatpush.bf16.msra.mxu0 %v6283
    %7058 = vmatmul.bf16.gmra.mxu0 %v4174
    %v7059 = vpop.f32.mrf.mxu0
    %v7060 = vadd.f32 %v7047, %v7059
    %v7061 = vpop.f32.mrf.mxu0
    %7062 = vdwg.mxu0
    %7063 = vmatpush.bf16.msra.mxu0 %v6388
    %7064 = vmatpush.bf16.msra.mxu0 %v6381
    %7065 = vmatpush.bf16.msra.mxu0 %v6374
    %7066 = vmatpush.bf16.msra.mxu0 %v6367
    %7067 = vmatpush.bf16.msra.mxu0 %v6360
    %7068 = vmatpush.bf16.msra.mxu0 %v6353
    %7069 = vmatpush.bf16.msra.mxu0 %v6346
    %7070 = vmatpush.bf16.msra.mxu0 %v6339
    %7071 = vmatmul.bf16.gmra.mxu0 %v4175
    %v7072 = vpop.f32.mrf.mxu0
    %v7073 = vadd.f32 %v7060, %v7072
    %v7074 = vpop.f32.mrf.mxu0
    %7075 = vdwg.mxu0
    %7076 = vmatpush.bf16.msra.mxu0 %v6444
    %7077 = vmatpush.bf16.msra.mxu0 %v6437
    %7078 = vmatpush.bf16.msra.mxu0 %v6430
    %7079 = vmatpush.bf16.msra.mxu0 %v6423
    %7080 = vmatpush.bf16.msra.mxu0 %v6416
    %7081 = vmatpush.bf16.msra.mxu0 %v6409
    %7082 = vmatpush.bf16.msra.mxu0 %v6402
    %7083 = vmatpush.bf16.msra.mxu0 %v6395
    %7084 = vmatmul.bf16.gmra.mxu0 %v4176
    %v7085 = vpop.f32.mrf.mxu0
    %v7086 = vadd.f32 %v7073, %v7085
    %v7087 = vpop.f32.mrf.mxu0
    %7088 = vdwg.mxu0
    %7089 = vmatpush.bf16.msra.mxu0 %v6500
    %7090 = vmatpush.bf16.msra.mxu0 %v6493
    %7091 = vmatpush.bf16.msra.mxu0 %v6486
    %7092 = vmatpush.bf16.msra.mxu0 %v6479
    %7093 = vmatpush.bf16.msra.mxu0 %v6472
    %7094 = vmatpush.bf16.msra.mxu0 %v6465
    %7095 = vmatpush.bf16.msra.mxu0 %v6458
    %7096 = vmatpush.bf16.msra.mxu0 %v6451
    %7097 = vmatmul.bf16.gmra.mxu0 %v4177
    %v7098 = vpop.f32.mrf.mxu0
    %v7099 = vadd.f32 %v7086, %v7098
    %v7100 = vpop.f32.mrf.mxu0
    %7101 = vdwg.mxu0
    %7102 = vmatpush.bf16.msra.mxu0 %v6556
    %7103 = vmatpush.bf16.msra.mxu0 %v6549
    %7104 = vmatpush.bf16.msra.mxu0 %v6542
    %7105 = vmatpush.bf16.msra.mxu0 %v6535
    %7106 = vmatpush.bf16.msra.mxu0 %v6528
    %7107 = vmatpush.bf16.msra.mxu0 %v6521
    %7108 = vmatpush.bf16.msra.mxu0 %v6514
    %7109 = vmatpush.bf16.msra.mxu0 %v6507
    %7110 = vmatmul.bf16.gmra.mxu0 %v4178
    %v7111 = vpop.f32.mrf.mxu0
    %v7112 = vadd.f32 %v7099, %v7111
    %v7113 = vpop.f32.mrf.mxu0
    %7114 = vdwg.mxu0
    %7115 = vmatpush.bf16.msra.mxu0 %v6165
    %7116 = vmatpush.bf16.msra.mxu0 %v6158
    %7117 = vmatpush.bf16.msra.mxu0 %v6151
    %7118 = vmatpush.bf16.msra.mxu0 %v6144
    %7119 = vmatpush.bf16.msra.mxu0 %v6137
    %7120 = vmatpush.bf16.msra.mxu0 %v6130
    %7121 = vmatpush.bf16.msra.mxu0 %v6123
    %7122 = vmatpush.bf16.msra.mxu0 %v6116
    %7123 = vmatmul.bf16.gmra.mxu0 %v4171
    %v7124 = vpop.f32.mrf.mxu0
    %v7125 = vadd.f32 %v4694, %v7124
    %v7126 = vpop.f32.mrf.mxu0
    %7127 = vdwg.mxu0
    %7128 = vmatpush.bf16.msra.mxu0 %v6221
    %7129 = vmatpush.bf16.msra.mxu0 %v6214
    %7130 = vmatpush.bf16.msra.mxu0 %v6207
    %7131 = vmatpush.bf16.msra.mxu0 %v6200
    %7132 = vmatpush.bf16.msra.mxu0 %v6193
    %7133 = vmatpush.bf16.msra.mxu0 %v6186
    %7134 = vmatpush.bf16.msra.mxu0 %v6179
    %7135 = vmatpush.bf16.msra.mxu0 %v6172
    %7136 = vmatmul.bf16.gmra.mxu0 %v4172
    %v7137 = vpop.f32.mrf.mxu0
    %v7138 = vadd.f32 %v7125, %v7137
    %v7139 = vpop.f32.mrf.mxu0
    %7140 = vdwg.mxu0
    %7141 = vmatpush.bf16.msra.mxu0 %v6277
    %7142 = vmatpush.bf16.msra.mxu0 %v6270
    %7143 = vmatpush.bf16.msra.mxu0 %v6263
    %7144 = vmatpush.bf16.msra.mxu0 %v6256
    %7145 = vmatpush.bf16.msra.mxu0 %v6249
    %7146 = vmatpush.bf16.msra.mxu0 %v6242
    %7147 = vmatpush.bf16.msra.mxu0 %v6235
    %7148 = vmatpush.bf16.msra.mxu0 %v6228
    %7149 = vmatmul.bf16.gmra.mxu0 %v4173
    %v7150 = vpop.f32.mrf.mxu0
    %v7151 = vadd.f32 %v7138, %v7150
    %v7152 = vpop.f32.mrf.mxu0
    %7153 = vdwg.mxu0
    %7154 = vmatpush.bf16.msra.mxu0 %v6333
    %7155 = vmatpush.bf16.msra.mxu0 %v6326
    %7156 = vmatpush.bf16.msra.mxu0 %v6319
    %7157 = vmatpush.bf16.msra.mxu0 %v6312
    %7158 = vmatpush.bf16.msra.mxu0 %v6305
    %7159 = vmatpush.bf16.msra.mxu0 %v6298
    %7160 = vmatpush.bf16.msra.mxu0 %v6291
    %7161 = vmatpush.bf16.msra.mxu0 %v6284
    %7162 = vmatmul.bf16.gmra.mxu0 %v4174
    %v7163 = vpop.f32.mrf.mxu0
    %v7164 = vadd.f32 %v7151, %v7163
    %v7165 = vpop.f32.mrf.mxu0
    %7166 = vdwg.mxu0
    %7167 = vmatpush.bf16.msra.mxu0 %v6389
    %7168 = vmatpush.bf16.msra.mxu0 %v6382
    %7169 = vmatpush.bf16.msra.mxu0 %v6375
    %7170 = vmatpush.bf16.msra.mxu0 %v6368
    %7171 = vmatpush.bf16.msra.mxu0 %v6361
    %7172 = vmatpush.bf16.msra.mxu0 %v6354
    %7173 = vmatpush.bf16.msra.mxu0 %v6347
    %7174 = vmatpush.bf16.msra.mxu0 %v6340
    %7175 = vmatmul.bf16.gmra.mxu0 %v4175
    %v7176 = vpop.f32.mrf.mxu0
    %v7177 = vadd.f32 %v7164, %v7176
    %v7178 = vpop.f32.mrf.mxu0
    %7179 = vdwg.mxu0
    %7180 = vmatpush.bf16.msra.mxu0 %v6445
    %7181 = vmatpush.bf16.msra.mxu0 %v6438
    %7182 = vmatpush.bf16.msra.mxu0 %v6431
    %7183 = vmatpush.bf16.msra.mxu0 %v6424
    %7184 = vmatpush.bf16.msra.mxu0 %v6417
    %7185 = vmatpush.bf16.msra.mxu0 %v6410
    %7186 = vmatpush.bf16.msra.mxu0 %v6403
    %7187 = vmatpush.bf16.msra.mxu0 %v6396
    %7188 = vmatmul.bf16.gmra.mxu0 %v4176
    %v7189 = vpop.f32.mrf.mxu0
    %v7190 = vadd.f32 %v7177, %v7189
    %v7191 = vpop.f32.mrf.mxu0
    %7192 = vdwg.mxu0
    %7193 = vmatpush.bf16.msra.mxu0 %v6501
    %7194 = vmatpush.bf16.msra.mxu0 %v6494
    %7195 = vmatpush.bf16.msra.mxu0 %v6487
    %7196 = vmatpush.bf16.msra.mxu0 %v6480
    %7197 = vmatpush.bf16.msra.mxu0 %v6473
    %7198 = vmatpush.bf16.msra.mxu0 %v6466
    %7199 = vmatpush.bf16.msra.mxu0 %v6459
    %7200 = vmatpush.bf16.msra.mxu0 %v6452
    %7201 = vmatmul.bf16.gmra.mxu0 %v4177
    %v7202 = vpop.f32.mrf.mxu0
    %v7203 = vadd.f32 %v7190, %v7202
    %v7204 = vpop.f32.mrf.mxu0
    %7205 = vdwg.mxu0
    %7206 = vmatpush.bf16.msra.mxu0 %v6557
    %7207 = vmatpush.bf16.msra.mxu0 %v6550
    %7208 = vmatpush.bf16.msra.mxu0 %v6543
    %7209 = vmatpush.bf16.msra.mxu0 %v6536
    %7210 = vmatpush.bf16.msra.mxu0 %v6529
    %7211 = vmatpush.bf16.msra.mxu0 %v6522
    %7212 = vmatpush.bf16.msra.mxu0 %v6515
    %7213 = vmatpush.bf16.msra.mxu0 %v6508
    %7214 = vmatmul.bf16.gmra.mxu0 %v4178
    %v7215 = vpop.f32.mrf.mxu0
    %v7216 = vadd.f32 %v7203, %v7215
    %v7217 = vpop.f32.mrf.mxu0
    %7218 = vdwg.mxu0
    %7219 = vmatpush.bf16.msra.mxu0 %v6166
    %7220 = vmatpush.bf16.msra.mxu0 %v6159
    %7221 = vmatpush.bf16.msra.mxu0 %v6152
    %7222 = vmatpush.bf16.msra.mxu0 %v6145
    %7223 = vmatpush.bf16.msra.mxu0 %v6138
    %7224 = vmatpush.bf16.msra.mxu0 %v6131
    %7225 = vmatpush.bf16.msra.mxu0 %v6124
    %7226 = vmatpush.bf16.msra.mxu0 %v6117
    %7227 = vmatmul.bf16.gmra.mxu0 %v4171
    %v7228 = vpop.f32.mrf.mxu0
    %v7229 = vadd.f32 %v4695, %v7228
    %v7230 = vpop.f32.mrf.mxu0
    %7231 = vdwg.mxu0
    %7232 = vmatpush.bf16.msra.mxu0 %v6222
    %7233 = vmatpush.bf16.msra.mxu0 %v6215
    %7234 = vmatpush.bf16.msra.mxu0 %v6208
    %7235 = vmatpush.bf16.msra.mxu0 %v6201
    %7236 = vmatpush.bf16.msra.mxu0 %v6194
    %7237 = vmatpush.bf16.msra.mxu0 %v6187
    %7238 = vmatpush.bf16.msra.mxu0 %v6180
    %7239 = vmatpush.bf16.msra.mxu0 %v6173
    %7240 = vmatmul.bf16.gmra.mxu0 %v4172
    %v7241 = vpop.f32.mrf.mxu0
    %v7242 = vadd.f32 %v7229, %v7241
    %v7243 = vpop.f32.mrf.mxu0
    %7244 = vdwg.mxu0
    %7245 = vmatpush.bf16.msra.mxu0 %v6278
    %7246 = vmatpush.bf16.msra.mxu0 %v6271
    %7247 = vmatpush.bf16.msra.mxu0 %v6264
    %7248 = vmatpush.bf16.msra.mxu0 %v6257
    %7249 = vmatpush.bf16.msra.mxu0 %v6250
    %7250 = vmatpush.bf16.msra.mxu0 %v6243
    %7251 = vmatpush.bf16.msra.mxu0 %v6236
    %7252 = vmatpush.bf16.msra.mxu0 %v6229
    %7253 = vmatmul.bf16.gmra.mxu0 %v4173
    %v7254 = vpop.f32.mrf.mxu0
    %v7255 = vadd.f32 %v7242, %v7254
    %v7256 = vpop.f32.mrf.mxu0
    %7257 = vdwg.mxu0
    %7258 = vmatpush.bf16.msra.mxu0 %v6334
    %7259 = vmatpush.bf16.msra.mxu0 %v6327
    %7260 = vmatpush.bf16.msra.mxu0 %v6320
    %7261 = vmatpush.bf16.msra.mxu0 %v6313
    %7262 = vmatpush.bf16.msra.mxu0 %v6306
    %7263 = vmatpush.bf16.msra.mxu0 %v6299
    %7264 = vmatpush.bf16.msra.mxu0 %v6292
    %7265 = vmatpush.bf16.msra.mxu0 %v6285
    %7266 = vmatmul.bf16.gmra.mxu0 %v4174
    %v7267 = vpop.f32.mrf.mxu0
    %v7268 = vadd.f32 %v7255, %v7267
    %v7269 = vpop.f32.mrf.mxu0
    %7270 = vdwg.mxu0
    %7271 = vmatpush.bf16.msra.mxu0 %v6390
    %7272 = vmatpush.bf16.msra.mxu0 %v6383
    %7273 = vmatpush.bf16.msra.mxu0 %v6376
    %7274 = vmatpush.bf16.msra.mxu0 %v6369
    %7275 = vmatpush.bf16.msra.mxu0 %v6362
    %7276 = vmatpush.bf16.msra.mxu0 %v6355
    %7277 = vmatpush.bf16.msra.mxu0 %v6348
    %7278 = vmatpush.bf16.msra.mxu0 %v6341
    %7279 = vmatmul.bf16.gmra.mxu0 %v4175
    %v7280 = vpop.f32.mrf.mxu0
    %v7281 = vadd.f32 %v7268, %v7280
    %v7282 = vpop.f32.mrf.mxu0
    %7283 = vdwg.mxu0
    %7284 = vmatpush.bf16.msra.mxu0 %v6446
    %7285 = vmatpush.bf16.msra.mxu0 %v6439
    %7286 = vmatpush.bf16.msra.mxu0 %v6432
    %7287 = vmatpush.bf16.msra.mxu0 %v6425
    %7288 = vmatpush.bf16.msra.mxu0 %v6418
    %7289 = vmatpush.bf16.msra.mxu0 %v6411
    %7290 = vmatpush.bf16.msra.mxu0 %v6404
    %7291 = vmatpush.bf16.msra.mxu0 %v6397
    %7292 = vmatmul.bf16.gmra.mxu0 %v4176
    %v7293 = vpop.f32.mrf.mxu0
    %v7294 = vadd.f32 %v7281, %v7293
    %v7295 = vpop.f32.mrf.mxu0
    %7296 = vdwg.mxu0
    %7297 = vmatpush.bf16.msra.mxu0 %v6502
    %7298 = vmatpush.bf16.msra.mxu0 %v6495
    %7299 = vmatpush.bf16.msra.mxu0 %v6488
    %7300 = vmatpush.bf16.msra.mxu0 %v6481
    %7301 = vmatpush.bf16.msra.mxu0 %v6474
    %7302 = vmatpush.bf16.msra.mxu0 %v6467
    %7303 = vmatpush.bf16.msra.mxu0 %v6460
    %7304 = vmatpush.bf16.msra.mxu0 %v6453
    %7305 = vmatmul.bf16.gmra.mxu0 %v4177
    %v7306 = vpop.f32.mrf.mxu0
    %v7307 = vadd.f32 %v7294, %v7306
    %v7308 = vpop.f32.mrf.mxu0
    %7309 = vdwg.mxu0
    %7310 = vmatpush.bf16.msra.mxu0 %v6558
    %7311 = vmatpush.bf16.msra.mxu0 %v6551
    %7312 = vmatpush.bf16.msra.mxu0 %v6544
    %7313 = vmatpush.bf16.msra.mxu0 %v6537
    %7314 = vmatpush.bf16.msra.mxu0 %v6530
    %7315 = vmatpush.bf16.msra.mxu0 %v6523
    %7316 = vmatpush.bf16.msra.mxu0 %v6516
    %7317 = vmatpush.bf16.msra.mxu0 %v6509
    %7318 = vmatmul.bf16.gmra.mxu0 %v4178
    %v7319 = vpop.f32.mrf.mxu0
    %v7320 = vadd.f32 %v7307, %v7319
    %v7321 = vpop.f32.mrf.mxu0
    %7322 = vdwg.mxu0
    %7323 = vmatpush.bf16.msra.mxu0 %v6167
    %7324 = vmatpush.bf16.msra.mxu0 %v6160
    %7325 = vmatpush.bf16.msra.mxu0 %v6153
    %7326 = vmatpush.bf16.msra.mxu0 %v6146
    %7327 = vmatpush.bf16.msra.mxu0 %v6139
    %7328 = vmatpush.bf16.msra.mxu0 %v6132
    %7329 = vmatpush.bf16.msra.mxu0 %v6125
    %7330 = vmatpush.bf16.msra.mxu0 %v6118
    %7331 = vmatmul.bf16.gmra.mxu0 %v4171
    %v7332 = vpop.f32.mrf.mxu0
    %v7333 = vadd.f32 %v4696, %v7332
    %v7334 = vpop.f32.mrf.mxu0
    %7335 = vdwg.mxu0
    %7336 = vmatpush.bf16.msra.mxu0 %v6223
    %7337 = vmatpush.bf16.msra.mxu0 %v6216
    %7338 = vmatpush.bf16.msra.mxu0 %v6209
    %7339 = vmatpush.bf16.msra.mxu0 %v6202
    %7340 = vmatpush.bf16.msra.mxu0 %v6195
    %7341 = vmatpush.bf16.msra.mxu0 %v6188
    %7342 = vmatpush.bf16.msra.mxu0 %v6181
    %7343 = vmatpush.bf16.msra.mxu0 %v6174
    %7344 = vmatmul.bf16.gmra.mxu0 %v4172
    %v7345 = vpop.f32.mrf.mxu0
    %v7346 = vadd.f32 %v7333, %v7345
    %v7347 = vpop.f32.mrf.mxu0
    %7348 = vdwg.mxu0
    %7349 = vmatpush.bf16.msra.mxu0 %v6279
    %7350 = vmatpush.bf16.msra.mxu0 %v6272
    %7351 = vmatpush.bf16.msra.mxu0 %v6265
    %7352 = vmatpush.bf16.msra.mxu0 %v6258
    %7353 = vmatpush.bf16.msra.mxu0 %v6251
    %7354 = vmatpush.bf16.msra.mxu0 %v6244
    %7355 = vmatpush.bf16.msra.mxu0 %v6237
    %7356 = vmatpush.bf16.msra.mxu0 %v6230
    %7357 = vmatmul.bf16.gmra.mxu0 %v4173
    %v7358 = vpop.f32.mrf.mxu0
    %v7359 = vadd.f32 %v7346, %v7358
    %v7360 = vpop.f32.mrf.mxu0
    %7361 = vdwg.mxu0
    %7362 = vmatpush.bf16.msra.mxu0 %v6335
    %7363 = vmatpush.bf16.msra.mxu0 %v6328
    %7364 = vmatpush.bf16.msra.mxu0 %v6321
    %7365 = vmatpush.bf16.msra.mxu0 %v6314
    %7366 = vmatpush.bf16.msra.mxu0 %v6307
    %7367 = vmatpush.bf16.msra.mxu0 %v6300
    %7368 = vmatpush.bf16.msra.mxu0 %v6293
    %7369 = vmatpush.bf16.msra.mxu0 %v6286
    %7370 = vmatmul.bf16.gmra.mxu0 %v4174
    %v7371 = vpop.f32.mrf.mxu0
    %v7372 = vadd.f32 %v7359, %v7371
    %v7373 = vpop.f32.mrf.mxu0
    %7374 = vdwg.mxu0
    %7375 = vmatpush.bf16.msra.mxu0 %v6391
    %7376 = vmatpush.bf16.msra.mxu0 %v6384
    %7377 = vmatpush.bf16.msra.mxu0 %v6377
    %7378 = vmatpush.bf16.msra.mxu0 %v6370
    %7379 = vmatpush.bf16.msra.mxu0 %v6363
    %7380 = vmatpush.bf16.msra.mxu0 %v6356
    %7381 = vmatpush.bf16.msra.mxu0 %v6349
    %7382 = vmatpush.bf16.msra.mxu0 %v6342
    %7383 = vmatmul.bf16.gmra.mxu0 %v4175
    %v7384 = vpop.f32.mrf.mxu0
    %v7385 = vadd.f32 %v7372, %v7384
    %v7386 = vpop.f32.mrf.mxu0
    %7387 = vdwg.mxu0
    %7388 = vmatpush.bf16.msra.mxu0 %v6447
    %7389 = vmatpush.bf16.msra.mxu0 %v6440
    %7390 = vmatpush.bf16.msra.mxu0 %v6433
    %7391 = vmatpush.bf16.msra.mxu0 %v6426
    %7392 = vmatpush.bf16.msra.mxu0 %v6419
    %7393 = vmatpush.bf16.msra.mxu0 %v6412
    %7394 = vmatpush.bf16.msra.mxu0 %v6405
    %7395 = vmatpush.bf16.msra.mxu0 %v6398
    %7396 = vmatmul.bf16.gmra.mxu0 %v4176
    %v7397 = vpop.f32.mrf.mxu0
    %v7398 = vadd.f32 %v7385, %v7397
    %v7399 = vpop.f32.mrf.mxu0
    %7400 = vdwg.mxu0
    %7401 = vmatpush.bf16.msra.mxu0 %v6503
    %7402 = vmatpush.bf16.msra.mxu0 %v6496
    %7403 = vmatpush.bf16.msra.mxu0 %v6489
    %7404 = vmatpush.bf16.msra.mxu0 %v6482
    %7405 = vmatpush.bf16.msra.mxu0 %v6475
    %7406 = vmatpush.bf16.msra.mxu0 %v6468
    %7407 = vmatpush.bf16.msra.mxu0 %v6461
    %7408 = vmatpush.bf16.msra.mxu0 %v6454
    %7409 = vmatmul.bf16.gmra.mxu0 %v4177
    %v7410 = vpop.f32.mrf.mxu0
    %v7411 = vadd.f32 %v7398, %v7410
    %v7412 = vpop.f32.mrf.mxu0
    %7413 = vdwg.mxu0
    %7414 = vmatpush.bf16.msra.mxu0 %v6559
    %7415 = vmatpush.bf16.msra.mxu0 %v6552
    %7416 = vmatpush.bf16.msra.mxu0 %v6545
    %7417 = vmatpush.bf16.msra.mxu0 %v6538
    %7418 = vmatpush.bf16.msra.mxu0 %v6531
    %7419 = vmatpush.bf16.msra.mxu0 %v6524
    %7420 = vmatpush.bf16.msra.mxu0 %v6517
    %7421 = vmatpush.bf16.msra.mxu0 %v6510
    %7422 = vmatmul.bf16.gmra.mxu0 %v4178
    %v7423 = vpop.f32.mrf.mxu0
    %v7424 = vadd.f32 %v7411, %v7423
    %v7425 = vpop.f32.mrf.mxu0
    %7426 = vdwg.mxu0
    %7427 = vmatpush.bf16.msra.mxu0 %v6168
    %7428 = vmatpush.bf16.msra.mxu0 %v6161
    %7429 = vmatpush.bf16.msra.mxu0 %v6154
    %7430 = vmatpush.bf16.msra.mxu0 %v6147
    %7431 = vmatpush.bf16.msra.mxu0 %v6140
    %7432 = vmatpush.bf16.msra.mxu0 %v6133
    %7433 = vmatpush.bf16.msra.mxu0 %v6126
    %7434 = vmatpush.bf16.msra.mxu0 %v6119
    %7435 = vmatmul.bf16.gmra.mxu0 %v4171
    %v7436 = vpop.f32.mrf.mxu0
    %v7437 = vadd.f32 %v4697, %v7436
    %v7438 = vpop.f32.mrf.mxu0
    %7439 = vdwg.mxu0
    %7440 = vmatpush.bf16.msra.mxu0 %v6224
    %7441 = vmatpush.bf16.msra.mxu0 %v6217
    %7442 = vmatpush.bf16.msra.mxu0 %v6210
    %7443 = vmatpush.bf16.msra.mxu0 %v6203
    %7444 = vmatpush.bf16.msra.mxu0 %v6196
    %7445 = vmatpush.bf16.msra.mxu0 %v6189
    %7446 = vmatpush.bf16.msra.mxu0 %v6182
    %7447 = vmatpush.bf16.msra.mxu0 %v6175
    %7448 = vmatmul.bf16.gmra.mxu0 %v4172
    %v7449 = vpop.f32.mrf.mxu0
    %v7450 = vadd.f32 %v7437, %v7449
    %v7451 = vpop.f32.mrf.mxu0
    %7452 = vdwg.mxu0
    %7453 = vmatpush.bf16.msra.mxu0 %v6280
    %7454 = vmatpush.bf16.msra.mxu0 %v6273
    %7455 = vmatpush.bf16.msra.mxu0 %v6266
    %7456 = vmatpush.bf16.msra.mxu0 %v6259
    %7457 = vmatpush.bf16.msra.mxu0 %v6252
    %7458 = vmatpush.bf16.msra.mxu0 %v6245
    %7459 = vmatpush.bf16.msra.mxu0 %v6238
    %7460 = vmatpush.bf16.msra.mxu0 %v6231
    %7461 = vmatmul.bf16.gmra.mxu0 %v4173
    %v7462 = vpop.f32.mrf.mxu0
    %v7463 = vadd.f32 %v7450, %v7462
    %v7464 = vpop.f32.mrf.mxu0
    %7465 = vdwg.mxu0
    %7466 = vmatpush.bf16.msra.mxu0 %v6336
    %7467 = vmatpush.bf16.msra.mxu0 %v6329
    %7468 = vmatpush.bf16.msra.mxu0 %v6322
    %7469 = vmatpush.bf16.msra.mxu0 %v6315
    %7470 = vmatpush.bf16.msra.mxu0 %v6308
    %7471 = vmatpush.bf16.msra.mxu0 %v6301
    %7472 = vmatpush.bf16.msra.mxu0 %v6294
    %7473 = vmatpush.bf16.msra.mxu0 %v6287
    %7474 = vmatmul.bf16.gmra.mxu0 %v4174
    %v7475 = vpop.f32.mrf.mxu0
    %v7476 = vadd.f32 %v7463, %v7475
    %v7477 = vpop.f32.mrf.mxu0
    %7478 = vdwg.mxu0
    %7479 = vmatpush.bf16.msra.mxu0 %v6392
    %7480 = vmatpush.bf16.msra.mxu0 %v6385
    %7481 = vmatpush.bf16.msra.mxu0 %v6378
    %7482 = vmatpush.bf16.msra.mxu0 %v6371
    %7483 = vmatpush.bf16.msra.mxu0 %v6364
    %7484 = vmatpush.bf16.msra.mxu0 %v6357
    %7485 = vmatpush.bf16.msra.mxu0 %v6350
    %7486 = vmatpush.bf16.msra.mxu0 %v6343
    %7487 = vmatmul.bf16.gmra.mxu0 %v4175
    %v7488 = vpop.f32.mrf.mxu0
    %v7489 = vadd.f32 %v7476, %v7488
    %v7490 = vpop.f32.mrf.mxu0
    %7491 = vdwg.mxu0
    %7492 = vmatpush.bf16.msra.mxu0 %v6448
    %7493 = vmatpush.bf16.msra.mxu0 %v6441
    %7494 = vmatpush.bf16.msra.mxu0 %v6434
    %7495 = vmatpush.bf16.msra.mxu0 %v6427
    %7496 = vmatpush.bf16.msra.mxu0 %v6420
    %7497 = vmatpush.bf16.msra.mxu0 %v6413
    %7498 = vmatpush.bf16.msra.mxu0 %v6406
    %7499 = vmatpush.bf16.msra.mxu0 %v6399
    %7500 = vmatmul.bf16.gmra.mxu0 %v4176
    %v7501 = vpop.f32.mrf.mxu0
    %v7502 = vadd.f32 %v7489, %v7501
    %v7503 = vpop.f32.mrf.mxu0
    %7504 = vdwg.mxu0
    %7505 = vmatpush.bf16.msra.mxu0 %v6504
    %7506 = vmatpush.bf16.msra.mxu0 %v6497
    %7507 = vmatpush.bf16.msra.mxu0 %v6490
    %7508 = vmatpush.bf16.msra.mxu0 %v6483
    %7509 = vmatpush.bf16.msra.mxu0 %v6476
    %7510 = vmatpush.bf16.msra.mxu0 %v6469
    %7511 = vmatpush.bf16.msra.mxu0 %v6462
    %7512 = vmatpush.bf16.msra.mxu0 %v6455
    %7513 = vmatmul.bf16.gmra.mxu0 %v4177
    %v7514 = vpop.f32.mrf.mxu0
    %v7515 = vadd.f32 %v7502, %v7514
    %v7516 = vpop.f32.mrf.mxu0
    %7517 = vdwg.mxu0
    %7518 = vmatpush.bf16.msra.mxu0 %v6560
    %7519 = vmatpush.bf16.msra.mxu0 %v6553
    %7520 = vmatpush.bf16.msra.mxu0 %v6546
    %7521 = vmatpush.bf16.msra.mxu0 %v6539
    %7522 = vmatpush.bf16.msra.mxu0 %v6532
    %7523 = vmatpush.bf16.msra.mxu0 %v6525
    %7524 = vmatpush.bf16.msra.mxu0 %v6518
    %7525 = vmatpush.bf16.msra.mxu0 %v6511
    %7526 = vmatmul.bf16.gmra.mxu0 %v4178
    %v7527 = vpop.f32.mrf.mxu0
    %v7528 = vadd.f32 %v7515, %v7527
    %v7529 = vpop.f32.mrf.mxu0
    %7530 = vdwg.mxu0
    %7531 = vmatpush.bf16.msra.mxu0 %v6169
    %7532 = vmatpush.bf16.msra.mxu0 %v6162
    %7533 = vmatpush.bf16.msra.mxu0 %v6155
    %7534 = vmatpush.bf16.msra.mxu0 %v6148
    %7535 = vmatpush.bf16.msra.mxu0 %v6141
    %7536 = vmatpush.bf16.msra.mxu0 %v6134
    %7537 = vmatpush.bf16.msra.mxu0 %v6127
    %7538 = vmatpush.bf16.msra.mxu0 %v6120
    %7539 = vmatmul.bf16.gmra.mxu0 %v4171
    %v7540 = vpop.f32.mrf.mxu0
    %v7541 = vadd.f32 %v4698, %v7540
    %v7542 = vpop.f32.mrf.mxu0
    %7543 = vdwg.mxu0
    %7544 = vmatpush.bf16.msra.mxu0 %v6225
    %7545 = vmatpush.bf16.msra.mxu0 %v6218
    %7546 = vmatpush.bf16.msra.mxu0 %v6211
    %7547 = vmatpush.bf16.msra.mxu0 %v6204
    %7548 = vmatpush.bf16.msra.mxu0 %v6197
    %7549 = vmatpush.bf16.msra.mxu0 %v6190
    %7550 = vmatpush.bf16.msra.mxu0 %v6183
    %7551 = vmatpush.bf16.msra.mxu0 %v6176
    %7552 = vmatmul.bf16.gmra.mxu0 %v4172
    %v7553 = vpop.f32.mrf.mxu0
    %v7554 = vadd.f32 %v7541, %v7553
    %v7555 = vpop.f32.mrf.mxu0
    %7556 = vdwg.mxu0
    %7557 = vmatpush.bf16.msra.mxu0 %v6281
    %7558 = vmatpush.bf16.msra.mxu0 %v6274
    %7559 = vmatpush.bf16.msra.mxu0 %v6267
    %7560 = vmatpush.bf16.msra.mxu0 %v6260
    %7561 = vmatpush.bf16.msra.mxu0 %v6253
    %7562 = vmatpush.bf16.msra.mxu0 %v6246
    %7563 = vmatpush.bf16.msra.mxu0 %v6239
    %7564 = vmatpush.bf16.msra.mxu0 %v6232
    %7565 = vmatmul.bf16.gmra.mxu0 %v4173
    %v7566 = vpop.f32.mrf.mxu0
    %v7567 = vadd.f32 %v7554, %v7566
    %v7568 = vpop.f32.mrf.mxu0
    %7569 = vdwg.mxu0
    %7570 = vmatpush.bf16.msra.mxu0 %v6337
    %7571 = vmatpush.bf16.msra.mxu0 %v6330
    %7572 = vmatpush.bf16.msra.mxu0 %v6323
    %7573 = vmatpush.bf16.msra.mxu0 %v6316
    %7574 = vmatpush.bf16.msra.mxu0 %v6309
    %7575 = vmatpush.bf16.msra.mxu0 %v6302
    %7576 = vmatpush.bf16.msra.mxu0 %v6295
    %7577 = vmatpush.bf16.msra.mxu0 %v6288
    %7578 = vmatmul.bf16.gmra.mxu0 %v4174
    %v7579 = vpop.f32.mrf.mxu0
    %v7580 = vadd.f32 %v7567, %v7579
    %v7581 = vpop.f32.mrf.mxu0
    %7582 = vdwg.mxu0
    %7583 = vmatpush.bf16.msra.mxu0 %v6393
    %7584 = vmatpush.bf16.msra.mxu0 %v6386
    %7585 = vmatpush.bf16.msra.mxu0 %v6379
    %7586 = vmatpush.bf16.msra.mxu0 %v6372
    %7587 = vmatpush.bf16.msra.mxu0 %v6365
    %7588 = vmatpush.bf16.msra.mxu0 %v6358
    %7589 = vmatpush.bf16.msra.mxu0 %v6351
    %7590 = vmatpush.bf16.msra.mxu0 %v6344
    %7591 = vmatmul.bf16.gmra.mxu0 %v4175
    %v7592 = vpop.f32.mrf.mxu0
    %v7593 = vadd.f32 %v7580, %v7592
    %v7594 = vpop.f32.mrf.mxu0
    %7595 = vdwg.mxu0
    %7596 = vmatpush.bf16.msra.mxu0 %v6449
    %7597 = vmatpush.bf16.msra.mxu0 %v6442
    %7598 = vmatpush.bf16.msra.mxu0 %v6435
    %7599 = vmatpush.bf16.msra.mxu0 %v6428
    %7600 = vmatpush.bf16.msra.mxu0 %v6421
    %7601 = vmatpush.bf16.msra.mxu0 %v6414
    %7602 = vmatpush.bf16.msra.mxu0 %v6407
    %7603 = vmatpush.bf16.msra.mxu0 %v6400
    %7604 = vmatmul.bf16.gmra.mxu0 %v4176
    %v7605 = vpop.f32.mrf.mxu0
    %v7606 = vadd.f32 %v7593, %v7605
    %v7607 = vpop.f32.mrf.mxu0
    %7608 = vdwg.mxu0
    %7609 = vmatpush.bf16.msra.mxu0 %v6505
    %7610 = vmatpush.bf16.msra.mxu0 %v6498
    %7611 = vmatpush.bf16.msra.mxu0 %v6491
    %7612 = vmatpush.bf16.msra.mxu0 %v6484
    %7613 = vmatpush.bf16.msra.mxu0 %v6477
    %7614 = vmatpush.bf16.msra.mxu0 %v6470
    %7615 = vmatpush.bf16.msra.mxu0 %v6463
    %7616 = vmatpush.bf16.msra.mxu0 %v6456
    %7617 = vmatmul.bf16.gmra.mxu0 %v4177
    %v7618 = vpop.f32.mrf.mxu0
    %v7619 = vadd.f32 %v7606, %v7618
    %v7620 = vpop.f32.mrf.mxu0
    %7621 = vdwg.mxu0
    %7622 = vmatpush.bf16.msra.mxu0 %v6561
    %7623 = vmatpush.bf16.msra.mxu0 %v6554
    %7624 = vmatpush.bf16.msra.mxu0 %v6547
    %7625 = vmatpush.bf16.msra.mxu0 %v6540
    %7626 = vmatpush.bf16.msra.mxu0 %v6533
    %7627 = vmatpush.bf16.msra.mxu0 %v6526
    %7628 = vmatpush.bf16.msra.mxu0 %v6519
    %7629 = vmatpush.bf16.msra.mxu0 %v6512
    %7630 = vmatmul.bf16.gmra.mxu0 %v4178
    %v7631 = vpop.f32.mrf.mxu0
    %v7632 = vadd.f32 %v7619, %v7631
    %v7633 = vpop.f32.mrf.mxu0
    %7634 = vdwg.mxu0
    %7635 = vmatpush.bf16.msra.mxu0 %v6170
    %7636 = vmatpush.bf16.msra.mxu0 %v6163
    %7637 = vmatpush.bf16.msra.mxu0 %v6156
    %7638 = vmatpush.bf16.msra.mxu0 %v6149
    %7639 = vmatpush.bf16.msra.mxu0 %v6142
    %7640 = vmatpush.bf16.msra.mxu0 %v6135
    %7641 = vmatpush.bf16.msra.mxu0 %v6128
    %7642 = vmatpush.bf16.msra.mxu0 %v6121
    %7643 = vmatmul.bf16.gmra.mxu0 %v4171
    %v7644 = vpop.f32.mrf.mxu0
    %v7645 = vadd.f32 %v4699, %v7644
    %v7646 = vpop.f32.mrf.mxu0
    %7647 = vdwg.mxu0
    %7648 = vmatpush.bf16.msra.mxu0 %v6226
    %7649 = vmatpush.bf16.msra.mxu0 %v6219
    %7650 = vmatpush.bf16.msra.mxu0 %v6212
    %7651 = vmatpush.bf16.msra.mxu0 %v6205
    %7652 = vmatpush.bf16.msra.mxu0 %v6198
    %7653 = vmatpush.bf16.msra.mxu0 %v6191
    %7654 = vmatpush.bf16.msra.mxu0 %v6184
    %7655 = vmatpush.bf16.msra.mxu0 %v6177
    %7656 = vmatmul.bf16.gmra.mxu0 %v4172
    %v7657 = vpop.f32.mrf.mxu0
    %v7658 = vadd.f32 %v7645, %v7657
    %v7659 = vpop.f32.mrf.mxu0
    %7660 = vdwg.mxu0
    %7661 = vmatpush.bf16.msra.mxu0 %v6282
    %7662 = vmatpush.bf16.msra.mxu0 %v6275
    %7663 = vmatpush.bf16.msra.mxu0 %v6268
    %7664 = vmatpush.bf16.msra.mxu0 %v6261
    %7665 = vmatpush.bf16.msra.mxu0 %v6254
    %7666 = vmatpush.bf16.msra.mxu0 %v6247
    %7667 = vmatpush.bf16.msra.mxu0 %v6240
    %7668 = vmatpush.bf16.msra.mxu0 %v6233
    %7669 = vmatmul.bf16.gmra.mxu0 %v4173
    %v7670 = vpop.f32.mrf.mxu0
    %v7671 = vadd.f32 %v7658, %v7670
    %v7672 = vpop.f32.mrf.mxu0
    %7673 = vdwg.mxu0
    %7674 = vmatpush.bf16.msra.mxu0 %v6338
    %7675 = vmatpush.bf16.msra.mxu0 %v6331
    %7676 = vmatpush.bf16.msra.mxu0 %v6324
    %7677 = vmatpush.bf16.msra.mxu0 %v6317
    %7678 = vmatpush.bf16.msra.mxu0 %v6310
    %7679 = vmatpush.bf16.msra.mxu0 %v6303
    %7680 = vmatpush.bf16.msra.mxu0 %v6296
    %7681 = vmatpush.bf16.msra.mxu0 %v6289
    %7682 = vmatmul.bf16.gmra.mxu0 %v4174
    %v7683 = vpop.f32.mrf.mxu0
    %v7684 = vadd.f32 %v7671, %v7683
    %v7685 = vpop.f32.mrf.mxu0
    %7686 = vdwg.mxu0
    %7687 = vmatpush.bf16.msra.mxu0 %v6394
    %7688 = vmatpush.bf16.msra.mxu0 %v6387
    %7689 = vmatpush.bf16.msra.mxu0 %v6380
    %7690 = vmatpush.bf16.msra.mxu0 %v6373
    %7691 = vmatpush.bf16.msra.mxu0 %v6366
    %7692 = vmatpush.bf16.msra.mxu0 %v6359
    %7693 = vmatpush.bf16.msra.mxu0 %v6352
    %7694 = vmatpush.bf16.msra.mxu0 %v6345
    %7695 = vmatmul.bf16.gmra.mxu0 %v4175
    %v7696 = vpop.f32.mrf.mxu0
    %v7697 = vadd.f32 %v7684, %v7696
    %v7698 = vpop.f32.mrf.mxu0
    %7699 = vdwg.mxu0
    %7700 = vmatpush.bf16.msra.mxu0 %v6450
    %7701 = vmatpush.bf16.msra.mxu0 %v6443
    %7702 = vmatpush.bf16.msra.mxu0 %v6436
    %7703 = vmatpush.bf16.msra.mxu0 %v6429
    %7704 = vmatpush.bf16.msra.mxu0 %v6422
    %7705 = vmatpush.bf16.msra.mxu0 %v6415
    %7706 = vmatpush.bf16.msra.mxu0 %v6408
    %7707 = vmatpush.bf16.msra.mxu0 %v6401
    %7708 = vmatmul.bf16.gmra.mxu0 %v4176
    %v7709 = vpop.f32.mrf.mxu0
    %v7710 = vadd.f32 %v7697, %v7709
    %v7711 = vpop.f32.mrf.mxu0
    %7712 = vdwg.mxu0
    %7713 = vmatpush.bf16.msra.mxu0 %v6506
    %7714 = vmatpush.bf16.msra.mxu0 %v6499
    %7715 = vmatpush.bf16.msra.mxu0 %v6492
    %7716 = vmatpush.bf16.msra.mxu0 %v6485
    %7717 = vmatpush.bf16.msra.mxu0 %v6478
    %7718 = vmatpush.bf16.msra.mxu0 %v6471
    %7719 = vmatpush.bf16.msra.mxu0 %v6464
    %7720 = vmatpush.bf16.msra.mxu0 %v6457
    %7721 = vmatmul.bf16.gmra.mxu0 %v4177
    %v7722 = vpop.f32.mrf.mxu0
    %v7723 = vadd.f32 %v7710, %v7722
    %v7724 = vpop.f32.mrf.mxu0
    %7725 = vdwg.mxu0
    %7726 = vmatpush.bf16.msra.mxu0 %v6562
    %7727 = vmatpush.bf16.msra.mxu0 %v6555
    %7728 = vmatpush.bf16.msra.mxu0 %v6548
    %7729 = vmatpush.bf16.msra.mxu0 %v6541
    %7730 = vmatpush.bf16.msra.mxu0 %v6534
    %7731 = vmatpush.bf16.msra.mxu0 %v6527
    %7732 = vmatpush.bf16.msra.mxu0 %v6520
    %7733 = vmatpush.bf16.msra.mxu0 %v6513
    %7734 = vmatmul.bf16.gmra.mxu0 %v4178
    %v7735 = vpop.f32.mrf.mxu0
    %v7736 = vadd.f32 %v7723, %v7735
    %v7737 = vpop.f32.mrf.mxu0
    %7738 = vdwg.mxu0
    %v7739 = vxor.u32 %v7112, 2147483648
    %v7740 = vxor.u32 %v7216, 2147483648
    %v7741 = vxor.u32 %v7320, 2147483648
    %v7742 = vxor.u32 %v7424, 2147483648
    %v7743 = vxor.u32 %v7528, 2147483648
    %v7744 = vxor.u32 %v7632, 2147483648
    %v7745 = vxor.u32 %v7736, 2147483648
    %v7746 = vmul.f32 %v7739, 1.442695
    %v7747 = vpow.pop %v7746
    %v7748 = vmul.f32 %v7740, 1.442695
    %v7749 = vpow.pop %v7748
    %v7750 = vmul.f32 %v7741, 1.442695
    %v7751 = vpow.pop %v7750
    %v7752 = vmul.f32 %v7742, 1.442695
    %v7753 = vpow.pop %v7752
    %v7754 = vmul.f32 %v7743, 1.442695
    %v7755 = vpow.pop %v7754
    %v7756 = vmul.f32 %v7744, 1.442695
    %v7757 = vpow.pop %v7756
    %v7758 = vmul.f32 %v7745, 1.442695
    %v7759 = vpow.pop %v7758
    %v7760 = vadd.f32 %v7747, 1.0
    %v7761 = vadd.f32 %v7749, 1.0
    %v7762 = vadd.f32 %v7751, 1.0
    %v7763 = vadd.f32 %v7753, 1.0
    %v7764 = vadd.f32 %v7755, 1.0
    %v7765 = vadd.f32 %v7757, 1.0
    %v7766 = vadd.f32 %v7759, 1.0
    %v7767 = vrcp.pop %v7760
    %v7768 = vmul.f32 %v7760, %v7767
    %v7769 = vsub.f32 1.0, %v7768
    %v7770 = vmul.f32 %v7767, %v7769
    %v7771 = vadd.f32 %v7767, %v7770
    %vm7772 = vweird.f32 %v7760
    %vm7773 = vweird.f32 %v7767
    %vm7774 = vmor %vm7772, %vm7773
    %v7775 = vsel %vm7774, %v7767, %v7771
    %v7776 = vand.u32 2147483647, %v7760
    %vm7777 = vcmp.eq.f32.partialorder %v7776, 8.507059e+37
    %v7778 = vand.u32 %v7760, 2147483648
    %v7779 = vor.u32 1.1754944e-38, %v7778
    %v7780 = vsel %vm7777, %v7779, %v7775
    %v7781 = vmul.f32 1.0, %v7780
    %v7782 = vrcp.pop %v7761
    %v7783 = vmul.f32 %v7761, %v7782
    %v7784 = vsub.f32 1.0, %v7783
    %v7785 = vmul.f32 %v7782, %v7784
    %v7786 = vadd.f32 %v7782, %v7785
    %vm7787 = vweird.f32 %v7761
    %vm7788 = vweird.f32 %v7782
    %vm7789 = vmor %vm7787, %vm7788
    %v7790 = vsel %vm7789, %v7782, %v7786
    %v7791 = vand.u32 2147483647, %v7761
    %vm7792 = vcmp.eq.f32.partialorder %v7791, 8.507059e+37
    %v7793 = vand.u32 %v7761, 2147483648
    %v7794 = vor.u32 1.1754944e-38, %v7793
    %v7795 = vsel %vm7792, %v7794, %v7790
    %v7796 = vmul.f32 1.0, %v7795
    %v7797 = vrcp.pop %v7762
    %v7798 = vmul.f32 %v7762, %v7797
    %v7799 = vsub.f32 1.0, %v7798
    %v7800 = vmul.f32 %v7797, %v7799
    %v7801 = vadd.f32 %v7797, %v7800
    %vm7802 = vweird.f32 %v7762
    %vm7803 = vweird.f32 %v7797
    %vm7804 = vmor %vm7802, %vm7803
    %v7805 = vsel %vm7804, %v7797, %v7801
    %v7806 = vand.u32 2147483647, %v7762
    %vm7807 = vcmp.eq.f32.partialorder %v7806, 8.507059e+37
    %v7808 = vand.u32 %v7762, 2147483648
    %v7809 = vor.u32 1.1754944e-38, %v7808
    %v7810 = vsel %vm7807, %v7809, %v7805
    %v7811 = vmul.f32 1.0, %v7810
    %v7812 = vrcp.pop %v7763
    %v7813 = vmul.f32 %v7763, %v7812
    %v7814 = vsub.f32 1.0, %v7813
    %v7815 = vmul.f32 %v7812, %v7814
    %v7816 = vadd.f32 %v7812, %v7815
    %vm7817 = vweird.f32 %v7763
    %vm7818 = vweird.f32 %v7812
    %vm7819 = vmor %vm7817, %vm7818
    %v7820 = vsel %vm7819, %v7812, %v7816
    %v7821 = vand.u32 2147483647, %v7763
    %vm7822 = vcmp.eq.f32.partialorder %v7821, 8.507059e+37
    %v7823 = vand.u32 %v7763, 2147483648
    %v7824 = vor.u32 1.1754944e-38, %v7823
    %v7825 = vsel %vm7822, %v7824, %v7820
    %v7826 = vmul.f32 1.0, %v7825
    %v7827 = vrcp.pop %v7764
    %v7828 = vmul.f32 %v7764, %v7827
    %v7829 = vsub.f32 1.0, %v7828
    %v7830 = vmul.f32 %v7827, %v7829
    %v7831 = vadd.f32 %v7827, %v7830
    %vm7832 = vweird.f32 %v7764
    %vm7833 = vweird.f32 %v7827
    %vm7834 = vmor %vm7832, %vm7833
    %v7835 = vsel %vm7834, %v7827, %v7831
    %v7836 = vand.u32 2147483647, %v7764
    %vm7837 = vcmp.eq.f32.partialorder %v7836, 8.507059e+37
    %v7838 = vand.u32 %v7764, 2147483648
    %v7839 = vor.u32 1.1754944e-38, %v7838
    %v7840 = vsel %vm7837, %v7839, %v7835
    %v7841 = vmul.f32 1.0, %v7840
    %v7842 = vrcp.pop %v7765
    %v7843 = vmul.f32 %v7765, %v7842
    %v7844 = vsub.f32 1.0, %v7843
    %v7845 = vmul.f32 %v7842, %v7844
    %v7846 = vadd.f32 %v7842, %v7845
    %vm7847 = vweird.f32 %v7765
    %vm7848 = vweird.f32 %v7842
    %vm7849 = vmor %vm7847, %vm7848
    %v7850 = vsel %vm7849, %v7842, %v7846
    %v7851 = vand.u32 2147483647, %v7765
    %vm7852 = vcmp.eq.f32.partialorder %v7851, 8.507059e+37
    %v7853 = vand.u32 %v7765, 2147483648
    %v7854 = vor.u32 1.1754944e-38, %v7853
    %v7855 = vsel %vm7852, %v7854, %v7850
    %v7856 = vmul.f32 1.0, %v7855
    %v7857 = vrcp.pop %v7766
    %v7858 = vmul.f32 %v7766, %v7857
    %v7859 = vsub.f32 1.0, %v7858
    %v7860 = vmul.f32 %v7857, %v7859
    %v7861 = vadd.f32 %v7857, %v7860
    %vm7862 = vweird.f32 %v7766
    %vm7863 = vweird.f32 %v7857
    %vm7864 = vmor %vm7862, %vm7863
    %v7865 = vsel %vm7864, %v7857, %v7861
    %v7866 = vand.u32 2147483647, %v7766
    %vm7867 = vcmp.eq.f32.partialorder %v7866, 8.507059e+37
    %v7868 = vand.u32 %v7766, 2147483648
    %v7869 = vor.u32 1.1754944e-38, %v7868
    %v7870 = vsel %vm7867, %v7869, %v7865
    %v7871 = vmul.f32 1.0, %v7870
    %7872 = vst [vmem:[#allocation13] sm:$0xff] %v7781
    %7873 = vst [vmem:[#allocation13 + $0x8] sm:$0xff] %v7796
    %7874 = vst [vmem:[#allocation13 + $0x10] sm:$0xff] %v7811
    %7875 = vst [vmem:[#allocation13 + $0x18] sm:$0xff] %v7826
    %7876 = vst [vmem:[#allocation13 + $0x20] sm:$0xff] %v7841
    %7877 = vst [vmem:[#allocation13 + $0x28] sm:$0xff] %v7856
    %7878 = vst [vmem:[#allocation13 + $0x30] sm:$0xff] %v7871
    // Predicated region
    $region54: #{tpu_custom_call.1} parent=1 // pred_check
      _
    $region55: #{tpu_custom_call.1} parent=1 // pred_check_branch
      %7880 = sbr.rel (0) target = $region57
    $region56: #{tpu_custom_call.1} parent=1 // pred_region
      %7882 = vsyncadd [#allocation4], 0
      %s7884 = sshll.u32 [#allocation13], 4
      %s7885 = int_to_ptr.vmem [resolvable:$true] %s7884
      %s7886 = sshll.u32 %s7, 4
      %s7887 = int_to_ptr.hbm [resolvable:$true] %s7886
      %7889 = dma.vmem_to_hbm [thread:$0]  %s7885, 896, %s7887, [#allocation4]
    $region57: #{tpu_custom_call.1} parent=1 // pred_fallthru
      _
    // Predicated region
    $region58: #{tpu_custom_call.1} parent=1 // pred_check
      _
    $region59: #{tpu_custom_call.1} parent=1 // pred_check_branch
      %7891 = sbr.rel (0) target = $region61
    $region60: #{tpu_custom_call.1} parent=1 // pred_region
      %7893 = dma.done [#allocation4], 896
    $region61: #{tpu_custom_call.1} parent=1 // pred_fallthru
      _
    %7894 = vsyncpa [#allocation3], 1
    %7895 = vsyncpa [#allocation6], 1
    %7896 = vsyncpa [#allocation9], 1
    %7897 = vsyncpa [#allocation12], 1
    %7898 = vsyncpa [#allocation4], 1

</llo_original>
